<compile_context>
chip_gen: v7x
topology: tpu7x:2x2x1
jax: 0.10.0
libtpu: 0.0.40
codegen_flags: <defaults>
</compile_context>

<pallas_src>
import math

import jax
import jax.numpy as jnp
from jax.experimental import pallas as pl
from jax.experimental.pallas import tpu as pltpu

BN_EPS = 1e-5  # PyTorch BatchNorm2d default eps


# ------------------------------ Pallas kernel --------------------------------

def _down_block_kernel(x_ref, w1_ref, w2_ref, g1_ref, be1_ref, g2_ref, be2_ref,
                       o_ref, xpad_ref, hpad_ref):
    """Fused (conv3x3 -> BN(train) -> ReLU) x2 on a pooled NHWC block, all in VMEM.

    x_ref    : (N, H, W, Cin)      f32   pooled input
    w1_ref   : (9, Cin, Cout)      bf16  conv1 taps, t = ky*3 + kx
    w2_ref   : (9, Cout, Cout)     bf16  conv2 taps
    g*/be*   : (1, Cout)           f32   BatchNorm gamma / beta
    o_ref    : (N, H, W, Cout)     f32   output
    xpad_ref : (N, H+2, W+2, Cin)  f32   VMEM scratch (zero-padded input)
    hpad_ref : (N, H+2, W+2, Cout) f32   VMEM scratch (zero-padded hidden act)
    """
    N, H, W, Cin = x_ref.shape
    Cout = o_ref.shape[-1]
    M = N * H * W

    def conv3x3(src_ref, w_ref, cin):
        # In-kernel im2col: 9 shifted slices of the padded scratch -> MXU,
        # bf16 operands, f32 accumulation.  Bias omitted (absorbed by BN).
        acc = jnp.zeros((M, Cout), jnp.float32)
        for t in range(9):
            ky, kx = t // 3, t % 3
            tap = src_ref[:, ky:ky + H, kx:kx + W, :].reshape(M, cin)
            acc = acc + jnp.dot(tap.astype(jnp.bfloat16), w_ref[t],
                                preferred_element_type=jnp.float32)
        return acc

    def bn_relu(acc, g_ref, b_ref):
        # BatchNorm2d, training mode: batch statistics, biased variance.
        mean = jnp.mean(acc, axis=0, keepdims=True)
        var = jnp.mean(jnp.square(acc - mean), axis=0, keepdims=True)
        scale = g_ref[...] * jax.lax.rsqrt(var + BN_EPS)
        shift = b_ref[...] - mean * scale
        return jnp.maximum(acc * scale + shift, 0.0)

    # --- conv1 + BN1 + ReLU ---------------------------------------------
    xpad_ref[...] = jnp.zeros_like(xpad_ref)
    xpad_ref[:, 1:H + 1, 1:W + 1, :] = x_ref[...]
    h = bn_relu(conv3x3(xpad_ref, w1_ref, Cin), g1_ref, be1_ref)

    # --- conv2 + BN2 + ReLU ---------------------------------------------
    hpad_ref[...] = jnp.zeros_like(hpad_ref)
    hpad_ref[:, 1:H + 1, 1:W + 1, :] = h.reshape(N, H, W, Cout)
    out = bn_relu(conv3x3(hpad_ref, w2_ref, Cout), g2_ref, be2_ref)

    o_ref[...] = out.reshape(N, H, W, Cout)


# ------------------------------ wrapper ---------------------------------------

def down_forward(params, x_nchw):
    """PyTorch `down.forward`: (N, Cin, H, W) -> (N, Cout, H/2, W/2)."""
    x = jnp.transpose(x_nchw, (0, 2, 3, 1))              # NCHW -> NHWC (layout glue)
    N, H, W, Cin = x.shape
    Hp, Wp = H // 2, W // 2
    # TODO(synk): 2x2 max-pool kept as cheap plain-JAX reshape+max glue.
    xp = jnp.max(x.reshape(N, Hp, 2, Wp, 2, Cin), axis=(2, 4))
    Cout = params["g1"].shape[0]

    out_nhwc = pl.pallas_call(
        _down_block_kernel,
        out_shape=jax.ShapeDtypeStruct((N, Hp, Wp, Cout), jnp.float32),
        scratch_shapes=[
            pltpu.VMEM((N, Hp + 2, Wp + 2, Cin), jnp.float32),
            pltpu.VMEM((N, Hp + 2, Wp + 2, Cout), jnp.float32),
        ],
    )(xp,
      params["w1"], params["w2"],
      params["g1"].reshape(1, Cout), params["be1"].reshape(1, Cout),
      params["g2"].reshape(1, Cout), params["be2"].reshape(1, Cout))

    return jnp.transpose(out_nhwc, (0, 3, 1, 2))          # NHWC -> NCHW


# ------------------------------ params ----------------------------------------

def init_down_params(key, in_ch, out_ch):
    """Conv weights in (9, Cin, Cout) tap-major layout (t = ky*3 + kx), bf16.
    Conv biases are omitted: exactly cancelled by the BN mean subtraction."""
    k1, k2 = jax.random.split(key)

    def conv_w(k, cin, cout):
        fan_in = cin * 9
        bound = 1.0 / math.sqrt(fan_in)       # PyTorch Conv2d default init
        w = jax.random.uniform(k, (9, cin, cout), jnp.float32, -bound, bound)
        return w.astype(jnp.bfloat16)         # bf16 MXU operands

    return dict(
        w1=conv_w(k1, in_ch, out_ch),
        w2=conv_w(k2, out_ch, out_ch),
        g1=jnp.ones((out_ch,), jnp.float32), be1=jnp.zeros((out_ch,), jnp.float32),
        g2=jnp.ones((out_ch,), jnp.float32), be2=jnp.zeros((out_ch,), jnp.float32),
    )


# ------------------------------ reference (pure JAX) ---------------------------

def _reference_down(params, x_nchw):
    """Independent JAX reference (lax.conv) for a sanity check."""
    x = jnp.transpose(x_nchw, (0, 2, 3, 1))
    N, H, W, Cin = x.shape
    xp = jnp.max(x.reshape(N, H // 2, 2, W // 2, 2, Cin), axis=(2, 4))

    def conv_bn_relu(h, w, g, b):
        w_hwio = w.astype(jnp.float32).reshape(3, 3, w.shape[1], w.shape[2])
        y = jax.lax.conv_general_dilated(
            h, w_hwio, window_strides=(1, 1), padding="SAME",
            dimension_numbers=("NHWC", "HWIO", "NHWC"))
        mean = jnp.mean(y, axis=(0, 1, 2))
        var = jnp.mean(jnp.square(y - mean), axis=(0, 1, 2))
        return jnp.maximum((y - mean) * g / jnp.sqrt(var + BN_EPS) + b, 0.0)

    h = conv_bn_relu(xp, params["w1"], params["g1"], params["be1"])
    h = conv_bn_relu(h, params["w2"], params["g2"], params["be2"])
    return jnp.transpose(h, (0, 3, 1, 2))


# ------------------------------ main -------------------------------------------

if __name__ == "__main__":
    key = jax.random.PRNGKey(0)
    kp, kx = jax.random.split(key)

    IN_CH, OUT_CH = 32, 64                       # typical U-Net down stage
    params = init_down_params(kp, IN_CH, OUT_CH)
    x = jax.random.normal(kx, (2, IN_CH, 16, 16), dtype=jnp.float32)  # NCHW

    fwd = jax.jit(down_forward)
    out = jax.block_until_ready(fwd(params, x))

    assert out.shape == (2, OUT_CH, 8, 8), out.shape
    assert bool(jnp.all(jnp.isfinite(out)))
    assert bool(jnp.all(out >= 0.0))             # ReLU output

    ref = jax.block_until_ready(_reference_down(params, x))
    max_abs_err = float(jnp.max(jnp.abs(out - ref)))
    assert max_abs_err < 0.25, f"max abs err vs reference: {max_abs_err}"

    print("KERNEL_OK")
</pallas_src>

<mosaic_0001>
module attributes {stable_mosaic.version = 11 : i64} {
  func.func @_down_block_kernel(%arg0: memref<2x8x8x32xf32, #tpu.memory_space<vmem>>, %arg1: memref<9x32x64xbf16, #tpu.memory_space<vmem>>, %arg2: memref<9x64x64xbf16, #tpu.memory_space<vmem>>, %arg3: memref<1x64xf32, #tpu.memory_space<vmem>>, %arg4: memref<1x64xf32, #tpu.memory_space<vmem>>, %arg5: memref<1x64xf32, #tpu.memory_space<vmem>>, %arg6: memref<1x64xf32, #tpu.memory_space<vmem>>, %arg7: memref<2x8x8x64xf32, #tpu.memory_space<vmem>>, %arg8: memref<2x10x10x32xf32, #tpu.memory_space<vmem>>, %arg9: memref<2x10x10x64xf32, #tpu.memory_space<vmem>>) attributes {dimension_semantics = [], scalar_prefetch = 0 : i64, scratch_operands = 2 : i64, tpu.core_type = #tpu.core_type<tc>} {
    %cst = arith.constant 0.000000e+00 : f32
    %0 = vector.broadcast %cst : f32 to vector<2x10x10x32xf32>
    %c0 = arith.constant 0 : index
    %c0_0 = arith.constant 0 : index
    %c0_1 = arith.constant 0 : index
    %c0_2 = arith.constant 0 : index
    %1 = vector.load %arg8[%c0, %c0_0, %c0_1, %c0_2] : memref<2x10x10x32xf32, #tpu.memory_space<vmem>>, vector<2x10x10x32xf32>
    tpu.vector_store %arg8[%c0, %c0_0, %c0_1, %c0_2], %0 {strides = array<i32>} : memref<2x10x10x32xf32, #tpu.memory_space<vmem>>, vector<2x10x10x32xf32>,
    %c0_3 = arith.constant 0 : index
    %c0_4 = arith.constant 0 : index
    %c0_5 = arith.constant 0 : index
    %c0_6 = arith.constant 0 : index
    %2 = vector.load %arg0[%c0_3, %c0_4, %c0_5, %c0_6] : memref<2x8x8x32xf32, #tpu.memory_space<vmem>>, vector<2x8x8x32xf32>
    %c0_7 = arith.constant 0 : index
    %c1 = arith.constant 1 : index
    %c1_8 = arith.constant 1 : index
    %c0_9 = arith.constant 0 : index
    %3 = vector.load %arg8[%c0_7, %c1, %c1_8, %c0_9] : memref<2x10x10x32xf32, #tpu.memory_space<vmem>>, vector<2x8x8x32xf32>
    tpu.vector_store %arg8[%c0_7, %c1, %c1_8, %c0_9], %2 {strides = array<i32>} : memref<2x10x10x32xf32, #tpu.memory_space<vmem>>, vector<2x8x8x32xf32>,
    %cst_10 = arith.constant 0.000000e+00 : f32
    %4 = vector.broadcast %cst_10 : f32 to vector<128x64xf32>
    %c0_11 = arith.constant 0 : index
    %c0_12 = arith.constant 0 : index
    %c0_13 = arith.constant 0 : index
    %c0_14 = arith.constant 0 : index
    %5 = vector.load %arg8[%c0_11, %c0_12, %c0_13, %c0_14] : memref<2x10x10x32xf32, #tpu.memory_space<vmem>>, vector<2x8x8x32xf32>
    %6 = vector.shape_cast %5 : vector<2x8x8x32xf32> to vector<128x32xf32>
    %7 = arith.truncf %6 : vector<128x32xf32> to vector<128x32xbf16>
    %c0_15 = arith.constant 0 : index
    %c0_16 = arith.constant 0 : index
    %c0_17 = arith.constant 0 : index
    %8 = vector.load %arg1[%c0_15, %c0_16, %c0_17] : memref<9x32x64xbf16, #tpu.memory_space<vmem>>, vector<1x32x64xbf16>
    %9 = vector.shape_cast %8 : vector<1x32x64xbf16> to vector<32x64xbf16>
    %cst_18 = arith.constant dense<0.000000e+00> : vector<128x64xf32>
    %10 = tpu.matmul %7, %9, %cst_18 {dimension_numbers = #tpu.dot_dimension_numbers<[1], [0], [0], [1], [0, 0, 1, 1], [], []>} : vector<128x32xbf16>, vector<32x64xbf16>, vector<128x64xf32> -> vector<128x64xf32>
    %11 = arith.addf %4, %10 : vector<128x64xf32>
    %c0_19 = arith.constant 0 : index
    %c0_20 = arith.constant 0 : index
    %c1_21 = arith.constant 1 : index
    %c0_22 = arith.constant 0 : index
    %12 = vector.load %arg8[%c0_19, %c0_20, %c1_21, %c0_22] : memref<2x10x10x32xf32, #tpu.memory_space<vmem>>, vector<2x8x8x32xf32>
    %13 = vector.shape_cast %12 : vector<2x8x8x32xf32> to vector<128x32xf32>
    %14 = arith.truncf %13 : vector<128x32xf32> to vector<128x32xbf16>
    %c1_23 = arith.constant 1 : index
    %c0_24 = arith.constant 0 : index
    %c0_25 = arith.constant 0 : index
    %15 = vector.load %arg1[%c1_23, %c0_24, %c0_25] : memref<9x32x64xbf16, #tpu.memory_space<vmem>>, vector<1x32x64xbf16>
    %16 = vector.shape_cast %15 : vector<1x32x64xbf16> to vector<32x64xbf16>
    %cst_26 = arith.constant dense<0.000000e+00> : vector<128x64xf32>
    %17 = tpu.matmul %14, %16, %cst_26 {dimension_numbers = #tpu.dot_dimension_numbers<[1], [0], [0], [1], [0, 0, 1, 1], [], []>} : vector<128x32xbf16>, vector<32x64xbf16>, vector<128x64xf32> -> vector<128x64xf32>
    %18 = arith.addf %11, %17 : vector<128x64xf32>
    %c0_27 = arith.constant 0 : index
    %c0_28 = arith.constant 0 : index
    %c2 = arith.constant 2 : index
    %c0_29 = arith.constant 0 : index
    %19 = vector.load %arg8[%c0_27, %c0_28, %c2, %c0_29] : memref<2x10x10x32xf32, #tpu.memory_space<vmem>>, vector<2x8x8x32xf32>
    %20 = vector.shape_cast %19 : vector<2x8x8x32xf32> to vector<128x32xf32>
    %21 = arith.truncf %20 : vector<128x32xf32> to vector<128x32xbf16>
    %c2_30 = arith.constant 2 : index
    %c0_31 = arith.constant 0 : index
    %c0_32 = arith.constant 0 : index
    %22 = vector.load %arg1[%c2_30, %c0_31, %c0_32] : memref<9x32x64xbf16, #tpu.memory_space<vmem>>, vector<1x32x64xbf16>
    %23 = vector.shape_cast %22 : vector<1x32x64xbf16> to vector<32x64xbf16>
    %cst_33 = arith.constant dense<0.000000e+00> : vector<128x64xf32>
    %24 = tpu.matmul %21, %23, %cst_33 {dimension_numbers = #tpu.dot_dimension_numbers<[1], [0], [0], [1], [0, 0, 1, 1], [], []>} : vector<128x32xbf16>, vector<32x64xbf16>, vector<128x64xf32> -> vector<128x64xf32>
    %25 = arith.addf %18, %24 : vector<128x64xf32>
    %c0_34 = arith.constant 0 : index
    %c1_35 = arith.constant 1 : index
    %c0_36 = arith.constant 0 : index
    %c0_37 = arith.constant 0 : index
    %26 = vector.load %arg8[%c0_34, %c1_35, %c0_36, %c0_37] : memref<2x10x10x32xf32, #tpu.memory_space<vmem>>, vector<2x8x8x32xf32>
    %27 = vector.shape_cast %26 : vector<2x8x8x32xf32> to vector<128x32xf32>
    %28 = arith.truncf %27 : vector<128x32xf32> to vector<128x32xbf16>
    %c3 = arith.constant 3 : index
    %c0_38 = arith.constant 0 : index
    %c0_39 = arith.constant 0 : index
    %29 = vector.load %arg1[%c3, %c0_38, %c0_39] : memref<9x32x64xbf16, #tpu.memory_space<vmem>>, vector<1x32x64xbf16>
    %30 = vector.shape_cast %29 : vector<1x32x64xbf16> to vector<32x64xbf16>
    %cst_40 = arith.constant dense<0.000000e+00> : vector<128x64xf32>
    %31 = tpu.matmul %28, %30, %cst_40 {dimension_numbers = #tpu.dot_dimension_numbers<[1], [0], [0], [1], [0, 0, 1, 1], [], []>} : vector<128x32xbf16>, vector<32x64xbf16>, vector<128x64xf32> -> vector<128x64xf32>
    %32 = arith.addf %25, %31 : vector<128x64xf32>
    %c0_41 = arith.constant 0 : index
    %c1_42 = arith.constant 1 : index
    %c1_43 = arith.constant 1 : index
    %c0_44 = arith.constant 0 : index
    %33 = vector.load %arg8[%c0_41, %c1_42, %c1_43, %c0_44] : memref<2x10x10x32xf32, #tpu.memory_space<vmem>>, vector<2x8x8x32xf32>
    %34 = vector.shape_cast %33 : vector<2x8x8x32xf32> to vector<128x32xf32>
    %35 = arith.truncf %34 : vector<128x32xf32> to vector<128x32xbf16>
    %c4 = arith.constant 4 : index
    %c0_45 = arith.constant 0 : index
    %c0_46 = arith.constant 0 : index
    %36 = vector.load %arg1[%c4, %c0_45, %c0_46] : memref<9x32x64xbf16, #tpu.memory_space<vmem>>, vector<1x32x64xbf16>
    %37 = vector.shape_cast %36 : vector<1x32x64xbf16> to vector<32x64xbf16>
    %cst_47 = arith.constant dense<0.000000e+00> : vector<128x64xf32>
    %38 = tpu.matmul %35, %37, %cst_47 {dimension_numbers = #tpu.dot_dimension_numbers<[1], [0], [0], [1], [0, 0, 1, 1], [], []>} : vector<128x32xbf16>, vector<32x64xbf16>, vector<128x64xf32> -> vector<128x64xf32>
    %39 = arith.addf %32, %38 : vector<128x64xf32>
    %c0_48 = arith.constant 0 : index
    %c1_49 = arith.constant 1 : index
    %c2_50 = arith.constant 2 : index
    %c0_51 = arith.constant 0 : index
    %40 = vector.load %arg8[%c0_48, %c1_49, %c2_50, %c0_51] : memref<2x10x10x32xf32, #tpu.memory_space<vmem>>, vector<2x8x8x32xf32>
    %41 = vector.shape_cast %40 : vector<2x8x8x32xf32> to vector<128x32xf32>
    %42 = arith.truncf %41 : vector<128x32xf32> to vector<128x32xbf16>
    %c5 = arith.constant 5 : index
    %c0_52 = arith.constant 0 : index
    %c0_53 = arith.constant 0 : index
    %43 = vector.load %arg1[%c5, %c0_52, %c0_53] : memref<9x32x64xbf16, #tpu.memory_space<vmem>>, vector<1x32x64xbf16>
    %44 = vector.shape_cast %43 : vector<1x32x64xbf16> to vector<32x64xbf16>
    %cst_54 = arith.constant dense<0.000000e+00> : vector<128x64xf32>
    %45 = tpu.matmul %42, %44, %cst_54 {dimension_numbers = #tpu.dot_dimension_numbers<[1], [0], [0], [1], [0, 0, 1, 1], [], []>} : vector<128x32xbf16>, vector<32x64xbf16>, vector<128x64xf32> -> vector<128x64xf32>
    %46 = arith.addf %39, %45 : vector<128x64xf32>
    %c0_55 = arith.constant 0 : index
    %c2_56 = arith.constant 2 : index
    %c0_57 = arith.constant 0 : index
    %c0_58 = arith.constant 0 : index
    %47 = vector.load %arg8[%c0_55, %c2_56, %c0_57, %c0_58] : memref<2x10x10x32xf32, #tpu.memory_space<vmem>>, vector<2x8x8x32xf32>
    %48 = vector.shape_cast %47 : vector<2x8x8x32xf32> to vector<128x32xf32>
    %49 = arith.truncf %48 : vector<128x32xf32> to vector<128x32xbf16>
    %c6 = arith.constant 6 : index
    %c0_59 = arith.constant 0 : index
    %c0_60 = arith.constant 0 : index
    %50 = vector.load %arg1[%c6, %c0_59, %c0_60] : memref<9x32x64xbf16, #tpu.memory_space<vmem>>, vector<1x32x64xbf16>
    %51 = vector.shape_cast %50 : vector<1x32x64xbf16> to vector<32x64xbf16>
    %cst_61 = arith.constant dense<0.000000e+00> : vector<128x64xf32>
    %52 = tpu.matmul %49, %51, %cst_61 {dimension_numbers = #tpu.dot_dimension_numbers<[1], [0], [0], [1], [0, 0, 1, 1], [], []>} : vector<128x32xbf16>, vector<32x64xbf16>, vector<128x64xf32> -> vector<128x64xf32>
    %53 = arith.addf %46, %52 : vector<128x64xf32>
    %c0_62 = arith.constant 0 : index
    %c2_63 = arith.constant 2 : index
    %c1_64 = arith.constant 1 : index
    %c0_65 = arith.constant 0 : index
    %54 = vector.load %arg8[%c0_62, %c2_63, %c1_64, %c0_65] : memref<2x10x10x32xf32, #tpu.memory_space<vmem>>, vector<2x8x8x32xf32>
    %55 = vector.shape_cast %54 : vector<2x8x8x32xf32> to vector<128x32xf32>
    %56 = arith.truncf %55 : vector<128x32xf32> to vector<128x32xbf16>
    %c7 = arith.constant 7 : index
    %c0_66 = arith.constant 0 : index
    %c0_67 = arith.constant 0 : index
    %57 = vector.load %arg1[%c7, %c0_66, %c0_67] : memref<9x32x64xbf16, #tpu.memory_space<vmem>>, vector<1x32x64xbf16>
    %58 = vector.shape_cast %57 : vector<1x32x64xbf16> to vector<32x64xbf16>
    %cst_68 = arith.constant dense<0.000000e+00> : vector<128x64xf32>
    %59 = tpu.matmul %56, %58, %cst_68 {dimension_numbers = #tpu.dot_dimension_numbers<[1], [0], [0], [1], [0, 0, 1, 1], [], []>} : vector<128x32xbf16>, vector<32x64xbf16>, vector<128x64xf32> -> vector<128x64xf32>
    %60 = arith.addf %53, %59 : vector<128x64xf32>
    %c0_69 = arith.constant 0 : index
    %c2_70 = arith.constant 2 : index
    %c2_71 = arith.constant 2 : index
    %c0_72 = arith.constant 0 : index
    %61 = vector.load %arg8[%c0_69, %c2_70, %c2_71, %c0_72] : memref<2x10x10x32xf32, #tpu.memory_space<vmem>>, vector<2x8x8x32xf32>
    %62 = vector.shape_cast %61 : vector<2x8x8x32xf32> to vector<128x32xf32>
    %63 = arith.truncf %62 : vector<128x32xf32> to vector<128x32xbf16>
    %c8 = arith.constant 8 : index
    %c0_73 = arith.constant 0 : index
    %c0_74 = arith.constant 0 : index
    %64 = vector.load %arg1[%c8, %c0_73, %c0_74] : memref<9x32x64xbf16, #tpu.memory_space<vmem>>, vector<1x32x64xbf16>
    %65 = vector.shape_cast %64 : vector<1x32x64xbf16> to vector<32x64xbf16>
    %cst_75 = arith.constant dense<0.000000e+00> : vector<128x64xf32>
    %66 = tpu.matmul %63, %65, %cst_75 {dimension_numbers = #tpu.dot_dimension_numbers<[1], [0], [0], [1], [0, 0, 1, 1], [], []>} : vector<128x32xbf16>, vector<32x64xbf16>, vector<128x64xf32> -> vector<128x64xf32>
    %67 = arith.addf %60, %66 : vector<128x64xf32>
    %cst_76 = arith.constant dense<0.000000e+00> : vector<64xf32>
    %68 = vector.multi_reduction <add>, %67, %cst_76 [0] : vector<128x64xf32> to vector<64xf32>
    %69 = vector.shape_cast %68 : vector<64xf32> to vector<1x64xf32>
    %cst_77 = arith.constant 1.280000e+02 : f32
    %70 = vector.broadcast %cst_77 : f32 to vector<1x64xf32>
    %71 = arith.divf %69, %70 : vector<1x64xf32>
    %72 = vector.broadcast %71 : vector<1x64xf32> to vector<128x64xf32>
    %73 = arith.subf %67, %72 : vector<128x64xf32>
    %74 = arith.mulf %73, %73 : vector<128x64xf32>
    %cst_78 = arith.constant dense<0.000000e+00> : vector<64xf32>
    %75 = vector.multi_reduction <add>, %74, %cst_78 [0] : vector<128x64xf32> to vector<64xf32>
    %76 = vector.shape_cast %75 : vector<64xf32> to vector<1x64xf32>
    %cst_79 = arith.constant 1.280000e+02 : f32
    %77 = vector.broadcast %cst_79 : f32 to vector<1x64xf32>
    %78 = arith.divf %76, %77 : vector<1x64xf32>
    %c0_80 = arith.constant 0 : index
    %c0_81 = arith.constant 0 : index
    %79 = vector.load %arg3[%c0_80, %c0_81] : memref<1x64xf32, #tpu.memory_space<vmem>>, vector<1x64xf32>
    %cst_82 = arith.constant 9.99999974E-6 : f32
    %80 = vector.broadcast %cst_82 : f32 to vector<1x64xf32>
    %81 = arith.addf %78, %80 : vector<1x64xf32>
    %82 = math.rsqrt %81 : vector<1x64xf32>
    %83 = arith.mulf %79, %82 : vector<1x64xf32>
    %c0_83 = arith.constant 0 : index
    %c0_84 = arith.constant 0 : index
    %84 = vector.load %arg4[%c0_83, %c0_84] : memref<1x64xf32, #tpu.memory_space<vmem>>, vector<1x64xf32>
    %85 = arith.mulf %71, %83 : vector<1x64xf32>
    %86 = arith.subf %84, %85 : vector<1x64xf32>
    %87 = vector.broadcast %83 : vector<1x64xf32> to vector<128x64xf32>
    %88 = arith.mulf %67, %87 : vector<128x64xf32>
    %89 = vector.broadcast %86 : vector<1x64xf32> to vector<128x64xf32>
    %90 = arith.addf %88, %89 : vector<128x64xf32>
    %cst_85 = arith.constant 0.000000e+00 : f32
    %91 = vector.broadcast %cst_85 : f32 to vector<128x64xf32>
    %92 = arith.maximumf %90, %91 : vector<128x64xf32>
    %cst_86 = arith.constant 0.000000e+00 : f32
    %93 = vector.broadcast %cst_86 : f32 to vector<2x10x10x64xf32>
    %c0_87 = arith.constant 0 : index
    %c0_88 = arith.constant 0 : index
    %c0_89 = arith.constant 0 : index
    %c0_90 = arith.constant 0 : index
    %94 = vector.load %arg9[%c0_87, %c0_88, %c0_89, %c0_90] : memref<2x10x10x64xf32, #tpu.memory_space<vmem>>, vector<2x10x10x64xf32>
    tpu.vector_store %arg9[%c0_87, %c0_88, %c0_89, %c0_90], %93 {strides = array<i32>} : memref<2x10x10x64xf32, #tpu.memory_space<vmem>>, vector<2x10x10x64xf32>,
    %95 = vector.shape_cast %92 : vector<128x64xf32> to vector<2x8x8x64xf32>
    %c0_91 = arith.constant 0 : index
    %c1_92 = arith.constant 1 : index
    %c1_93 = arith.constant 1 : index
    %c0_94 = arith.constant 0 : index
    %96 = vector.load %arg9[%c0_91, %c1_92, %c1_93, %c0_94] : memref<2x10x10x64xf32, #tpu.memory_space<vmem>>, vector<2x8x8x64xf32>
    tpu.vector_store %arg9[%c0_91, %c1_92, %c1_93, %c0_94], %95 {strides = array<i32>} : memref<2x10x10x64xf32, #tpu.memory_space<vmem>>, vector<2x8x8x64xf32>,
    %cst_95 = arith.constant 0.000000e+00 : f32
    %97 = vector.broadcast %cst_95 : f32 to vector<128x64xf32>
    %c0_96 = arith.constant 0 : index
    %c0_97 = arith.constant 0 : index
    %c0_98 = arith.constant 0 : index
    %c0_99 = arith.constant 0 : index
    %98 = vector.load %arg9[%c0_96, %c0_97, %c0_98, %c0_99] : memref<2x10x10x64xf32, #tpu.memory_space<vmem>>, vector<2x8x8x64xf32>
    %99 = vector.shape_cast %98 : vector<2x8x8x64xf32> to vector<128x64xf32>
    %100 = arith.truncf %99 : vector<128x64xf32> to vector<128x64xbf16>
    %c0_100 = arith.constant 0 : index
    %c0_101 = arith.constant 0 : index
    %c0_102 = arith.constant 0 : index
    %101 = vector.load %arg2[%c0_100, %c0_101, %c0_102] : memref<9x64x64xbf16, #tpu.memory_space<vmem>>, vector<1x64x64xbf16>
    %102 = vector.shape_cast %101 : vector<1x64x64xbf16> to vector<64x64xbf16>
    %cst_103 = arith.constant dense<0.000000e+00> : vector<128x64xf32>
    %103 = tpu.matmul %100, %102, %cst_103 {dimension_numbers = #tpu.dot_dimension_numbers<[1], [0], [0], [1], [0, 0, 1, 1], [], []>} : vector<128x64xbf16>, vector<64x64xbf16>, vector<128x64xf32> -> vector<128x64xf32>
    %104 = arith.addf %97, %103 : vector<128x64xf32>
    %c0_104 = arith.constant 0 : index
    %c0_105 = arith.constant 0 : index
    %c1_106 = arith.constant 1 : index
    %c0_107 = arith.constant 0 : index
    %105 = vector.load %arg9[%c0_104, %c0_105, %c1_106, %c0_107] : memref<2x10x10x64xf32, #tpu.memory_space<vmem>>, vector<2x8x8x64xf32>
    %106 = vector.shape_cast %105 : vector<2x8x8x64xf32> to vector<128x64xf32>
    %107 = arith.truncf %106 : vector<128x64xf32> to vector<128x64xbf16>
    %c1_108 = arith.constant 1 : index
    %c0_109 = arith.constant 0 : index
    %c0_110 = arith.constant 0 : index
    %108 = vector.load %arg2[%c1_108, %c0_109, %c0_110] : memref<9x64x64xbf16, #tpu.memory_space<vmem>>, vector<1x64x64xbf16>
    %109 = vector.shape_cast %108 : vector<1x64x64xbf16> to vector<64x64xbf16>
    %cst_111 = arith.constant dense<0.000000e+00> : vector<128x64xf32>
    %110 = tpu.matmul %107, %109, %cst_111 {dimension_numbers = #tpu.dot_dimension_numbers<[1], [0], [0], [1], [0, 0, 1, 1], [], []>} : vector<128x64xbf16>, vector<64x64xbf16>, vector<128x64xf32> -> vector<128x64xf32>
    %111 = arith.addf %104, %110 : vector<128x64xf32>
    %c0_112 = arith.constant 0 : index
    %c0_113 = arith.constant 0 : index
    %c2_114 = arith.constant 2 : index
    %c0_115 = arith.constant 0 : index
    %112 = vector.load %arg9[%c0_112, %c0_113, %c2_114, %c0_115] : memref<2x10x10x64xf32, #tpu.memory_space<vmem>>, vector<2x8x8x64xf32>
    %113 = vector.shape_cast %112 : vector<2x8x8x64xf32> to vector<128x64xf32>
    %114 = arith.truncf %113 : vector<128x64xf32> to vector<128x64xbf16>
    %c2_116 = arith.constant 2 : index
    %c0_117 = arith.constant 0 : index
    %c0_118 = arith.constant 0 : index
    %115 = vector.load %arg2[%c2_116, %c0_117, %c0_118] : memref<9x64x64xbf16, #tpu.memory_space<vmem>>, vector<1x64x64xbf16>
    %116 = vector.shape_cast %115 : vector<1x64x64xbf16> to vector<64x64xbf16>
    %cst_119 = arith.constant dense<0.000000e+00> : vector<128x64xf32>
    %117 = tpu.matmul %114, %116, %cst_119 {dimension_numbers = #tpu.dot_dimension_numbers<[1], [0], [0], [1], [0, 0, 1, 1], [], []>} : vector<128x64xbf16>, vector<64x64xbf16>, vector<128x64xf32> -> vector<128x64xf32>
    %118 = arith.addf %111, %117 : vector<128x64xf32>
    %c0_120 = arith.constant 0 : index
    %c1_121 = arith.constant 1 : index
    %c0_122 = arith.constant 0 : index
    %c0_123 = arith.constant 0 : index
    %119 = vector.load %arg9[%c0_120, %c1_121, %c0_122, %c0_123] : memref<2x10x10x64xf32, #tpu.memory_space<vmem>>, vector<2x8x8x64xf32>
    %120 = vector.shape_cast %119 : vector<2x8x8x64xf32> to vector<128x64xf32>
    %121 = arith.truncf %120 : vector<128x64xf32> to vector<128x64xbf16>
    %c3_124 = arith.constant 3 : index
    %c0_125 = arith.constant 0 : index
    %c0_126 = arith.constant 0 : index
    %122 = vector.load %arg2[%c3_124, %c0_125, %c0_126] : memref<9x64x64xbf16, #tpu.memory_space<vmem>>, vector<1x64x64xbf16>
    %123 = vector.shape_cast %122 : vector<1x64x64xbf16> to vector<64x64xbf16>
    %cst_127 = arith.constant dense<0.000000e+00> : vector<128x64xf32>
    %124 = tpu.matmul %121, %123, %cst_127 {dimension_numbers = #tpu.dot_dimension_numbers<[1], [0], [0], [1], [0, 0, 1, 1], [], []>} : vector<128x64xbf16>, vector<64x64xbf16>, vector<128x64xf32> -> vector<128x64xf32>
    %125 = arith.addf %118, %124 : vector<128x64xf32>
    %c0_128 = arith.constant 0 : index
    %c1_129 = arith.constant 1 : index
    %c1_130 = arith.constant 1 : index
    %c0_131 = arith.constant 0 : index
    %126 = vector.load %arg9[%c0_128, %c1_129, %c1_130, %c0_131] : memref<2x10x10x64xf32, #tpu.memory_space<vmem>>, vector<2x8x8x64xf32>
    %127 = vector.shape_cast %126 : vector<2x8x8x64xf32> to vector<128x64xf32>
    %128 = arith.truncf %127 : vector<128x64xf32> to vector<128x64xbf16>
    %c4_132 = arith.constant 4 : index
    %c0_133 = arith.constant 0 : index
    %c0_134 = arith.constant 0 : index
    %129 = vector.load %arg2[%c4_132, %c0_133, %c0_134] : memref<9x64x64xbf16, #tpu.memory_space<vmem>>, vector<1x64x64xbf16>
    %130 = vector.shape_cast %129 : vector<1x64x64xbf16> to vector<64x64xbf16>
    %cst_135 = arith.constant dense<0.000000e+00> : vector<128x64xf32>
    %131 = tpu.matmul %128, %130, %cst_135 {dimension_numbers = #tpu.dot_dimension_numbers<[1], [0], [0], [1], [0, 0, 1, 1], [], []>} : vector<128x64xbf16>, vector<64x64xbf16>, vector<128x64xf32> -> vector<128x64xf32>
    %132 = arith.addf %125, %131 : vector<128x64xf32>
    %c0_136 = arith.constant 0 : index
    %c1_137 = arith.constant 1 : index
    %c2_138 = arith.constant 2 : index
    %c0_139 = arith.constant 0 : index
    %133 = vector.load %arg9[%c0_136, %c1_137, %c2_138, %c0_139] : memref<2x10x10x64xf32, #tpu.memory_space<vmem>>, vector<2x8x8x64xf32>
    %134 = vector.shape_cast %133 : vector<2x8x8x64xf32> to vector<128x64xf32>
    %135 = arith.truncf %134 : vector<128x64xf32> to vector<128x64xbf16>
    %c5_140 = arith.constant 5 : index
    %c0_141 = arith.constant 0 : index
    %c0_142 = arith.constant 0 : index
    %136 = vector.load %arg2[%c5_140, %c0_141, %c0_142] : memref<9x64x64xbf16, #tpu.memory_space<vmem>>, vector<1x64x64xbf16>
    %137 = vector.shape_cast %136 : vector<1x64x64xbf16> to vector<64x64xbf16>
    %cst_143 = arith.constant dense<0.000000e+00> : vector<128x64xf32>
    %138 = tpu.matmul %135, %137, %cst_143 {dimension_numbers = #tpu.dot_dimension_numbers<[1], [0], [0], [1], [0, 0, 1, 1], [], []>} : vector<128x64xbf16>, vector<64x64xbf16>, vector<128x64xf32> -> vector<128x64xf32>
    %139 = arith.addf %132, %138 : vector<128x64xf32>
    %c0_144 = arith.constant 0 : index
    %c2_145 = arith.constant 2 : index
    %c0_146 = arith.constant 0 : index
    %c0_147 = arith.constant 0 : index
    %140 = vector.load %arg9[%c0_144, %c2_145, %c0_146, %c0_147] : memref<2x10x10x64xf32, #tpu.memory_space<vmem>>, vector<2x8x8x64xf32>
    %141 = vector.shape_cast %140 : vector<2x8x8x64xf32> to vector<128x64xf32>
    %142 = arith.truncf %141 : vector<128x64xf32> to vector<128x64xbf16>
    %c6_148 = arith.constant 6 : index
    %c0_149 = arith.constant 0 : index
    %c0_150 = arith.constant 0 : index
    %143 = vector.load %arg2[%c6_148, %c0_149, %c0_150] : memref<9x64x64xbf16, #tpu.memory_space<vmem>>, vector<1x64x64xbf16>
    %144 = vector.shape_cast %143 : vector<1x64x64xbf16> to vector<64x64xbf16>
    %cst_151 = arith.constant dense<0.000000e+00> : vector<128x64xf32>
    %145 = tpu.matmul %142, %144, %cst_151 {dimension_numbers = #tpu.dot_dimension_numbers<[1], [0], [0], [1], [0, 0, 1, 1], [], []>} : vector<128x64xbf16>, vector<64x64xbf16>, vector<128x64xf32> -> vector<128x64xf32>
    %146 = arith.addf %139, %145 : vector<128x64xf32>
    %c0_152 = arith.constant 0 : index
    %c2_153 = arith.constant 2 : index
    %c1_154 = arith.constant 1 : index
    %c0_155 = arith.constant 0 : index
    %147 = vector.load %arg9[%c0_152, %c2_153, %c1_154, %c0_155] : memref<2x10x10x64xf32, #tpu.memory_space<vmem>>, vector<2x8x8x64xf32>
    %148 = vector.shape_cast %147 : vector<2x8x8x64xf32> to vector<128x64xf32>
    %149 = arith.truncf %148 : vector<128x64xf32> to vector<128x64xbf16>
    %c7_156 = arith.constant 7 : index
    %c0_157 = arith.constant 0 : index
    %c0_158 = arith.constant 0 : index
    %150 = vector.load %arg2[%c7_156, %c0_157, %c0_158] : memref<9x64x64xbf16, #tpu.memory_space<vmem>>, vector<1x64x64xbf16>
    %151 = vector.shape_cast %150 : vector<1x64x64xbf16> to vector<64x64xbf16>
    %cst_159 = arith.constant dense<0.000000e+00> : vector<128x64xf32>
    %152 = tpu.matmul %149, %151, %cst_159 {dimension_numbers = #tpu.dot_dimension_numbers<[1], [0], [0], [1], [0, 0, 1, 1], [], []>} : vector<128x64xbf16>, vector<64x64xbf16>, vector<128x64xf32> -> vector<128x64xf32>
    %153 = arith.addf %146, %152 : vector<128x64xf32>
    %c0_160 = arith.constant 0 : index
    %c2_161 = arith.constant 2 : index
    %c2_162 = arith.constant 2 : index
    %c0_163 = arith.constant 0 : index
    %154 = vector.load %arg9[%c0_160, %c2_161, %c2_162, %c0_163] : memref<2x10x10x64xf32, #tpu.memory_space<vmem>>, vector<2x8x8x64xf32>
    %155 = vector.shape_cast %154 : vector<2x8x8x64xf32> to vector<128x64xf32>
    %156 = arith.truncf %155 : vector<128x64xf32> to vector<128x64xbf16>
    %c8_164 = arith.constant 8 : index
    %c0_165 = arith.constant 0 : index
    %c0_166 = arith.constant 0 : index
    %157 = vector.load %arg2[%c8_164, %c0_165, %c0_166] : memref<9x64x64xbf16, #tpu.memory_space<vmem>>, vector<1x64x64xbf16>
    %158 = vector.shape_cast %157 : vector<1x64x64xbf16> to vector<64x64xbf16>
    %cst_167 = arith.constant dense<0.000000e+00> : vector<128x64xf32>
    %159 = tpu.matmul %156, %158, %cst_167 {dimension_numbers = #tpu.dot_dimension_numbers<[1], [0], [0], [1], [0, 0, 1, 1], [], []>} : vector<128x64xbf16>, vector<64x64xbf16>, vector<128x64xf32> -> vector<128x64xf32>
    %160 = arith.addf %153, %159 : vector<128x64xf32>
    %cst_168 = arith.constant dense<0.000000e+00> : vector<64xf32>
    %161 = vector.multi_reduction <add>, %160, %cst_168 [0] : vector<128x64xf32> to vector<64xf32>
    %162 = vector.shape_cast %161 : vector<64xf32> to vector<1x64xf32>
    %cst_169 = arith.constant 1.280000e+02 : f32
    %163 = vector.broadcast %cst_169 : f32 to vector<1x64xf32>
    %164 = arith.divf %162, %163 : vector<1x64xf32>
    %165 = vector.broadcast %164 : vector<1x64xf32> to vector<128x64xf32>
    %166 = arith.subf %160, %165 : vector<128x64xf32>
    %167 = arith.mulf %166, %166 : vector<128x64xf32>
    %cst_170 = arith.constant dense<0.000000e+00> : vector<64xf32>
    %168 = vector.multi_reduction <add>, %167, %cst_170 [0] : vector<128x64xf32> to vector<64xf32>
    %169 = vector.shape_cast %168 : vector<64xf32> to vector<1x64xf32>
    %cst_171 = arith.constant 1.280000e+02 : f32
    %170 = vector.broadcast %cst_171 : f32 to vector<1x64xf32>
    %171 = arith.divf %169, %170 : vector<1x64xf32>
    %c0_172 = arith.constant 0 : index
    %c0_173 = arith.constant 0 : index
    %172 = vector.load %arg5[%c0_172, %c0_173] : memref<1x64xf32, #tpu.memory_space<vmem>>, vector<1x64xf32>
    %cst_174 = arith.constant 9.99999974E-6 : f32
    %173 = vector.broadcast %cst_174 : f32 to vector<1x64xf32>
    %174 = arith.addf %171, %173 : vector<1x64xf32>
    %175 = math.rsqrt %174 : vector<1x64xf32>
    %176 = arith.mulf %172, %175 : vector<1x64xf32>
    %c0_175 = arith.constant 0 : index
    %c0_176 = arith.constant 0 : index
    %177 = vector.load %arg6[%c0_175, %c0_176] : memref<1x64xf32, #tpu.memory_space<vmem>>, vector<1x64xf32>
    %178 = arith.mulf %164, %176 : vector<1x64xf32>
    %179 = arith.subf %177, %178 : vector<1x64xf32>
    %180 = vector.broadcast %176 : vector<1x64xf32> to vector<128x64xf32>
    %181 = arith.mulf %160, %180 : vector<128x64xf32>
    %182 = vector.broadcast %179 : vector<1x64xf32> to vector<128x64xf32>
    %183 = arith.addf %181, %182 : vector<128x64xf32>
    %cst_177 = arith.constant 0.000000e+00 : f32
    %184 = vector.broadcast %cst_177 : f32 to vector<128x64xf32>
    %185 = arith.maximumf %183, %184 : vector<128x64xf32>
    %186 = vector.shape_cast %185 : vector<128x64xf32> to vector<2x8x8x64xf32>
    %c0_178 = arith.constant 0 : index
    %c0_179 = arith.constant 0 : index
    %c0_180 = arith.constant 0 : index
    %c0_181 = arith.constant 0 : index
    %187 = vector.load %arg7[%c0_178, %c0_179, %c0_180, %c0_181] : memref<2x8x8x64xf32, #tpu.memory_space<vmem>>, vector<2x8x8x64xf32>
    tpu.vector_store %arg7[%c0_178, %c0_179, %c0_180, %c0_181], %186 {strides = array<i32>} : memref<2x8x8x64xf32, #tpu.memory_space<vmem>>, vector<2x8x8x64xf32>,
    return
  }
}

</mosaic_0001>

<llo_original>
// kernel: down_forward.1
$region0: #{down_forward.1}
  #allocation0 [shape = 'u32[]', space=smem, size = 0x4, offset = 0x4, fixed_abs, tag = 'smem constant byte address 0x4 - core index']
  #allocation1 [shape = 'u32[144,128]{1,0:T(1,128)}', space=vmem, size = 0x12000, scoped, tag = 'internal scratch']
  #allocation2 [shape = 'f32[2,10,10,32]{3,2,1,0:T(8,128)}', space=vmem, size = 0x28000, scoped, tag = 'scratch operand']
  #allocation3 [shape = 'f32[2,10,10,64]{3,2,1,0:T(8,128)}', space=vmem, size = 0x28000, scoped, tag = 'scratch operand']
  %s0 = inlined_call_operand.vmem [shape: f32[2,8,8,32], index: 0, kind: input, shape index: {}]
  %s1 = inlined_call_operand.vmem [shape: bf16[9,32,64], index: 1, kind: input, shape index: {}]
  %s2 = inlined_call_operand.vmem [shape: bf16[9,64,64], index: 2, kind: input, shape index: {}]
  %s3 = inlined_call_operand.vmem [shape: f32[1,64], index: 3, kind: input, shape index: {}]
  %s4 = inlined_call_operand.vmem [shape: f32[1,64], index: 4, kind: input, shape index: {}]
  %s5 = inlined_call_operand.vmem [shape: f32[1,64], index: 5, kind: input, shape index: {}]
  %s6 = inlined_call_operand.vmem [shape: f32[1,64], index: 6, kind: input, shape index: {}]
  %s7 = inlined_call_operand.hbm [shape: f32[2,8,8,64], index: 7, kind: output, shape index: {}]
  %s8 = sld [smem:[#allocation0]]
  $region38: #{down_forward.1} parent=0
    _
  %s10 = ssub.s32 1, %s8
  %s11 = scalar_select 0, %s10, %s8
  $region1: #{down_forward.1} parent=0
    #allocation4 [shape = 'u8[65536]{0}', space=vmem, size = 0x10000, scoped, tag = 'output window, operand 0, single buffered']
    #allocation5 [shape = 's32[1]{0}', space=sflag, size = 0x4, scoped, tag = 'scoped memory for down_forward.1']
    %12 = vsyncpa [#allocation5], 0
    // Predicated region
    $region2: #{down_forward.1} parent=1 // pred_check
      _
    $region3: #{down_forward.1} parent=1 // pred_check_branch
      %14 = sbr.rel (0) target = $region5
    $region4: #{down_forward.1} parent=1 // pred_region
      _
    $region5: #{down_forward.1} parent=1 // pred_fallthru
      _
    // Predicated region
    $region6: #{down_forward.1} parent=1 // pred_check
      _
    $region7: #{down_forward.1} parent=1 // pred_check_branch
      %16 = sbr.rel (0) target = $region9
    $region8: #{down_forward.1} parent=1 // pred_region
      _
    $region9: #{down_forward.1} parent=1 // pred_fallthru
      _
    // Predicated region
    $region10: #{down_forward.1} parent=1 // pred_check
      _
    $region11: #{down_forward.1} parent=1 // pred_check_branch
      %18 = sbr.rel (0) target = $region13
    $region12: #{down_forward.1} parent=1 // pred_region
      _
    $region13: #{down_forward.1} parent=1 // pred_fallthru
      _
    // Predicated region
    $region14: #{down_forward.1} parent=1 // pred_check
      _
    $region15: #{down_forward.1} parent=1 // pred_check_branch
      %20 = sbr.rel (0) target = $region17
    $region16: #{down_forward.1} parent=1 // pred_region
      _
    $region17: #{down_forward.1} parent=1 // pred_fallthru
      _
    // Predicated region
    $region18: #{down_forward.1} parent=1 // pred_check
      _
    $region19: #{down_forward.1} parent=1 // pred_check_branch
      %22 = sbr.rel (0) target = $region21
    $region20: #{down_forward.1} parent=1 // pred_region
      _
    $region21: #{down_forward.1} parent=1 // pred_fallthru
      _
    // Predicated region
    $region22: #{down_forward.1} parent=1 // pred_check
      _
    $region23: #{down_forward.1} parent=1 // pred_check_branch
      %24 = sbr.rel (0) target = $region25
    $region24: #{down_forward.1} parent=1 // pred_region
      _
    $region25: #{down_forward.1} parent=1 // pred_fallthru
      _
    // Predicated region
    $region26: #{down_forward.1} parent=1 // pred_check
      _
    $region27: #{down_forward.1} parent=1 // pred_check_branch
      %26 = sbr.rel (0) target = $region29
    $region28: #{down_forward.1} parent=1 // pred_region
      _
    $region29: #{down_forward.1} parent=1 // pred_fallthru
      _
    %vm28 = vcmask 261120
    %29 = vst.msk [vmem:[#allocation2] sm:$0xff] %vm28, 0.0
    %vm30 = vcmask 254976
    %31 = vst.msk [vmem:[#allocation2 + $0x8] sm:$0x3] %vm30, 0.0
    %32 = vst.msk [vmem:[#allocation2 + $0x10] sm:$0xff] %vm28, 0.0
    %33 = vst.msk [vmem:[#allocation2 + $0x18] sm:$0x3] %vm30, 0.0
    %34 = vst.msk [vmem:[#allocation2 + $0x20] sm:$0xff] %vm28, 0.0
    %35 = vst.msk [vmem:[#allocation2 + $0x28] sm:$0x3] %vm30, 0.0
    %36 = vst.msk [vmem:[#allocation2 + $0x30] sm:$0xff] %vm28, 0.0
    %37 = vst.msk [vmem:[#allocation2 + $0x38] sm:$0x3] %vm30, 0.0
    %38 = vst.msk [vmem:[#allocation2 + $0x40] sm:$0xff] %vm28, 0.0
    %39 = vst.msk [vmem:[#allocation2 + $0x48] sm:$0x3] %vm30, 0.0
    %40 = vst.msk [vmem:[#allocation2 + $0x50] sm:$0xff] %vm28, 0.0
    %41 = vst.msk [vmem:[#allocation2 + $0x58] sm:$0x3] %vm30, 0.0
    %42 = vst.msk [vmem:[#allocation2 + $0x60] sm:$0xff] %vm28, 0.0
    %43 = vst.msk [vmem:[#allocation2 + $0x68] sm:$0x3] %vm30, 0.0
    %44 = vst.msk [vmem:[#allocation2 + $0x70] sm:$0xff] %vm28, 0.0
    %45 = vst.msk [vmem:[#allocation2 + $0x78] sm:$0x3] %vm30, 0.0
    %46 = vst.msk [vmem:[#allocation2 + $0x80] sm:$0xff] %vm28, 0.0
    %47 = vst.msk [vmem:[#allocation2 + $0x88] sm:$0x3] %vm30, 0.0
    %48 = vst.msk [vmem:[#allocation2 + $0x90] sm:$0xff] %vm28, 0.0
    %49 = vst.msk [vmem:[#allocation2 + $0x98] sm:$0x3] %vm30, 0.0
    %50 = vst.msk [vmem:[#allocation2 + $0xa0] sm:$0xff] %vm28, 0.0
    %51 = vst.msk [vmem:[#allocation2 + $0xa8] sm:$0x3] %vm30, 0.0
    %52 = vst.msk [vmem:[#allocation2 + $0xb0] sm:$0xff] %vm28, 0.0
    %53 = vst.msk [vmem:[#allocation2 + $0xb8] sm:$0x3] %vm30, 0.0
    %54 = vst.msk [vmem:[#allocation2 + $0xc0] sm:$0xff] %vm28, 0.0
    %55 = vst.msk [vmem:[#allocation2 + $0xc8] sm:$0x3] %vm30, 0.0
    %56 = vst.msk [vmem:[#allocation2 + $0xd0] sm:$0xff] %vm28, 0.0
    %57 = vst.msk [vmem:[#allocation2 + $0xd8] sm:$0x3] %vm30, 0.0
    %58 = vst.msk [vmem:[#allocation2 + $0xe0] sm:$0xff] %vm28, 0.0
    %59 = vst.msk [vmem:[#allocation2 + $0xe8] sm:$0x3] %vm30, 0.0
    %60 = vst.msk [vmem:[#allocation2 + $0xf0] sm:$0xff] %vm28, 0.0
    %61 = vst.msk [vmem:[#allocation2 + $0xf8] sm:$0x3] %vm30, 0.0
    %62 = vst.msk [vmem:[#allocation2 + $0x100] sm:$0xff] %vm28, 0.0
    %63 = vst.msk [vmem:[#allocation2 + $0x108] sm:$0x3] %vm30, 0.0
    %64 = vst.msk [vmem:[#allocation2 + $0x110] sm:$0xff] %vm28, 0.0
    %65 = vst.msk [vmem:[#allocation2 + $0x118] sm:$0x3] %vm30, 0.0
    %66 = vst.msk [vmem:[#allocation2 + $0x120] sm:$0xff] %vm28, 0.0
    %67 = vst.msk [vmem:[#allocation2 + $0x128] sm:$0x3] %vm30, 0.0
    %68 = vst.msk [vmem:[#allocation2 + $0x130] sm:$0xff] %vm28, 0.0
    %69 = vst.msk [vmem:[#allocation2 + $0x138] sm:$0x3] %vm30, 0.0
    %v70 = vld [vmem:[%s0] sm:$0xff]
    %v71 = vld [vmem:[%s0 + $0x8] sm:$0xff]
    %v72 = vld [vmem:[%s0 + $0x10] sm:$0xff]
    %v73 = vld [vmem:[%s0 + $0x18] sm:$0xff]
    %v74 = vld [vmem:[%s0 + $0x20] sm:$0xff]
    %v75 = vld [vmem:[%s0 + $0x28] sm:$0xff]
    %v76 = vld [vmem:[%s0 + $0x30] sm:$0xff]
    %v77 = vld [vmem:[%s0 + $0x38] sm:$0xff]
    %v78 = vld [vmem:[%s0 + $0x40] sm:$0xff]
    %v79 = vld [vmem:[%s0 + $0x48] sm:$0xff]
    %v80 = vld [vmem:[%s0 + $0x50] sm:$0xff]
    %v81 = vld [vmem:[%s0 + $0x58] sm:$0xff]
    %v82 = vld [vmem:[%s0 + $0x60] sm:$0xff]
    %v83 = vld [vmem:[%s0 + $0x68] sm:$0xff]
    %v84 = vld [vmem:[%s0 + $0x70] sm:$0xff]
    %v85 = vld [vmem:[%s0 + $0x78] sm:$0xff]
    %s86 = scalar_lea.vmem [#allocation2], 16
    %87 = vst.msk [vmem:[%s86 + $0x1] sm:$0xff] %vm28, %v70
    %88 = vst.msk [vmem:[%s86 + $0x11] sm:$0xff] %vm28, %v71
    %89 = vst.msk [vmem:[%s86 + $0x21] sm:$0xff] %vm28, %v72
    %90 = vst.msk [vmem:[%s86 + $0x31] sm:$0xff] %vm28, %v73
    %91 = vst.msk [vmem:[%s86 + $0x41] sm:$0xff] %vm28, %v74
    %92 = vst.msk [vmem:[%s86 + $0x51] sm:$0xff] %vm28, %v75
    %93 = vst.msk [vmem:[%s86 + $0x61] sm:$0xff] %vm28, %v76
    %94 = vst.msk [vmem:[%s86 + $0x71] sm:$0xff] %vm28, %v77
    %95 = vst.msk [vmem:[%s86 + $0xa1] sm:$0xff] %vm28, %v78
    %96 = vst.msk [vmem:[%s86 + $0xb1] sm:$0xff] %vm28, %v79
    %97 = vst.msk [vmem:[%s86 + $0xc1] sm:$0xff] %vm28, %v80
    %98 = vst.msk [vmem:[%s86 + $0xd1] sm:$0xff] %vm28, %v81
    %99 = vst.msk [vmem:[%s86 + $0xe1] sm:$0xff] %vm28, %v82
    %100 = vst.msk [vmem:[%s86 + $0xf1] sm:$0xff] %vm28, %v83
    %101 = vst.msk [vmem:[%s86 + $0x101] sm:$0xff] %vm28, %v84
    %102 = vst.msk [vmem:[%s86 + $0x111] sm:$0xff] %vm28, %v85
    %v103 = vld [vmem:[#allocation2] sm:$0xff]
    %v104 = vld [vmem:[#allocation2 + $0x10] sm:$0xff]
    %v105 = vld [vmem:[#allocation2 + $0x20] sm:$0xff]
    %v106 = vld [vmem:[#allocation2 + $0x30] sm:$0xff]
    %v107 = vld [vmem:[#allocation2 + $0x40] sm:$0xff]
    %v108 = vld [vmem:[#allocation2 + $0x50] sm:$0xff]
    %v109 = vld [vmem:[#allocation2 + $0x60] sm:$0xff]
    %v110 = vld [vmem:[#allocation2 + $0x70] sm:$0xff]
    %v111 = vld [vmem:[#allocation2 + $0xa0] sm:$0xff]
    %v112 = vld [vmem:[#allocation2 + $0xb0] sm:$0xff]
    %v113 = vld [vmem:[#allocation2 + $0xc0] sm:$0xff]
    %v114 = vld [vmem:[#allocation2 + $0xd0] sm:$0xff]
    %v115 = vld [vmem:[#allocation2 + $0xe0] sm:$0xff]
    %v116 = vld [vmem:[#allocation2 + $0xf0] sm:$0xff]
    %v117 = vld [vmem:[#allocation2 + $0x100] sm:$0xff]
    %v118 = vld [vmem:[#allocation2 + $0x110] sm:$0xff]
    %v119 = vpack.c.bf16 %v104, %v103
    %v120 = vpack.c.bf16 %v106, %v105
    %v121 = vpack.c.bf16 %v108, %v107
    %v122 = vpack.c.bf16 %v110, %v109
    %v123 = vpack.c.bf16 %v112, %v111
    %v124 = vpack.c.bf16 %v114, %v113
    %v125 = vpack.c.bf16 %v116, %v115
    %v126 = vpack.c.bf16 %v118, %v117
    %v127 = vld [vmem:[%s1] sm:$0xf]
    %v128 = vld [vmem:[%s1 + $0x4] sm:$0xf]
    %v129 = vld [vmem:[%s1 + $0x8] sm:$0xf]
    %v130 = vld [vmem:[%s1 + $0xc] sm:$0xf]
    %v131 = vld [vmem:[#allocation2 + $0x1] sm:$0xff]
    %v132 = vld [vmem:[#allocation2 + $0x11] sm:$0xff]
    %v133 = vld [vmem:[#allocation2 + $0x21] sm:$0xff]
    %v134 = vld [vmem:[#allocation2 + $0x31] sm:$0xff]
    %v135 = vld [vmem:[#allocation2 + $0x41] sm:$0xff]
    %v136 = vld [vmem:[#allocation2 + $0x51] sm:$0xff]
    %v137 = vld [vmem:[#allocation2 + $0x61] sm:$0xff]
    %v138 = vld [vmem:[#allocation2 + $0x71] sm:$0xff]
    %v139 = vld [vmem:[#allocation2 + $0xa1] sm:$0xff]
    %v140 = vld [vmem:[#allocation2 + $0xb1] sm:$0xff]
    %v141 = vld [vmem:[#allocation2 + $0xc1] sm:$0xff]
    %v142 = vld [vmem:[#allocation2 + $0xd1] sm:$0xff]
    %v143 = vld [vmem:[#allocation2 + $0xe1] sm:$0xff]
    %v144 = vld [vmem:[#allocation2 + $0xf1] sm:$0xff]
    %v145 = vld [vmem:[#allocation2 + $0x101] sm:$0xff]
    %v146 = vld [vmem:[#allocation2 + $0x111] sm:$0xff]
    %v147 = vpack.c.bf16 %v132, %v131
    %v148 = vpack.c.bf16 %v134, %v133
    %v149 = vpack.c.bf16 %v136, %v135
    %v150 = vpack.c.bf16 %v138, %v137
    %v151 = vpack.c.bf16 %v140, %v139
    %v152 = vpack.c.bf16 %v142, %v141
    %v153 = vpack.c.bf16 %v144, %v143
    %v154 = vpack.c.bf16 %v146, %v145
    %s155 = scalar_lea.vmem %s1, 16
    %v156 = vld [vmem:[%s155] sm:$0xf]
    %v157 = vld [vmem:[%s155 + $0x4] sm:$0xf]
    %v158 = vld [vmem:[%s155 + $0x8] sm:$0xf]
    %v159 = vld [vmem:[%s155 + $0xc] sm:$0xf]
    %v164 = vunpack.c.l.b16 %v156
    %v165 = vunpack.c.l.b16 %v157
    %v166 = vunpack.c.l.b16 %v158
    %v167 = vunpack.c.l.b16 %v159
    %v168 = vpack.c.b16 %v165, %v164
    %v169 = vpack.c.b16 %v167, %v166
    %v173 = vsel %vm28, %v147, 0
    %v176 = vsel %vm28, %v148, 0
    %v179 = vsel %vm28, %v149, 0
    %v182 = vsel %vm28, %v150, 0
    %v185 = vsel %vm28, %v151, 0
    %v188 = vsel %vm28, %v152, 0
    %v191 = vsel %vm28, %v153, 0
    %v194 = vsel %vm28, %v154, 0
    %196 = vmatprep.subr.bf16.mxu0 0
    %197 = vmatpush1.bf16.msra.mxu0 %v168
    %198 = vmatprep.subr.bf16.mxu0 0
    %199 = vmatpush1.bf16.msra.mxu0 %v169
    %200 = vmatprep.subr.bf16.mxu0 0
    %201 = vmatpush1.bf16.msra.mxu0 0
    %202 = vmatprep.subr.bf16.mxu0 0
    %203 = vmatpush1.bf16.msra.mxu0 0
    %204 = vmatprep.subr.bf16.mxu0 0
    %205 = vmatpush1.bf16.msra.mxu0 0
    %206 = vmatprep.subr.bf16.mxu0 0
    %207 = vmatpush1.bf16.msra.mxu0 0
    %208 = vmatprep.subr.bf16.mxu0 0
    %209 = vmatpush1.bf16.msra.mxu0 0
    %210 = vmatprep.subr.bf16.mxu0 0
    %211 = vmatpush1.bf16.msra.mxu0 0
    %212 = vmatprep.subr.bf16.mxu0 0
    %213 = vmatpush1.bf16.msra.mxu0 0
    %214 = vmatprep.subr.bf16.mxu0 0
    %215 = vmatpush1.bf16.msra.mxu0 0
    %216 = vmatprep.subr.bf16.mxu0 0
    %217 = vmatpush1.bf16.msra.mxu0 0
    %218 = vmatprep.subr.bf16.mxu0 0
    %219 = vmatpush1.bf16.msra.mxu0 0
    %220 = vmatprep.subr.bf16.mxu0 0
    %221 = vmatpush1.bf16.msra.mxu0 0
    %222 = vmatprep.subr.bf16.mxu0 0
    %223 = vmatpush1.bf16.msra.mxu0 0
    %224 = vmatprep.subr.bf16.mxu0 0
    %225 = vmatpush1.bf16.msra.mxu0 0
    %226 = vmatprep.subr.bf16.mxu0 0
    %227 = vmatpush1.bf16.msra.mxu0 0
    %228 = vmatprep.mubr.bf16.mxu0 0
    %229 = vmatmul.mubr.bf16.gmra.mrb[0].mxu0 %v173
    %v230 = vpop.f32.mrb[0].mxu0
    %v231 = vadd.f32 0.0, %v230
    %v232 = vpop.f32.mrb[0].mxu0
    %v233 = vpop.f32.mrb[0].mxu0
    %v234 = vadd.f32 0.0, %v233
    %v235 = vpop.f32.mrb[0].mxu0
    %236 = vmatprep.mubr.bf16.mxu0 0
    %237 = vmatmul.mubr.bf16.gmra.mrb[0].mxu0 %v176
    %v238 = vpop.f32.mrb[0].mxu0
    %v239 = vadd.f32 0.0, %v238
    %v240 = vpop.f32.mrb[0].mxu0
    %v241 = vpop.f32.mrb[0].mxu0
    %v242 = vadd.f32 0.0, %v241
    %v243 = vpop.f32.mrb[0].mxu0
    %244 = vmatprep.mubr.bf16.mxu0 0
    %245 = vmatmul.mubr.bf16.gmra.mrb[0].mxu0 %v179
    %v246 = vpop.f32.mrb[0].mxu0
    %v247 = vadd.f32 0.0, %v246
    %v248 = vpop.f32.mrb[0].mxu0
    %v249 = vpop.f32.mrb[0].mxu0
    %v250 = vadd.f32 0.0, %v249
    %v251 = vpop.f32.mrb[0].mxu0
    %252 = vmatprep.mubr.bf16.mxu0 0
    %253 = vmatmul.mubr.bf16.gmra.mrb[0].mxu0 %v182
    %v254 = vpop.f32.mrb[0].mxu0
    %v255 = vadd.f32 0.0, %v254
    %v256 = vpop.f32.mrb[0].mxu0
    %v257 = vpop.f32.mrb[0].mxu0
    %v258 = vadd.f32 0.0, %v257
    %v259 = vpop.f32.mrb[0].mxu0
    %260 = vmatprep.mubr.bf16.mxu0 0
    %261 = vmatmul.mubr.bf16.gmra.mrb[0].mxu0 %v185
    %v262 = vpop.f32.mrb[0].mxu0
    %v263 = vadd.f32 0.0, %v262
    %v264 = vpop.f32.mrb[0].mxu0
    %v265 = vpop.f32.mrb[0].mxu0
    %v266 = vadd.f32 0.0, %v265
    %v267 = vpop.f32.mrb[0].mxu0
    %268 = vmatprep.mubr.bf16.mxu0 0
    %269 = vmatmul.mubr.bf16.gmra.mrb[0].mxu0 %v188
    %v270 = vpop.f32.mrb[0].mxu0
    %v271 = vadd.f32 0.0, %v270
    %v272 = vpop.f32.mrb[0].mxu0
    %v273 = vpop.f32.mrb[0].mxu0
    %v274 = vadd.f32 0.0, %v273
    %v275 = vpop.f32.mrb[0].mxu0
    %276 = vmatprep.mubr.bf16.mxu0 0
    %277 = vmatmul.mubr.bf16.gmra.mrb[0].mxu0 %v191
    %v278 = vpop.f32.mrb[0].mxu0
    %v279 = vadd.f32 0.0, %v278
    %v280 = vpop.f32.mrb[0].mxu0
    %v281 = vpop.f32.mrb[0].mxu0
    %v282 = vadd.f32 0.0, %v281
    %v283 = vpop.f32.mrb[0].mxu0
    %284 = vmatprep.mubr.bf16.mxu0 0
    %285 = vmatmul.mubr.bf16.gmra.mrb[0].mxu0 %v194
    %v286 = vpop.f32.mrb[0].mxu0
    %v287 = vadd.f32 0.0, %v286
    %v288 = vpop.f32.mrb[0].mxu0
    %v289 = vpop.f32.mrb[0].mxu0
    %v290 = vadd.f32 0.0, %v289
    %v291 = vpop.f32.mrb[0].mxu0
    %292 = vdwg.mxu0
    %v297 = vunpack.c.l.b16 %v127
    %v298 = vunpack.c.l.b16 %v128
    %v299 = vunpack.c.l.b16 %v129
    %v300 = vunpack.c.l.b16 %v130
    %v301 = vpack.c.b16 %v298, %v297
    %v302 = vpack.c.b16 %v300, %v299
    %v306 = vsel %vm28, %v119, 0
    %v309 = vsel %vm28, %v120, 0
    %v312 = vsel %vm28, %v121, 0
    %v315 = vsel %vm28, %v122, 0
    %v318 = vsel %vm28, %v123, 0
    %v321 = vsel %vm28, %v124, 0
    %v324 = vsel %vm28, %v125, 0
    %v327 = vsel %vm28, %v126, 0
    %329 = vmatprep.subr.bf16.mxu0 0
    %330 = vmatpush1.bf16.msra.mxu0 %v301
    %331 = vmatprep.subr.bf16.mxu0 0
    %332 = vmatpush1.bf16.msra.mxu0 %v302
    %333 = vmatprep.subr.bf16.mxu0 0
    %334 = vmatpush1.bf16.msra.mxu0 0
    %335 = vmatprep.subr.bf16.mxu0 0
    %336 = vmatpush1.bf16.msra.mxu0 0
    %337 = vmatprep.subr.bf16.mxu0 0
    %338 = vmatpush1.bf16.msra.mxu0 0
    %339 = vmatprep.subr.bf16.mxu0 0
    %340 = vmatpush1.bf16.msra.mxu0 0
    %341 = vmatprep.subr.bf16.mxu0 0
    %342 = vmatpush1.bf16.msra.mxu0 0
    %343 = vmatprep.subr.bf16.mxu0 0
    %344 = vmatpush1.bf16.msra.mxu0 0
    %345 = vmatprep.subr.bf16.mxu0 0
    %346 = vmatpush1.bf16.msra.mxu0 0
    %347 = vmatprep.subr.bf16.mxu0 0
    %348 = vmatpush1.bf16.msra.mxu0 0
    %349 = vmatprep.subr.bf16.mxu0 0
    %350 = vmatpush1.bf16.msra.mxu0 0
    %351 = vmatprep.subr.bf16.mxu0 0
    %352 = vmatpush1.bf16.msra.mxu0 0
    %353 = vmatprep.subr.bf16.mxu0 0
    %354 = vmatpush1.bf16.msra.mxu0 0
    %355 = vmatprep.subr.bf16.mxu0 0
    %356 = vmatpush1.bf16.msra.mxu0 0
    %357 = vmatprep.subr.bf16.mxu0 0
    %358 = vmatpush1.bf16.msra.mxu0 0
    %359 = vmatprep.subr.bf16.mxu0 0
    %360 = vmatpush1.bf16.msra.mxu0 0
    %361 = vmatprep.mubr.bf16.mxu0 0
    %362 = vmatmul.mubr.bf16.gmra.mrb[0].mxu0 %v306
    %v363 = vpop.f32.mrb[0].mxu0
    %v364 = vadd.f32 %v231, %v363
    %v365 = vpop.f32.mrb[0].mxu0
    %v366 = vpop.f32.mrb[0].mxu0
    %v367 = vadd.f32 %v234, %v366
    %v368 = vpop.f32.mrb[0].mxu0
    %369 = vmatprep.mubr.bf16.mxu0 0
    %370 = vmatmul.mubr.bf16.gmra.mrb[0].mxu0 %v309
    %v371 = vpop.f32.mrb[0].mxu0
    %v372 = vadd.f32 %v239, %v371
    %v373 = vpop.f32.mrb[0].mxu0
    %v374 = vpop.f32.mrb[0].mxu0
    %v375 = vadd.f32 %v242, %v374
    %v376 = vpop.f32.mrb[0].mxu0
    %377 = vmatprep.mubr.bf16.mxu0 0
    %378 = vmatmul.mubr.bf16.gmra.mrb[0].mxu0 %v312
    %v379 = vpop.f32.mrb[0].mxu0
    %v380 = vadd.f32 %v247, %v379
    %v381 = vpop.f32.mrb[0].mxu0
    %v382 = vpop.f32.mrb[0].mxu0
    %v383 = vadd.f32 %v250, %v382
    %v384 = vpop.f32.mrb[0].mxu0
    %385 = vmatprep.mubr.bf16.mxu0 0
    %386 = vmatmul.mubr.bf16.gmra.mrb[0].mxu0 %v315
    %v387 = vpop.f32.mrb[0].mxu0
    %v388 = vadd.f32 %v255, %v387
    %v389 = vpop.f32.mrb[0].mxu0
    %v390 = vpop.f32.mrb[0].mxu0
    %v391 = vadd.f32 %v258, %v390
    %v392 = vpop.f32.mrb[0].mxu0
    %393 = vmatprep.mubr.bf16.mxu0 0
    %394 = vmatmul.mubr.bf16.gmra.mrb[0].mxu0 %v318
    %v395 = vpop.f32.mrb[0].mxu0
    %v396 = vadd.f32 %v263, %v395
    %v397 = vpop.f32.mrb[0].mxu0
    %v398 = vpop.f32.mrb[0].mxu0
    %v399 = vadd.f32 %v266, %v398
    %v400 = vpop.f32.mrb[0].mxu0
    %401 = vmatprep.mubr.bf16.mxu0 0
    %402 = vmatmul.mubr.bf16.gmra.mrb[0].mxu0 %v321
    %v403 = vpop.f32.mrb[0].mxu0
    %v404 = vadd.f32 %v271, %v403
    %v405 = vpop.f32.mrb[0].mxu0
    %v406 = vpop.f32.mrb[0].mxu0
    %v407 = vadd.f32 %v274, %v406
    %v408 = vpop.f32.mrb[0].mxu0
    %409 = vmatprep.mubr.bf16.mxu0 0
    %410 = vmatmul.mubr.bf16.gmra.mrb[0].mxu0 %v324
    %v411 = vpop.f32.mrb[0].mxu0
    %v412 = vadd.f32 %v279, %v411
    %v413 = vpop.f32.mrb[0].mxu0
    %v414 = vpop.f32.mrb[0].mxu0
    %v415 = vadd.f32 %v282, %v414
    %v416 = vpop.f32.mrb[0].mxu0
    %417 = vmatprep.mubr.bf16.mxu0 0
    %418 = vmatmul.mubr.bf16.gmra.mrb[0].mxu0 %v327
    %v419 = vpop.f32.mrb[0].mxu0
    %v420 = vadd.f32 %v287, %v419
    %v421 = vpop.f32.mrb[0].mxu0
    %v422 = vpop.f32.mrb[0].mxu0
    %v423 = vadd.f32 %v290, %v422
    %v424 = vpop.f32.mrb[0].mxu0
    %425 = vdwg.mxu0
    %v426 = vld [vmem:[#allocation2 + $0x2] sm:$0xff]
    %v427 = vld [vmem:[#allocation2 + $0x12] sm:$0xff]
    %v428 = vld [vmem:[#allocation2 + $0x22] sm:$0xff]
    %v429 = vld [vmem:[#allocation2 + $0x32] sm:$0xff]
    %v430 = vld [vmem:[#allocation2 + $0x42] sm:$0xff]
    %v431 = vld [vmem:[#allocation2 + $0x52] sm:$0xff]
    %v432 = vld [vmem:[#allocation2 + $0x62] sm:$0xff]
    %v433 = vld [vmem:[#allocation2 + $0x72] sm:$0xff]
    %v434 = vld [vmem:[#allocation2 + $0xa2] sm:$0xff]
    %v435 = vld [vmem:[#allocation2 + $0xb2] sm:$0xff]
    %v436 = vld [vmem:[#allocation2 + $0xc2] sm:$0xff]
    %v437 = vld [vmem:[#allocation2 + $0xd2] sm:$0xff]
    %v438 = vld [vmem:[#allocation2 + $0xe2] sm:$0xff]
    %v439 = vld [vmem:[#allocation2 + $0xf2] sm:$0xff]
    %v440 = vld [vmem:[#allocation2 + $0x102] sm:$0xff]
    %v441 = vld [vmem:[#allocation2 + $0x112] sm:$0xff]
    %v442 = vpack.c.bf16 %v427, %v426
    %v443 = vpack.c.bf16 %v429, %v428
    %v444 = vpack.c.bf16 %v431, %v430
    %v445 = vpack.c.bf16 %v433, %v432
    %v446 = vpack.c.bf16 %v435, %v434
    %v447 = vpack.c.bf16 %v437, %v436
    %v448 = vpack.c.bf16 %v439, %v438
    %v449 = vpack.c.bf16 %v441, %v440
    %s450 = scalar_lea.vmem %s1, 32
    %v451 = vld [vmem:[%s450] sm:$0xf]
    %v452 = vld [vmem:[%s450 + $0x4] sm:$0xf]
    %v453 = vld [vmem:[%s450 + $0x8] sm:$0xf]
    %v454 = vld [vmem:[%s450 + $0xc] sm:$0xf]
    %v459 = vunpack.c.l.b16 %v451
    %v460 = vunpack.c.l.b16 %v452
    %v461 = vunpack.c.l.b16 %v453
    %v462 = vunpack.c.l.b16 %v454
    %v463 = vpack.c.b16 %v460, %v459
    %v464 = vpack.c.b16 %v462, %v461
    %v468 = vsel %vm28, %v442, 0
    %v471 = vsel %vm28, %v443, 0
    %v474 = vsel %vm28, %v444, 0
    %v477 = vsel %vm28, %v445, 0
    %v480 = vsel %vm28, %v446, 0
    %v483 = vsel %vm28, %v447, 0
    %v486 = vsel %vm28, %v448, 0
    %v489 = vsel %vm28, %v449, 0
    %491 = vmatprep.subr.bf16.mxu0 0
    %492 = vmatpush1.bf16.msra.mxu0 %v463
    %493 = vmatprep.subr.bf16.mxu0 0
    %494 = vmatpush1.bf16.msra.mxu0 %v464
    %495 = vmatprep.subr.bf16.mxu0 0
    %496 = vmatpush1.bf16.msra.mxu0 0
    %497 = vmatprep.subr.bf16.mxu0 0
    %498 = vmatpush1.bf16.msra.mxu0 0
    %499 = vmatprep.subr.bf16.mxu0 0
    %500 = vmatpush1.bf16.msra.mxu0 0
    %501 = vmatprep.subr.bf16.mxu0 0
    %502 = vmatpush1.bf16.msra.mxu0 0
    %503 = vmatprep.subr.bf16.mxu0 0
    %504 = vmatpush1.bf16.msra.mxu0 0
    %505 = vmatprep.subr.bf16.mxu0 0
    %506 = vmatpush1.bf16.msra.mxu0 0
    %507 = vmatprep.subr.bf16.mxu0 0
    %508 = vmatpush1.bf16.msra.mxu0 0
    %509 = vmatprep.subr.bf16.mxu0 0
    %510 = vmatpush1.bf16.msra.mxu0 0
    %511 = vmatprep.subr.bf16.mxu0 0
    %512 = vmatpush1.bf16.msra.mxu0 0
    %513 = vmatprep.subr.bf16.mxu0 0
    %514 = vmatpush1.bf16.msra.mxu0 0
    %515 = vmatprep.subr.bf16.mxu0 0
    %516 = vmatpush1.bf16.msra.mxu0 0
    %517 = vmatprep.subr.bf16.mxu0 0
    %518 = vmatpush1.bf16.msra.mxu0 0
    %519 = vmatprep.subr.bf16.mxu0 0
    %520 = vmatpush1.bf16.msra.mxu0 0
    %521 = vmatprep.subr.bf16.mxu0 0
    %522 = vmatpush1.bf16.msra.mxu0 0
    %523 = vmatprep.mubr.bf16.mxu0 0
    %524 = vmatmul.mubr.bf16.gmra.mrb[0].mxu0 %v468
    %v525 = vpop.f32.mrb[0].mxu0
    %v526 = vadd.f32 0.0, %v525
    %v527 = vpop.f32.mrb[0].mxu0
    %v528 = vpop.f32.mrb[0].mxu0
    %v529 = vadd.f32 0.0, %v528
    %v530 = vpop.f32.mrb[0].mxu0
    %531 = vmatprep.mubr.bf16.mxu0 0
    %532 = vmatmul.mubr.bf16.gmra.mrb[0].mxu0 %v471
    %v533 = vpop.f32.mrb[0].mxu0
    %v534 = vadd.f32 0.0, %v533
    %v535 = vpop.f32.mrb[0].mxu0
    %v536 = vpop.f32.mrb[0].mxu0
    %v537 = vadd.f32 0.0, %v536
    %v538 = vpop.f32.mrb[0].mxu0
    %539 = vmatprep.mubr.bf16.mxu0 0
    %540 = vmatmul.mubr.bf16.gmra.mrb[0].mxu0 %v474
    %v541 = vpop.f32.mrb[0].mxu0
    %v542 = vadd.f32 0.0, %v541
    %v543 = vpop.f32.mrb[0].mxu0
    %v544 = vpop.f32.mrb[0].mxu0
    %v545 = vadd.f32 0.0, %v544
    %v546 = vpop.f32.mrb[0].mxu0
    %547 = vmatprep.mubr.bf16.mxu0 0
    %548 = vmatmul.mubr.bf16.gmra.mrb[0].mxu0 %v477
    %v549 = vpop.f32.mrb[0].mxu0
    %v550 = vadd.f32 0.0, %v549
    %v551 = vpop.f32.mrb[0].mxu0
    %v552 = vpop.f32.mrb[0].mxu0
    %v553 = vadd.f32 0.0, %v552
    %v554 = vpop.f32.mrb[0].mxu0
    %555 = vmatprep.mubr.bf16.mxu0 0
    %556 = vmatmul.mubr.bf16.gmra.mrb[0].mxu0 %v480
    %v557 = vpop.f32.mrb[0].mxu0
    %v558 = vadd.f32 0.0, %v557
    %v559 = vpop.f32.mrb[0].mxu0
    %v560 = vpop.f32.mrb[0].mxu0
    %v561 = vadd.f32 0.0, %v560
    %v562 = vpop.f32.mrb[0].mxu0
    %563 = vmatprep.mubr.bf16.mxu0 0
    %564 = vmatmul.mubr.bf16.gmra.mrb[0].mxu0 %v483
    %v565 = vpop.f32.mrb[0].mxu0
    %v566 = vadd.f32 0.0, %v565
    %v567 = vpop.f32.mrb[0].mxu0
    %v568 = vpop.f32.mrb[0].mxu0
    %v569 = vadd.f32 0.0, %v568
    %v570 = vpop.f32.mrb[0].mxu0
    %571 = vmatprep.mubr.bf16.mxu0 0
    %572 = vmatmul.mubr.bf16.gmra.mrb[0].mxu0 %v486
    %v573 = vpop.f32.mrb[0].mxu0
    %v574 = vadd.f32 0.0, %v573
    %v575 = vpop.f32.mrb[0].mxu0
    %v576 = vpop.f32.mrb[0].mxu0
    %v577 = vadd.f32 0.0, %v576
    %v578 = vpop.f32.mrb[0].mxu0
    %579 = vmatprep.mubr.bf16.mxu0 0
    %580 = vmatmul.mubr.bf16.gmra.mrb[0].mxu0 %v489
    %v581 = vpop.f32.mrb[0].mxu0
    %v582 = vadd.f32 0.0, %v581
    %v583 = vpop.f32.mrb[0].mxu0
    %v584 = vpop.f32.mrb[0].mxu0
    %v585 = vadd.f32 0.0, %v584
    %v586 = vpop.f32.mrb[0].mxu0
    %587 = vdwg.mxu0
    %v588 = vadd.f32 %v364, %v526
    %v589 = vadd.f32 %v367, %v529
    %v590 = vadd.f32 %v372, %v534
    %v591 = vadd.f32 %v375, %v537
    %v592 = vadd.f32 %v380, %v542
    %v593 = vadd.f32 %v383, %v545
    %v594 = vadd.f32 %v388, %v550
    %v595 = vadd.f32 %v391, %v553
    %v596 = vadd.f32 %v396, %v558
    %v597 = vadd.f32 %v399, %v561
    %v598 = vadd.f32 %v404, %v566
    %v599 = vadd.f32 %v407, %v569
    %v600 = vadd.f32 %v412, %v574
    %v601 = vadd.f32 %v415, %v577
    %v602 = vadd.f32 %v420, %v582
    %v603 = vadd.f32 %v423, %v585
    %v604 = vld [vmem:[%s86] sm:$0xff]
    %v605 = vld [vmem:[%s86 + $0x10] sm:$0xff]
    %v606 = vld [vmem:[%s86 + $0x20] sm:$0xff]
    %v607 = vld [vmem:[%s86 + $0x30] sm:$0xff]
    %v608 = vld [vmem:[%s86 + $0x40] sm:$0xff]
    %v609 = vld [vmem:[%s86 + $0x50] sm:$0xff]
    %v610 = vld [vmem:[%s86 + $0x60] sm:$0xff]
    %v611 = vld [vmem:[%s86 + $0x70] sm:$0xff]
    %v612 = vld [vmem:[%s86 + $0xa0] sm:$0xff]
    %v613 = vld [vmem:[%s86 + $0xb0] sm:$0xff]
    %v614 = vld [vmem:[%s86 + $0xc0] sm:$0xff]
    %v615 = vld [vmem:[%s86 + $0xd0] sm:$0xff]
    %v616 = vld [vmem:[%s86 + $0xe0] sm:$0xff]
    %v617 = vld [vmem:[%s86 + $0xf0] sm:$0xff]
    %v618 = vld [vmem:[%s86 + $0x100] sm:$0xff]
    %v619 = vld [vmem:[%s86 + $0x110] sm:$0xff]
    %v620 = vpack.c.bf16 %v605, %v604
    %v621 = vpack.c.bf16 %v607, %v606
    %v622 = vpack.c.bf16 %v609, %v608
    %v623 = vpack.c.bf16 %v611, %v610
    %v624 = vpack.c.bf16 %v613, %v612
    %v625 = vpack.c.bf16 %v615, %v614
    %v626 = vpack.c.bf16 %v617, %v616
    %v627 = vpack.c.bf16 %v619, %v618
    %s628 = scalar_lea.vmem %s1, 48
    %v629 = vld [vmem:[%s628] sm:$0xf]
    %v630 = vld [vmem:[%s628 + $0x4] sm:$0xf]
    %v631 = vld [vmem:[%s628 + $0x8] sm:$0xf]
    %v632 = vld [vmem:[%s628 + $0xc] sm:$0xf]
    %v637 = vunpack.c.l.b16 %v629
    %v638 = vunpack.c.l.b16 %v630
    %v639 = vunpack.c.l.b16 %v631
    %v640 = vunpack.c.l.b16 %v632
    %v641 = vpack.c.b16 %v638, %v637
    %v642 = vpack.c.b16 %v640, %v639
    %v646 = vsel %vm28, %v620, 0
    %v649 = vsel %vm28, %v621, 0
    %v652 = vsel %vm28, %v622, 0
    %v655 = vsel %vm28, %v623, 0
    %v658 = vsel %vm28, %v624, 0
    %v661 = vsel %vm28, %v625, 0
    %v664 = vsel %vm28, %v626, 0
    %v667 = vsel %vm28, %v627, 0
    %669 = vmatprep.subr.bf16.mxu0 0
    %670 = vmatpush1.bf16.msra.mxu0 %v641
    %671 = vmatprep.subr.bf16.mxu0 0
    %672 = vmatpush1.bf16.msra.mxu0 %v642
    %673 = vmatprep.subr.bf16.mxu0 0
    %674 = vmatpush1.bf16.msra.mxu0 0
    %675 = vmatprep.subr.bf16.mxu0 0
    %676 = vmatpush1.bf16.msra.mxu0 0
    %677 = vmatprep.subr.bf16.mxu0 0
    %678 = vmatpush1.bf16.msra.mxu0 0
    %679 = vmatprep.subr.bf16.mxu0 0
    %680 = vmatpush1.bf16.msra.mxu0 0
    %681 = vmatprep.subr.bf16.mxu0 0
    %682 = vmatpush1.bf16.msra.mxu0 0
    %683 = vmatprep.subr.bf16.mxu0 0
    %684 = vmatpush1.bf16.msra.mxu0 0
    %685 = vmatprep.subr.bf16.mxu0 0
    %686 = vmatpush1.bf16.msra.mxu0 0
    %687 = vmatprep.subr.bf16.mxu0 0
    %688 = vmatpush1.bf16.msra.mxu0 0
    %689 = vmatprep.subr.bf16.mxu0 0
    %690 = vmatpush1.bf16.msra.mxu0 0
    %691 = vmatprep.subr.bf16.mxu0 0
    %692 = vmatpush1.bf16.msra.mxu0 0
    %693 = vmatprep.subr.bf16.mxu0 0
    %694 = vmatpush1.bf16.msra.mxu0 0
    %695 = vmatprep.subr.bf16.mxu0 0
    %696 = vmatpush1.bf16.msra.mxu0 0
    %697 = vmatprep.subr.bf16.mxu0 0
    %698 = vmatpush1.bf16.msra.mxu0 0
    %699 = vmatprep.subr.bf16.mxu0 0
    %700 = vmatpush1.bf16.msra.mxu0 0
    %701 = vmatprep.mubr.bf16.mxu0 0
    %702 = vmatmul.mubr.bf16.gmra.mrb[0].mxu0 %v646
    %v703 = vpop.f32.mrb[0].mxu0
    %v704 = vadd.f32 0.0, %v703
    %v705 = vpop.f32.mrb[0].mxu0
    %v706 = vpop.f32.mrb[0].mxu0
    %v707 = vadd.f32 0.0, %v706
    %v708 = vpop.f32.mrb[0].mxu0
    %709 = vmatprep.mubr.bf16.mxu0 0
    %710 = vmatmul.mubr.bf16.gmra.mrb[0].mxu0 %v649
    %v711 = vpop.f32.mrb[0].mxu0
    %v712 = vadd.f32 0.0, %v711
    %v713 = vpop.f32.mrb[0].mxu0
    %v714 = vpop.f32.mrb[0].mxu0
    %v715 = vadd.f32 0.0, %v714
    %v716 = vpop.f32.mrb[0].mxu0
    %717 = vmatprep.mubr.bf16.mxu0 0
    %718 = vmatmul.mubr.bf16.gmra.mrb[0].mxu0 %v652
    %v719 = vpop.f32.mrb[0].mxu0
    %v720 = vadd.f32 0.0, %v719
    %v721 = vpop.f32.mrb[0].mxu0
    %v722 = vpop.f32.mrb[0].mxu0
    %v723 = vadd.f32 0.0, %v722
    %v724 = vpop.f32.mrb[0].mxu0
    %725 = vmatprep.mubr.bf16.mxu0 0
    %726 = vmatmul.mubr.bf16.gmra.mrb[0].mxu0 %v655
    %v727 = vpop.f32.mrb[0].mxu0
    %v728 = vadd.f32 0.0, %v727
    %v729 = vpop.f32.mrb[0].mxu0
    %v730 = vpop.f32.mrb[0].mxu0
    %v731 = vadd.f32 0.0, %v730
    %v732 = vpop.f32.mrb[0].mxu0
    %733 = vmatprep.mubr.bf16.mxu0 0
    %734 = vmatmul.mubr.bf16.gmra.mrb[0].mxu0 %v658
    %v735 = vpop.f32.mrb[0].mxu0
    %v736 = vadd.f32 0.0, %v735
    %v737 = vpop.f32.mrb[0].mxu0
    %v738 = vpop.f32.mrb[0].mxu0
    %v739 = vadd.f32 0.0, %v738
    %v740 = vpop.f32.mrb[0].mxu0
    %741 = vmatprep.mubr.bf16.mxu0 0
    %742 = vmatmul.mubr.bf16.gmra.mrb[0].mxu0 %v661
    %v743 = vpop.f32.mrb[0].mxu0
    %v744 = vadd.f32 0.0, %v743
    %v745 = vpop.f32.mrb[0].mxu0
    %v746 = vpop.f32.mrb[0].mxu0
    %v747 = vadd.f32 0.0, %v746
    %v748 = vpop.f32.mrb[0].mxu0
    %749 = vmatprep.mubr.bf16.mxu0 0
    %750 = vmatmul.mubr.bf16.gmra.mrb[0].mxu0 %v664
    %v751 = vpop.f32.mrb[0].mxu0
    %v752 = vadd.f32 0.0, %v751
    %v753 = vpop.f32.mrb[0].mxu0
    %v754 = vpop.f32.mrb[0].mxu0
    %v755 = vadd.f32 0.0, %v754
    %v756 = vpop.f32.mrb[0].mxu0
    %757 = vmatprep.mubr.bf16.mxu0 0
    %758 = vmatmul.mubr.bf16.gmra.mrb[0].mxu0 %v667
    %v759 = vpop.f32.mrb[0].mxu0
    %v760 = vadd.f32 0.0, %v759
    %v761 = vpop.f32.mrb[0].mxu0
    %v762 = vpop.f32.mrb[0].mxu0
    %v763 = vadd.f32 0.0, %v762
    %v764 = vpop.f32.mrb[0].mxu0
    %765 = vdwg.mxu0
    %v766 = vadd.f32 %v588, %v704
    %v767 = vadd.f32 %v589, %v707
    %v768 = vadd.f32 %v590, %v712
    %v769 = vadd.f32 %v591, %v715
    %v770 = vadd.f32 %v592, %v720
    %v771 = vadd.f32 %v593, %v723
    %v772 = vadd.f32 %v594, %v728
    %v773 = vadd.f32 %v595, %v731
    %v774 = vadd.f32 %v596, %v736
    %v775 = vadd.f32 %v597, %v739
    %v776 = vadd.f32 %v598, %v744
    %v777 = vadd.f32 %v599, %v747
    %v778 = vadd.f32 %v600, %v752
    %v779 = vadd.f32 %v601, %v755
    %v780 = vadd.f32 %v602, %v760
    %v781 = vadd.f32 %v603, %v763
    %v782 = vld [vmem:[%s86 + $0x1] sm:$0xff]
    %v783 = vld [vmem:[%s86 + $0x11] sm:$0xff]
    %v784 = vld [vmem:[%s86 + $0x21] sm:$0xff]
    %v785 = vld [vmem:[%s86 + $0x31] sm:$0xff]
    %v786 = vld [vmem:[%s86 + $0x41] sm:$0xff]
    %v787 = vld [vmem:[%s86 + $0x51] sm:$0xff]
    %v788 = vld [vmem:[%s86 + $0x61] sm:$0xff]
    %v789 = vld [vmem:[%s86 + $0x71] sm:$0xff]
    %v790 = vld [vmem:[%s86 + $0xa1] sm:$0xff]
    %v791 = vld [vmem:[%s86 + $0xb1] sm:$0xff]
    %v792 = vld [vmem:[%s86 + $0xc1] sm:$0xff]
    %v793 = vld [vmem:[%s86 + $0xd1] sm:$0xff]
    %v794 = vld [vmem:[%s86 + $0xe1] sm:$0xff]
    %v795 = vld [vmem:[%s86 + $0xf1] sm:$0xff]
    %v796 = vld [vmem:[%s86 + $0x101] sm:$0xff]
    %v797 = vld [vmem:[%s86 + $0x111] sm:$0xff]
    %v798 = vpack.c.bf16 %v783, %v782
    %v799 = vpack.c.bf16 %v785, %v784
    %v800 = vpack.c.bf16 %v787, %v786
    %v801 = vpack.c.bf16 %v789, %v788
    %v802 = vpack.c.bf16 %v791, %v790
    %v803 = vpack.c.bf16 %v793, %v792
    %v804 = vpack.c.bf16 %v795, %v794
    %v805 = vpack.c.bf16 %v797, %v796
    %s806 = scalar_lea.vmem %s1, 64
    %v807 = vld [vmem:[%s806] sm:$0xf]
    %v808 = vld [vmem:[%s806 + $0x4] sm:$0xf]
    %v809 = vld [vmem:[%s806 + $0x8] sm:$0xf]
    %v810 = vld [vmem:[%s806 + $0xc] sm:$0xf]
    %v815 = vunpack.c.l.b16 %v807
    %v816 = vunpack.c.l.b16 %v808
    %v817 = vunpack.c.l.b16 %v809
    %v818 = vunpack.c.l.b16 %v810
    %v819 = vpack.c.b16 %v816, %v815
    %v820 = vpack.c.b16 %v818, %v817
    %v824 = vsel %vm28, %v798, 0
    %v827 = vsel %vm28, %v799, 0
    %v830 = vsel %vm28, %v800, 0
    %v833 = vsel %vm28, %v801, 0
    %v836 = vsel %vm28, %v802, 0
    %v839 = vsel %vm28, %v803, 0
    %v842 = vsel %vm28, %v804, 0
    %v845 = vsel %vm28, %v805, 0
    %847 = vmatprep.subr.bf16.mxu0 0
    %848 = vmatpush1.bf16.msra.mxu0 %v819
    %849 = vmatprep.subr.bf16.mxu0 0
    %850 = vmatpush1.bf16.msra.mxu0 %v820
    %851 = vmatprep.subr.bf16.mxu0 0
    %852 = vmatpush1.bf16.msra.mxu0 0
    %853 = vmatprep.subr.bf16.mxu0 0
    %854 = vmatpush1.bf16.msra.mxu0 0
    %855 = vmatprep.subr.bf16.mxu0 0
    %856 = vmatpush1.bf16.msra.mxu0 0
    %857 = vmatprep.subr.bf16.mxu0 0
    %858 = vmatpush1.bf16.msra.mxu0 0
    %859 = vmatprep.subr.bf16.mxu0 0
    %860 = vmatpush1.bf16.msra.mxu0 0
    %861 = vmatprep.subr.bf16.mxu0 0
    %862 = vmatpush1.bf16.msra.mxu0 0
    %863 = vmatprep.subr.bf16.mxu0 0
    %864 = vmatpush1.bf16.msra.mxu0 0
    %865 = vmatprep.subr.bf16.mxu0 0
    %866 = vmatpush1.bf16.msra.mxu0 0
    %867 = vmatprep.subr.bf16.mxu0 0
    %868 = vmatpush1.bf16.msra.mxu0 0
    %869 = vmatprep.subr.bf16.mxu0 0
    %870 = vmatpush1.bf16.msra.mxu0 0
    %871 = vmatprep.subr.bf16.mxu0 0
    %872 = vmatpush1.bf16.msra.mxu0 0
    %873 = vmatprep.subr.bf16.mxu0 0
    %874 = vmatpush1.bf16.msra.mxu0 0
    %875 = vmatprep.subr.bf16.mxu0 0
    %876 = vmatpush1.bf16.msra.mxu0 0
    %877 = vmatprep.subr.bf16.mxu0 0
    %878 = vmatpush1.bf16.msra.mxu0 0
    %879 = vmatprep.mubr.bf16.mxu0 0
    %880 = vmatmul.mubr.bf16.gmra.mrb[0].mxu0 %v824
    %v881 = vpop.f32.mrb[0].mxu0
    %v882 = vadd.f32 0.0, %v881
    %v883 = vpop.f32.mrb[0].mxu0
    %v884 = vpop.f32.mrb[0].mxu0
    %v885 = vadd.f32 0.0, %v884
    %v886 = vpop.f32.mrb[0].mxu0
    %887 = vmatprep.mubr.bf16.mxu0 0
    %888 = vmatmul.mubr.bf16.gmra.mrb[0].mxu0 %v827
    %v889 = vpop.f32.mrb[0].mxu0
    %v890 = vadd.f32 0.0, %v889
    %v891 = vpop.f32.mrb[0].mxu0
    %v892 = vpop.f32.mrb[0].mxu0
    %v893 = vadd.f32 0.0, %v892
    %v894 = vpop.f32.mrb[0].mxu0
    %895 = vmatprep.mubr.bf16.mxu0 0
    %896 = vmatmul.mubr.bf16.gmra.mrb[0].mxu0 %v830
    %v897 = vpop.f32.mrb[0].mxu0
    %v898 = vadd.f32 0.0, %v897
    %v899 = vpop.f32.mrb[0].mxu0
    %v900 = vpop.f32.mrb[0].mxu0
    %v901 = vadd.f32 0.0, %v900
    %v902 = vpop.f32.mrb[0].mxu0
    %903 = vmatprep.mubr.bf16.mxu0 0
    %904 = vmatmul.mubr.bf16.gmra.mrb[0].mxu0 %v833
    %v905 = vpop.f32.mrb[0].mxu0
    %v906 = vadd.f32 0.0, %v905
    %v907 = vpop.f32.mrb[0].mxu0
    %v908 = vpop.f32.mrb[0].mxu0
    %v909 = vadd.f32 0.0, %v908
    %v910 = vpop.f32.mrb[0].mxu0
    %911 = vmatprep.mubr.bf16.mxu0 0
    %912 = vmatmul.mubr.bf16.gmra.mrb[0].mxu0 %v836
    %v913 = vpop.f32.mrb[0].mxu0
    %v914 = vadd.f32 0.0, %v913
    %v915 = vpop.f32.mrb[0].mxu0
    %v916 = vpop.f32.mrb[0].mxu0
    %v917 = vadd.f32 0.0, %v916
    %v918 = vpop.f32.mrb[0].mxu0
    %919 = vmatprep.mubr.bf16.mxu0 0
    %920 = vmatmul.mubr.bf16.gmra.mrb[0].mxu0 %v839
    %v921 = vpop.f32.mrb[0].mxu0
    %v922 = vadd.f32 0.0, %v921
    %v923 = vpop.f32.mrb[0].mxu0
    %v924 = vpop.f32.mrb[0].mxu0
    %v925 = vadd.f32 0.0, %v924
    %v926 = vpop.f32.mrb[0].mxu0
    %927 = vmatprep.mubr.bf16.mxu0 0
    %928 = vmatmul.mubr.bf16.gmra.mrb[0].mxu0 %v842
    %v929 = vpop.f32.mrb[0].mxu0
    %v930 = vadd.f32 0.0, %v929
    %v931 = vpop.f32.mrb[0].mxu0
    %v932 = vpop.f32.mrb[0].mxu0
    %v933 = vadd.f32 0.0, %v932
    %v934 = vpop.f32.mrb[0].mxu0
    %935 = vmatprep.mubr.bf16.mxu0 0
    %936 = vmatmul.mubr.bf16.gmra.mrb[0].mxu0 %v845
    %v937 = vpop.f32.mrb[0].mxu0
    %v938 = vadd.f32 0.0, %v937
    %v939 = vpop.f32.mrb[0].mxu0
    %v940 = vpop.f32.mrb[0].mxu0
    %v941 = vadd.f32 0.0, %v940
    %v942 = vpop.f32.mrb[0].mxu0
    %943 = vdwg.mxu0
    %v944 = vadd.f32 %v766, %v882
    %v945 = vadd.f32 %v767, %v885
    %v946 = vadd.f32 %v768, %v890
    %v947 = vadd.f32 %v769, %v893
    %v948 = vadd.f32 %v770, %v898
    %v949 = vadd.f32 %v771, %v901
    %v950 = vadd.f32 %v772, %v906
    %v951 = vadd.f32 %v773, %v909
    %v952 = vadd.f32 %v774, %v914
    %v953 = vadd.f32 %v775, %v917
    %v954 = vadd.f32 %v776, %v922
    %v955 = vadd.f32 %v777, %v925
    %v956 = vadd.f32 %v778, %v930
    %v957 = vadd.f32 %v779, %v933
    %v958 = vadd.f32 %v780, %v938
    %v959 = vadd.f32 %v781, %v941
    %v960 = vld [vmem:[%s86 + $0x2] sm:$0xff]
    %v961 = vld [vmem:[%s86 + $0x12] sm:$0xff]
    %v962 = vld [vmem:[%s86 + $0x22] sm:$0xff]
    %v963 = vld [vmem:[%s86 + $0x32] sm:$0xff]
    %v964 = vld [vmem:[%s86 + $0x42] sm:$0xff]
    %v965 = vld [vmem:[%s86 + $0x52] sm:$0xff]
    %v966 = vld [vmem:[%s86 + $0x62] sm:$0xff]
    %v967 = vld [vmem:[%s86 + $0x72] sm:$0xff]
    %v968 = vld [vmem:[%s86 + $0xa2] sm:$0xff]
    %v969 = vld [vmem:[%s86 + $0xb2] sm:$0xff]
    %v970 = vld [vmem:[%s86 + $0xc2] sm:$0xff]
    %v971 = vld [vmem:[%s86 + $0xd2] sm:$0xff]
    %v972 = vld [vmem:[%s86 + $0xe2] sm:$0xff]
    %v973 = vld [vmem:[%s86 + $0xf2] sm:$0xff]
    %v974 = vld [vmem:[%s86 + $0x102] sm:$0xff]
    %v975 = vld [vmem:[%s86 + $0x112] sm:$0xff]
    %v976 = vpack.c.bf16 %v961, %v960
    %v977 = vpack.c.bf16 %v963, %v962
    %v978 = vpack.c.bf16 %v965, %v964
    %v979 = vpack.c.bf16 %v967, %v966
    %v980 = vpack.c.bf16 %v969, %v968
    %v981 = vpack.c.bf16 %v971, %v970
    %v982 = vpack.c.bf16 %v973, %v972
    %v983 = vpack.c.bf16 %v975, %v974
    %s984 = scalar_lea.vmem %s1, 80
    %v985 = vld [vmem:[%s984] sm:$0xf]
    %v986 = vld [vmem:[%s984 + $0x4] sm:$0xf]
    %v987 = vld [vmem:[%s984 + $0x8] sm:$0xf]
    %v988 = vld [vmem:[%s984 + $0xc] sm:$0xf]
    %v993 = vunpack.c.l.b16 %v985
    %v994 = vunpack.c.l.b16 %v986
    %v995 = vunpack.c.l.b16 %v987
    %v996 = vunpack.c.l.b16 %v988
    %v997 = vpack.c.b16 %v994, %v993
    %v998 = vpack.c.b16 %v996, %v995
    %v1002 = vsel %vm28, %v976, 0
    %v1005 = vsel %vm28, %v977, 0
    %v1008 = vsel %vm28, %v978, 0
    %v1011 = vsel %vm28, %v979, 0
    %v1014 = vsel %vm28, %v980, 0
    %v1017 = vsel %vm28, %v981, 0
    %v1020 = vsel %vm28, %v982, 0
    %v1023 = vsel %vm28, %v983, 0
    %1025 = vmatprep.subr.bf16.mxu0 0
    %1026 = vmatpush1.bf16.msra.mxu0 %v997
    %1027 = vmatprep.subr.bf16.mxu0 0
    %1028 = vmatpush1.bf16.msra.mxu0 %v998
    %1029 = vmatprep.subr.bf16.mxu0 0
    %1030 = vmatpush1.bf16.msra.mxu0 0
    %1031 = vmatprep.subr.bf16.mxu0 0
    %1032 = vmatpush1.bf16.msra.mxu0 0
    %1033 = vmatprep.subr.bf16.mxu0 0
    %1034 = vmatpush1.bf16.msra.mxu0 0
    %1035 = vmatprep.subr.bf16.mxu0 0
    %1036 = vmatpush1.bf16.msra.mxu0 0
    %1037 = vmatprep.subr.bf16.mxu0 0
    %1038 = vmatpush1.bf16.msra.mxu0 0
    %1039 = vmatprep.subr.bf16.mxu0 0
    %1040 = vmatpush1.bf16.msra.mxu0 0
    %1041 = vmatprep.subr.bf16.mxu0 0
    %1042 = vmatpush1.bf16.msra.mxu0 0
    %1043 = vmatprep.subr.bf16.mxu0 0
    %1044 = vmatpush1.bf16.msra.mxu0 0
    %1045 = vmatprep.subr.bf16.mxu0 0
    %1046 = vmatpush1.bf16.msra.mxu0 0
    %1047 = vmatprep.subr.bf16.mxu0 0
    %1048 = vmatpush1.bf16.msra.mxu0 0
    %1049 = vmatprep.subr.bf16.mxu0 0
    %1050 = vmatpush1.bf16.msra.mxu0 0
    %1051 = vmatprep.subr.bf16.mxu0 0
    %1052 = vmatpush1.bf16.msra.mxu0 0
    %1053 = vmatprep.subr.bf16.mxu0 0
    %1054 = vmatpush1.bf16.msra.mxu0 0
    %1055 = vmatprep.subr.bf16.mxu0 0
    %1056 = vmatpush1.bf16.msra.mxu0 0
    %1057 = vmatprep.mubr.bf16.mxu0 0
    %1058 = vmatmul.mubr.bf16.gmra.mrb[0].mxu0 %v1002
    %v1059 = vpop.f32.mrb[0].mxu0
    %v1060 = vadd.f32 0.0, %v1059
    %v1061 = vpop.f32.mrb[0].mxu0
    %v1062 = vpop.f32.mrb[0].mxu0
    %v1063 = vadd.f32 0.0, %v1062
    %v1064 = vpop.f32.mrb[0].mxu0
    %1065 = vmatprep.mubr.bf16.mxu0 0
    %1066 = vmatmul.mubr.bf16.gmra.mrb[0].mxu0 %v1005
    %v1067 = vpop.f32.mrb[0].mxu0
    %v1068 = vadd.f32 0.0, %v1067
    %v1069 = vpop.f32.mrb[0].mxu0
    %v1070 = vpop.f32.mrb[0].mxu0
    %v1071 = vadd.f32 0.0, %v1070
    %v1072 = vpop.f32.mrb[0].mxu0
    %1073 = vmatprep.mubr.bf16.mxu0 0
    %1074 = vmatmul.mubr.bf16.gmra.mrb[0].mxu0 %v1008
    %v1075 = vpop.f32.mrb[0].mxu0
    %v1076 = vadd.f32 0.0, %v1075
    %v1077 = vpop.f32.mrb[0].mxu0
    %v1078 = vpop.f32.mrb[0].mxu0
    %v1079 = vadd.f32 0.0, %v1078
    %v1080 = vpop.f32.mrb[0].mxu0
    %1081 = vmatprep.mubr.bf16.mxu0 0
    %1082 = vmatmul.mubr.bf16.gmra.mrb[0].mxu0 %v1011
    %v1083 = vpop.f32.mrb[0].mxu0
    %v1084 = vadd.f32 0.0, %v1083
    %v1085 = vpop.f32.mrb[0].mxu0
    %v1086 = vpop.f32.mrb[0].mxu0
    %v1087 = vadd.f32 0.0, %v1086
    %v1088 = vpop.f32.mrb[0].mxu0
    %1089 = vmatprep.mubr.bf16.mxu0 0
    %1090 = vmatmul.mubr.bf16.gmra.mrb[0].mxu0 %v1014
    %v1091 = vpop.f32.mrb[0].mxu0
    %v1092 = vadd.f32 0.0, %v1091
    %v1093 = vpop.f32.mrb[0].mxu0
    %v1094 = vpop.f32.mrb[0].mxu0
    %v1095 = vadd.f32 0.0, %v1094
    %v1096 = vpop.f32.mrb[0].mxu0
    %1097 = vmatprep.mubr.bf16.mxu0 0
    %1098 = vmatmul.mubr.bf16.gmra.mrb[0].mxu0 %v1017
    %v1099 = vpop.f32.mrb[0].mxu0
    %v1100 = vadd.f32 0.0, %v1099
    %v1101 = vpop.f32.mrb[0].mxu0
    %v1102 = vpop.f32.mrb[0].mxu0
    %v1103 = vadd.f32 0.0, %v1102
    %v1104 = vpop.f32.mrb[0].mxu0
    %1105 = vmatprep.mubr.bf16.mxu0 0
    %1106 = vmatmul.mubr.bf16.gmra.mrb[0].mxu0 %v1020
    %v1107 = vpop.f32.mrb[0].mxu0
    %v1108 = vadd.f32 0.0, %v1107
    %v1109 = vpop.f32.mrb[0].mxu0
    %v1110 = vpop.f32.mrb[0].mxu0
    %v1111 = vadd.f32 0.0, %v1110
    %v1112 = vpop.f32.mrb[0].mxu0
    %1113 = vmatprep.mubr.bf16.mxu0 0
    %1114 = vmatmul.mubr.bf16.gmra.mrb[0].mxu0 %v1023
    %v1115 = vpop.f32.mrb[0].mxu0
    %v1116 = vadd.f32 0.0, %v1115
    %v1117 = vpop.f32.mrb[0].mxu0
    %v1118 = vpop.f32.mrb[0].mxu0
    %v1119 = vadd.f32 0.0, %v1118
    %v1120 = vpop.f32.mrb[0].mxu0
    %1121 = vdwg.mxu0
    %v1122 = vadd.f32 %v944, %v1060
    %v1123 = vadd.f32 %v945, %v1063
    %v1124 = vadd.f32 %v946, %v1068
    %v1125 = vadd.f32 %v947, %v1071
    %v1126 = vadd.f32 %v948, %v1076
    %v1127 = vadd.f32 %v949, %v1079
    %v1128 = vadd.f32 %v950, %v1084
    %v1129 = vadd.f32 %v951, %v1087
    %v1130 = vadd.f32 %v952, %v1092
    %v1131 = vadd.f32 %v953, %v1095
    %v1132 = vadd.f32 %v954, %v1100
    %v1133 = vadd.f32 %v955, %v1103
    %v1134 = vadd.f32 %v956, %v1108
    %v1135 = vadd.f32 %v957, %v1111
    %v1136 = vadd.f32 %v958, %v1116
    %v1137 = vadd.f32 %v959, %v1119
    %s1138 = scalar_lea.vmem [#allocation2], 32
    %v1139 = vld [vmem:[%s1138] sm:$0xff]
    %v1140 = vld [vmem:[%s1138 + $0x10] sm:$0xff]
    %v1141 = vld [vmem:[%s1138 + $0x20] sm:$0xff]
    %v1142 = vld [vmem:[%s1138 + $0x30] sm:$0xff]
    %v1143 = vld [vmem:[%s1138 + $0x40] sm:$0xff]
    %v1144 = vld [vmem:[%s1138 + $0x50] sm:$0xff]
    %v1145 = vld [vmem:[%s1138 + $0x60] sm:$0xff]
    %v1146 = vld [vmem:[%s1138 + $0x70] sm:$0xff]
    %v1147 = vld [vmem:[%s1138 + $0xa0] sm:$0xff]
    %v1148 = vld [vmem:[%s1138 + $0xb0] sm:$0xff]
    %v1149 = vld [vmem:[%s1138 + $0xc0] sm:$0xff]
    %v1150 = vld [vmem:[%s1138 + $0xd0] sm:$0xff]
    %v1151 = vld [vmem:[%s1138 + $0xe0] sm:$0xff]
    %v1152 = vld [vmem:[%s1138 + $0xf0] sm:$0xff]
    %v1153 = vld [vmem:[%s1138 + $0x100] sm:$0xff]
    %v1154 = vld [vmem:[%s1138 + $0x110] sm:$0xff]
    %v1155 = vpack.c.bf16 %v1140, %v1139
    %v1156 = vpack.c.bf16 %v1142, %v1141
    %v1157 = vpack.c.bf16 %v1144, %v1143
    %v1158 = vpack.c.bf16 %v1146, %v1145
    %v1159 = vpack.c.bf16 %v1148, %v1147
    %v1160 = vpack.c.bf16 %v1150, %v1149
    %v1161 = vpack.c.bf16 %v1152, %v1151
    %v1162 = vpack.c.bf16 %v1154, %v1153
    %s1163 = scalar_lea.vmem %s1, 96
    %v1164 = vld [vmem:[%s1163] sm:$0xf]
    %v1165 = vld [vmem:[%s1163 + $0x4] sm:$0xf]
    %v1166 = vld [vmem:[%s1163 + $0x8] sm:$0xf]
    %v1167 = vld [vmem:[%s1163 + $0xc] sm:$0xf]
    %v1172 = vunpack.c.l.b16 %v1164
    %v1173 = vunpack.c.l.b16 %v1165
    %v1174 = vunpack.c.l.b16 %v1166
    %v1175 = vunpack.c.l.b16 %v1167
    %v1176 = vpack.c.b16 %v1173, %v1172
    %v1177 = vpack.c.b16 %v1175, %v1174
    %v1181 = vsel %vm28, %v1155, 0
    %v1184 = vsel %vm28, %v1156, 0
    %v1187 = vsel %vm28, %v1157, 0
    %v1190 = vsel %vm28, %v1158, 0
    %v1193 = vsel %vm28, %v1159, 0
    %v1196 = vsel %vm28, %v1160, 0
    %v1199 = vsel %vm28, %v1161, 0
    %v1202 = vsel %vm28, %v1162, 0
    %1204 = vmatprep.subr.bf16.mxu0 0
    %1205 = vmatpush1.bf16.msra.mxu0 %v1176
    %1206 = vmatprep.subr.bf16.mxu0 0
    %1207 = vmatpush1.bf16.msra.mxu0 %v1177
    %1208 = vmatprep.subr.bf16.mxu0 0
    %1209 = vmatpush1.bf16.msra.mxu0 0
    %1210 = vmatprep.subr.bf16.mxu0 0
    %1211 = vmatpush1.bf16.msra.mxu0 0
    %1212 = vmatprep.subr.bf16.mxu0 0
    %1213 = vmatpush1.bf16.msra.mxu0 0
    %1214 = vmatprep.subr.bf16.mxu0 0
    %1215 = vmatpush1.bf16.msra.mxu0 0
    %1216 = vmatprep.subr.bf16.mxu0 0
    %1217 = vmatpush1.bf16.msra.mxu0 0
    %1218 = vmatprep.subr.bf16.mxu0 0
    %1219 = vmatpush1.bf16.msra.mxu0 0
    %1220 = vmatprep.subr.bf16.mxu0 0
    %1221 = vmatpush1.bf16.msra.mxu0 0
    %1222 = vmatprep.subr.bf16.mxu0 0
    %1223 = vmatpush1.bf16.msra.mxu0 0
    %1224 = vmatprep.subr.bf16.mxu0 0
    %1225 = vmatpush1.bf16.msra.mxu0 0
    %1226 = vmatprep.subr.bf16.mxu0 0
    %1227 = vmatpush1.bf16.msra.mxu0 0
    %1228 = vmatprep.subr.bf16.mxu0 0
    %1229 = vmatpush1.bf16.msra.mxu0 0
    %1230 = vmatprep.subr.bf16.mxu0 0
    %1231 = vmatpush1.bf16.msra.mxu0 0
    %1232 = vmatprep.subr.bf16.mxu0 0
    %1233 = vmatpush1.bf16.msra.mxu0 0
    %1234 = vmatprep.subr.bf16.mxu0 0
    %1235 = vmatpush1.bf16.msra.mxu0 0
    %1236 = vmatprep.mubr.bf16.mxu0 0
    %1237 = vmatmul.mubr.bf16.gmra.mrb[0].mxu0 %v1181
    %v1238 = vpop.f32.mrb[0].mxu0
    %v1239 = vadd.f32 0.0, %v1238
    %v1240 = vpop.f32.mrb[0].mxu0
    %v1241 = vpop.f32.mrb[0].mxu0
    %v1242 = vadd.f32 0.0, %v1241
    %v1243 = vpop.f32.mrb[0].mxu0
    %1244 = vmatprep.mubr.bf16.mxu0 0
    %1245 = vmatmul.mubr.bf16.gmra.mrb[0].mxu0 %v1184
    %v1246 = vpop.f32.mrb[0].mxu0
    %v1247 = vadd.f32 0.0, %v1246
    %v1248 = vpop.f32.mrb[0].mxu0
    %v1249 = vpop.f32.mrb[0].mxu0
    %v1250 = vadd.f32 0.0, %v1249
    %v1251 = vpop.f32.mrb[0].mxu0
    %1252 = vmatprep.mubr.bf16.mxu0 0
    %1253 = vmatmul.mubr.bf16.gmra.mrb[0].mxu0 %v1187
    %v1254 = vpop.f32.mrb[0].mxu0
    %v1255 = vadd.f32 0.0, %v1254
    %v1256 = vpop.f32.mrb[0].mxu0
    %v1257 = vpop.f32.mrb[0].mxu0
    %v1258 = vadd.f32 0.0, %v1257
    %v1259 = vpop.f32.mrb[0].mxu0
    %1260 = vmatprep.mubr.bf16.mxu0 0
    %1261 = vmatmul.mubr.bf16.gmra.mrb[0].mxu0 %v1190
    %v1262 = vpop.f32.mrb[0].mxu0
    %v1263 = vadd.f32 0.0, %v1262
    %v1264 = vpop.f32.mrb[0].mxu0
    %v1265 = vpop.f32.mrb[0].mxu0
    %v1266 = vadd.f32 0.0, %v1265
    %v1267 = vpop.f32.mrb[0].mxu0
    %1268 = vmatprep.mubr.bf16.mxu0 0
    %1269 = vmatmul.mubr.bf16.gmra.mrb[0].mxu0 %v1193
    %v1270 = vpop.f32.mrb[0].mxu0
    %v1271 = vadd.f32 0.0, %v1270
    %v1272 = vpop.f32.mrb[0].mxu0
    %v1273 = vpop.f32.mrb[0].mxu0
    %v1274 = vadd.f32 0.0, %v1273
    %v1275 = vpop.f32.mrb[0].mxu0
    %1276 = vmatprep.mubr.bf16.mxu0 0
    %1277 = vmatmul.mubr.bf16.gmra.mrb[0].mxu0 %v1196
    %v1278 = vpop.f32.mrb[0].mxu0
    %v1279 = vadd.f32 0.0, %v1278
    %v1280 = vpop.f32.mrb[0].mxu0
    %v1281 = vpop.f32.mrb[0].mxu0
    %v1282 = vadd.f32 0.0, %v1281
    %v1283 = vpop.f32.mrb[0].mxu0
    %1284 = vmatprep.mubr.bf16.mxu0 0
    %1285 = vmatmul.mubr.bf16.gmra.mrb[0].mxu0 %v1199
    %v1286 = vpop.f32.mrb[0].mxu0
    %v1287 = vadd.f32 0.0, %v1286
    %v1288 = vpop.f32.mrb[0].mxu0
    %v1289 = vpop.f32.mrb[0].mxu0
    %v1290 = vadd.f32 0.0, %v1289
    %v1291 = vpop.f32.mrb[0].mxu0
    %1292 = vmatprep.mubr.bf16.mxu0 0
    %1293 = vmatmul.mubr.bf16.gmra.mrb[0].mxu0 %v1202
    %v1294 = vpop.f32.mrb[0].mxu0
    %v1295 = vadd.f32 0.0, %v1294
    %v1296 = vpop.f32.mrb[0].mxu0
    %v1297 = vpop.f32.mrb[0].mxu0
    %v1298 = vadd.f32 0.0, %v1297
    %v1299 = vpop.f32.mrb[0].mxu0
    %1300 = vdwg.mxu0
    %v1301 = vadd.f32 %v1122, %v1239
    %v1302 = vadd.f32 %v1123, %v1242
    %v1303 = vadd.f32 %v1124, %v1247
    %v1304 = vadd.f32 %v1125, %v1250
    %v1305 = vadd.f32 %v1126, %v1255
    %v1306 = vadd.f32 %v1127, %v1258
    %v1307 = vadd.f32 %v1128, %v1263
    %v1308 = vadd.f32 %v1129, %v1266
    %v1309 = vadd.f32 %v1130, %v1271
    %v1310 = vadd.f32 %v1131, %v1274
    %v1311 = vadd.f32 %v1132, %v1279
    %v1312 = vadd.f32 %v1133, %v1282
    %v1313 = vadd.f32 %v1134, %v1287
    %v1314 = vadd.f32 %v1135, %v1290
    %v1315 = vadd.f32 %v1136, %v1295
    %v1316 = vadd.f32 %v1137, %v1298
    %v1317 = vld [vmem:[%s1138 + $0x1] sm:$0xff]
    %v1318 = vld [vmem:[%s1138 + $0x11] sm:$0xff]
    %v1319 = vld [vmem:[%s1138 + $0x21] sm:$0xff]
    %v1320 = vld [vmem:[%s1138 + $0x31] sm:$0xff]
    %v1321 = vld [vmem:[%s1138 + $0x41] sm:$0xff]
    %v1322 = vld [vmem:[%s1138 + $0x51] sm:$0xff]
    %v1323 = vld [vmem:[%s1138 + $0x61] sm:$0xff]
    %v1324 = vld [vmem:[%s1138 + $0x71] sm:$0xff]
    %v1325 = vld [vmem:[%s1138 + $0xa1] sm:$0xff]
    %v1326 = vld [vmem:[%s1138 + $0xb1] sm:$0xff]
    %v1327 = vld [vmem:[%s1138 + $0xc1] sm:$0xff]
    %v1328 = vld [vmem:[%s1138 + $0xd1] sm:$0xff]
    %v1329 = vld [vmem:[%s1138 + $0xe1] sm:$0xff]
    %v1330 = vld [vmem:[%s1138 + $0xf1] sm:$0xff]
    %v1331 = vld [vmem:[%s1138 + $0x101] sm:$0xff]
    %v1332 = vld [vmem:[%s1138 + $0x111] sm:$0xff]
    %v1333 = vpack.c.bf16 %v1318, %v1317
    %v1334 = vpack.c.bf16 %v1320, %v1319
    %v1335 = vpack.c.bf16 %v1322, %v1321
    %v1336 = vpack.c.bf16 %v1324, %v1323
    %v1337 = vpack.c.bf16 %v1326, %v1325
    %v1338 = vpack.c.bf16 %v1328, %v1327
    %v1339 = vpack.c.bf16 %v1330, %v1329
    %v1340 = vpack.c.bf16 %v1332, %v1331
    %s1341 = scalar_lea.vmem %s1, 112
    %v1342 = vld [vmem:[%s1341] sm:$0xf]
    %v1343 = vld [vmem:[%s1341 + $0x4] sm:$0xf]
    %v1344 = vld [vmem:[%s1341 + $0x8] sm:$0xf]
    %v1345 = vld [vmem:[%s1341 + $0xc] sm:$0xf]
    %v1350 = vunpack.c.l.b16 %v1342
    %v1351 = vunpack.c.l.b16 %v1343
    %v1352 = vunpack.c.l.b16 %v1344
    %v1353 = vunpack.c.l.b16 %v1345
    %v1354 = vpack.c.b16 %v1351, %v1350
    %v1355 = vpack.c.b16 %v1353, %v1352
    %v1359 = vsel %vm28, %v1333, 0
    %v1362 = vsel %vm28, %v1334, 0
    %v1365 = vsel %vm28, %v1335, 0
    %v1368 = vsel %vm28, %v1336, 0
    %v1371 = vsel %vm28, %v1337, 0
    %v1374 = vsel %vm28, %v1338, 0
    %v1377 = vsel %vm28, %v1339, 0
    %v1380 = vsel %vm28, %v1340, 0
    %1382 = vmatprep.subr.bf16.mxu0 0
    %1383 = vmatpush1.bf16.msra.mxu0 %v1354
    %1384 = vmatprep.subr.bf16.mxu0 0
    %1385 = vmatpush1.bf16.msra.mxu0 %v1355
    %1386 = vmatprep.subr.bf16.mxu0 0
    %1387 = vmatpush1.bf16.msra.mxu0 0
    %1388 = vmatprep.subr.bf16.mxu0 0
    %1389 = vmatpush1.bf16.msra.mxu0 0
    %1390 = vmatprep.subr.bf16.mxu0 0
    %1391 = vmatpush1.bf16.msra.mxu0 0
    %1392 = vmatprep.subr.bf16.mxu0 0
    %1393 = vmatpush1.bf16.msra.mxu0 0
    %1394 = vmatprep.subr.bf16.mxu0 0
    %1395 = vmatpush1.bf16.msra.mxu0 0
    %1396 = vmatprep.subr.bf16.mxu0 0
    %1397 = vmatpush1.bf16.msra.mxu0 0
    %1398 = vmatprep.subr.bf16.mxu0 0
    %1399 = vmatpush1.bf16.msra.mxu0 0
    %1400 = vmatprep.subr.bf16.mxu0 0
    %1401 = vmatpush1.bf16.msra.mxu0 0
    %1402 = vmatprep.subr.bf16.mxu0 0
    %1403 = vmatpush1.bf16.msra.mxu0 0
    %1404 = vmatprep.subr.bf16.mxu0 0
    %1405 = vmatpush1.bf16.msra.mxu0 0
    %1406 = vmatprep.subr.bf16.mxu0 0
    %1407 = vmatpush1.bf16.msra.mxu0 0
    %1408 = vmatprep.subr.bf16.mxu0 0
    %1409 = vmatpush1.bf16.msra.mxu0 0
    %1410 = vmatprep.subr.bf16.mxu0 0
    %1411 = vmatpush1.bf16.msra.mxu0 0
    %1412 = vmatprep.subr.bf16.mxu0 0
    %1413 = vmatpush1.bf16.msra.mxu0 0
    %1414 = vmatprep.mubr.bf16.mxu0 0
    %1415 = vmatmul.mubr.bf16.gmra.mrb[0].mxu0 %v1359
    %v1416 = vpop.f32.mrb[0].mxu0
    %v1417 = vadd.f32 0.0, %v1416
    %v1418 = vpop.f32.mrb[0].mxu0
    %v1419 = vpop.f32.mrb[0].mxu0
    %v1420 = vadd.f32 0.0, %v1419
    %v1421 = vpop.f32.mrb[0].mxu0
    %1422 = vmatprep.mubr.bf16.mxu0 0
    %1423 = vmatmul.mubr.bf16.gmra.mrb[0].mxu0 %v1362
    %v1424 = vpop.f32.mrb[0].mxu0
    %v1425 = vadd.f32 0.0, %v1424
    %v1426 = vpop.f32.mrb[0].mxu0
    %v1427 = vpop.f32.mrb[0].mxu0
    %v1428 = vadd.f32 0.0, %v1427
    %v1429 = vpop.f32.mrb[0].mxu0
    %1430 = vmatprep.mubr.bf16.mxu0 0
    %1431 = vmatmul.mubr.bf16.gmra.mrb[0].mxu0 %v1365
    %v1432 = vpop.f32.mrb[0].mxu0
    %v1433 = vadd.f32 0.0, %v1432
    %v1434 = vpop.f32.mrb[0].mxu0
    %v1435 = vpop.f32.mrb[0].mxu0
    %v1436 = vadd.f32 0.0, %v1435
    %v1437 = vpop.f32.mrb[0].mxu0
    %1438 = vmatprep.mubr.bf16.mxu0 0
    %1439 = vmatmul.mubr.bf16.gmra.mrb[0].mxu0 %v1368
    %v1440 = vpop.f32.mrb[0].mxu0
    %v1441 = vadd.f32 0.0, %v1440
    %v1442 = vpop.f32.mrb[0].mxu0
    %v1443 = vpop.f32.mrb[0].mxu0
    %v1444 = vadd.f32 0.0, %v1443
    %v1445 = vpop.f32.mrb[0].mxu0
    %1446 = vmatprep.mubr.bf16.mxu0 0
    %1447 = vmatmul.mubr.bf16.gmra.mrb[0].mxu0 %v1371
    %v1448 = vpop.f32.mrb[0].mxu0
    %v1449 = vadd.f32 0.0, %v1448
    %v1450 = vpop.f32.mrb[0].mxu0
    %v1451 = vpop.f32.mrb[0].mxu0
    %v1452 = vadd.f32 0.0, %v1451
    %v1453 = vpop.f32.mrb[0].mxu0
    %1454 = vmatprep.mubr.bf16.mxu0 0
    %1455 = vmatmul.mubr.bf16.gmra.mrb[0].mxu0 %v1374
    %v1456 = vpop.f32.mrb[0].mxu0
    %v1457 = vadd.f32 0.0, %v1456
    %v1458 = vpop.f32.mrb[0].mxu0
    %v1459 = vpop.f32.mrb[0].mxu0
    %v1460 = vadd.f32 0.0, %v1459
    %v1461 = vpop.f32.mrb[0].mxu0
    %1462 = vmatprep.mubr.bf16.mxu0 0
    %1463 = vmatmul.mubr.bf16.gmra.mrb[0].mxu0 %v1377
    %v1464 = vpop.f32.mrb[0].mxu0
    %v1465 = vadd.f32 0.0, %v1464
    %v1466 = vpop.f32.mrb[0].mxu0
    %v1467 = vpop.f32.mrb[0].mxu0
    %v1468 = vadd.f32 0.0, %v1467
    %v1469 = vpop.f32.mrb[0].mxu0
    %1470 = vmatprep.mubr.bf16.mxu0 0
    %1471 = vmatmul.mubr.bf16.gmra.mrb[0].mxu0 %v1380
    %v1472 = vpop.f32.mrb[0].mxu0
    %v1473 = vadd.f32 0.0, %v1472
    %v1474 = vpop.f32.mrb[0].mxu0
    %v1475 = vpop.f32.mrb[0].mxu0
    %v1476 = vadd.f32 0.0, %v1475
    %v1477 = vpop.f32.mrb[0].mxu0
    %1478 = vdwg.mxu0
    %v1479 = vadd.f32 %v1301, %v1417
    %v1480 = vadd.f32 %v1302, %v1420
    %v1481 = vadd.f32 %v1303, %v1425
    %v1482 = vadd.f32 %v1304, %v1428
    %v1483 = vadd.f32 %v1305, %v1433
    %v1484 = vadd.f32 %v1306, %v1436
    %v1485 = vadd.f32 %v1307, %v1441
    %v1486 = vadd.f32 %v1308, %v1444
    %v1487 = vadd.f32 %v1309, %v1449
    %v1488 = vadd.f32 %v1310, %v1452
    %v1489 = vadd.f32 %v1311, %v1457
    %v1490 = vadd.f32 %v1312, %v1460
    %v1491 = vadd.f32 %v1313, %v1465
    %v1492 = vadd.f32 %v1314, %v1468
    %v1493 = vadd.f32 %v1315, %v1473
    %v1494 = vadd.f32 %v1316, %v1476
    %v1495 = vld [vmem:[%s1138 + $0x2] sm:$0xff]
    %v1496 = vld [vmem:[%s1138 + $0x12] sm:$0xff]
    %v1497 = vld [vmem:[%s1138 + $0x22] sm:$0xff]
    %v1498 = vld [vmem:[%s1138 + $0x32] sm:$0xff]
    %v1499 = vld [vmem:[%s1138 + $0x42] sm:$0xff]
    %v1500 = vld [vmem:[%s1138 + $0x52] sm:$0xff]
    %v1501 = vld [vmem:[%s1138 + $0x62] sm:$0xff]
    %v1502 = vld [vmem:[%s1138 + $0x72] sm:$0xff]
    %v1503 = vld [vmem:[%s1138 + $0xa2] sm:$0xff]
    %v1504 = vld [vmem:[%s1138 + $0xb2] sm:$0xff]
    %v1505 = vld [vmem:[%s1138 + $0xc2] sm:$0xff]
    %v1506 = vld [vmem:[%s1138 + $0xd2] sm:$0xff]
    %v1507 = vld [vmem:[%s1138 + $0xe2] sm:$0xff]
    %v1508 = vld [vmem:[%s1138 + $0xf2] sm:$0xff]
    %v1509 = vld [vmem:[%s1138 + $0x102] sm:$0xff]
    %v1510 = vld [vmem:[%s1138 + $0x112] sm:$0xff]
    %v1511 = vpack.c.bf16 %v1496, %v1495
    %v1512 = vpack.c.bf16 %v1498, %v1497
    %v1513 = vpack.c.bf16 %v1500, %v1499
    %v1514 = vpack.c.bf16 %v1502, %v1501
    %v1515 = vpack.c.bf16 %v1504, %v1503
    %v1516 = vpack.c.bf16 %v1506, %v1505
    %v1517 = vpack.c.bf16 %v1508, %v1507
    %v1518 = vpack.c.bf16 %v1510, %v1509
    %s1519 = scalar_lea.vmem %s1, 128
    %v1520 = vld [vmem:[%s1519] sm:$0xf]
    %v1521 = vld [vmem:[%s1519 + $0x4] sm:$0xf]
    %v1522 = vld [vmem:[%s1519 + $0x8] sm:$0xf]
    %v1523 = vld [vmem:[%s1519 + $0xc] sm:$0xf]
    %v1528 = vunpack.c.l.b16 %v1520
    %v1529 = vunpack.c.l.b16 %v1521
    %v1530 = vunpack.c.l.b16 %v1522
    %v1531 = vunpack.c.l.b16 %v1523
    %v1532 = vpack.c.b16 %v1529, %v1528
    %v1533 = vpack.c.b16 %v1531, %v1530
    %v1537 = vsel %vm28, %v1511, 0
    %v1540 = vsel %vm28, %v1512, 0
    %v1543 = vsel %vm28, %v1513, 0
    %v1546 = vsel %vm28, %v1514, 0
    %v1549 = vsel %vm28, %v1515, 0
    %v1552 = vsel %vm28, %v1516, 0
    %v1555 = vsel %vm28, %v1517, 0
    %v1558 = vsel %vm28, %v1518, 0
    %1560 = vmatprep.subr.bf16.mxu0 0
    %1561 = vmatpush1.bf16.msra.mxu0 %v1532
    %1562 = vmatprep.subr.bf16.mxu0 0
    %1563 = vmatpush1.bf16.msra.mxu0 %v1533
    %1564 = vmatprep.subr.bf16.mxu0 0
    %1565 = vmatpush1.bf16.msra.mxu0 0
    %1566 = vmatprep.subr.bf16.mxu0 0
    %1567 = vmatpush1.bf16.msra.mxu0 0
    %1568 = vmatprep.subr.bf16.mxu0 0
    %1569 = vmatpush1.bf16.msra.mxu0 0
    %1570 = vmatprep.subr.bf16.mxu0 0
    %1571 = vmatpush1.bf16.msra.mxu0 0
    %1572 = vmatprep.subr.bf16.mxu0 0
    %1573 = vmatpush1.bf16.msra.mxu0 0
    %1574 = vmatprep.subr.bf16.mxu0 0
    %1575 = vmatpush1.bf16.msra.mxu0 0
    %1576 = vmatprep.subr.bf16.mxu0 0
    %1577 = vmatpush1.bf16.msra.mxu0 0
    %1578 = vmatprep.subr.bf16.mxu0 0
    %1579 = vmatpush1.bf16.msra.mxu0 0
    %1580 = vmatprep.subr.bf16.mxu0 0
    %1581 = vmatpush1.bf16.msra.mxu0 0
    %1582 = vmatprep.subr.bf16.mxu0 0
    %1583 = vmatpush1.bf16.msra.mxu0 0
    %1584 = vmatprep.subr.bf16.mxu0 0
    %1585 = vmatpush1.bf16.msra.mxu0 0
    %1586 = vmatprep.subr.bf16.mxu0 0
    %1587 = vmatpush1.bf16.msra.mxu0 0
    %1588 = vmatprep.subr.bf16.mxu0 0
    %1589 = vmatpush1.bf16.msra.mxu0 0
    %1590 = vmatprep.subr.bf16.mxu0 0
    %1591 = vmatpush1.bf16.msra.mxu0 0
    %1592 = vmatprep.mubr.bf16.mxu0 0
    %1593 = vmatmul.mubr.bf16.gmra.mrb[0].mxu0 %v1537
    %v1594 = vpop.f32.mrb[0].mxu0
    %v1595 = vadd.f32 0.0, %v1594
    %v1596 = vpop.f32.mrb[0].mxu0
    %v1597 = vpop.f32.mrb[0].mxu0
    %v1598 = vadd.f32 0.0, %v1597
    %v1599 = vpop.f32.mrb[0].mxu0
    %1600 = vmatprep.mubr.bf16.mxu0 0
    %1601 = vmatmul.mubr.bf16.gmra.mrb[0].mxu0 %v1540
    %v1602 = vpop.f32.mrb[0].mxu0
    %v1603 = vadd.f32 0.0, %v1602
    %v1604 = vpop.f32.mrb[0].mxu0
    %v1605 = vpop.f32.mrb[0].mxu0
    %v1606 = vadd.f32 0.0, %v1605
    %v1607 = vpop.f32.mrb[0].mxu0
    %1608 = vmatprep.mubr.bf16.mxu0 0
    %1609 = vmatmul.mubr.bf16.gmra.mrb[0].mxu0 %v1543
    %v1610 = vpop.f32.mrb[0].mxu0
    %v1611 = vadd.f32 0.0, %v1610
    %v1612 = vpop.f32.mrb[0].mxu0
    %v1613 = vpop.f32.mrb[0].mxu0
    %v1614 = vadd.f32 0.0, %v1613
    %v1615 = vpop.f32.mrb[0].mxu0
    %1616 = vmatprep.mubr.bf16.mxu0 0
    %1617 = vmatmul.mubr.bf16.gmra.mrb[0].mxu0 %v1546
    %v1618 = vpop.f32.mrb[0].mxu0
    %v1619 = vadd.f32 0.0, %v1618
    %v1620 = vpop.f32.mrb[0].mxu0
    %v1621 = vpop.f32.mrb[0].mxu0
    %v1622 = vadd.f32 0.0, %v1621
    %v1623 = vpop.f32.mrb[0].mxu0
    %1624 = vmatprep.mubr.bf16.mxu0 0
    %1625 = vmatmul.mubr.bf16.gmra.mrb[0].mxu0 %v1549
    %v1626 = vpop.f32.mrb[0].mxu0
    %v1627 = vadd.f32 0.0, %v1626
    %v1628 = vpop.f32.mrb[0].mxu0
    %v1629 = vpop.f32.mrb[0].mxu0
    %v1630 = vadd.f32 0.0, %v1629
    %v1631 = vpop.f32.mrb[0].mxu0
    %1632 = vmatprep.mubr.bf16.mxu0 0
    %1633 = vmatmul.mubr.bf16.gmra.mrb[0].mxu0 %v1552
    %v1634 = vpop.f32.mrb[0].mxu0
    %v1635 = vadd.f32 0.0, %v1634
    %v1636 = vpop.f32.mrb[0].mxu0
    %v1637 = vpop.f32.mrb[0].mxu0
    %v1638 = vadd.f32 0.0, %v1637
    %v1639 = vpop.f32.mrb[0].mxu0
    %1640 = vmatprep.mubr.bf16.mxu0 0
    %1641 = vmatmul.mubr.bf16.gmra.mrb[0].mxu0 %v1555
    %v1642 = vpop.f32.mrb[0].mxu0
    %v1643 = vadd.f32 0.0, %v1642
    %v1644 = vpop.f32.mrb[0].mxu0
    %v1645 = vpop.f32.mrb[0].mxu0
    %v1646 = vadd.f32 0.0, %v1645
    %v1647 = vpop.f32.mrb[0].mxu0
    %1648 = vmatprep.mubr.bf16.mxu0 0
    %1649 = vmatmul.mubr.bf16.gmra.mrb[0].mxu0 %v1558
    %v1650 = vpop.f32.mrb[0].mxu0
    %v1651 = vadd.f32 0.0, %v1650
    %v1652 = vpop.f32.mrb[0].mxu0
    %v1653 = vpop.f32.mrb[0].mxu0
    %v1654 = vadd.f32 0.0, %v1653
    %v1655 = vpop.f32.mrb[0].mxu0
    %1656 = vdwg.mxu0
    %v1657 = vadd.f32 %v1479, %v1595
    %v1658 = vadd.f32 %v1480, %v1598
    %v1659 = vadd.f32 %v1481, %v1603
    %v1660 = vadd.f32 %v1482, %v1606
    %v1661 = vadd.f32 %v1483, %v1611
    %v1662 = vadd.f32 %v1484, %v1614
    %v1663 = vadd.f32 %v1485, %v1619
    %v1664 = vadd.f32 %v1486, %v1622
    %v1665 = vadd.f32 %v1487, %v1627
    %v1666 = vadd.f32 %v1488, %v1630
    %v1667 = vadd.f32 %v1489, %v1635
    %v1668 = vadd.f32 %v1490, %v1638
    %v1669 = vadd.f32 %v1491, %v1643
    %v1670 = vadd.f32 %v1492, %v1646
    %v1671 = vadd.f32 %v1493, %v1651
    %v1672 = vadd.f32 %v1494, %v1654
    %vm1673 = vcmask 523264
    %v1674 = vsel %vm1673, %v1657, 0.0
    %v1675 = vsel %vm1673, %v1658, 0.0
    %v1676 = vadd.f32 %v1674, %v1675
    %v1677 = vsel %vm1673, %v1659, 0.0
    %v1678 = vadd.f32 %v1676, %v1677
    %v1679 = vsel %vm1673, %v1660, 0.0
    %v1680 = vadd.f32 %v1678, %v1679
    %v1681 = vsel %vm1673, %v1661, 0.0
    %v1682 = vadd.f32 %v1680, %v1681
    %v1683 = vsel %vm1673, %v1662, 0.0
    %v1684 = vadd.f32 %v1682, %v1683
    %v1685 = vsel %vm1673, %v1663, 0.0
    %v1686 = vadd.f32 %v1684, %v1685
    %v1687 = vsel %vm1673, %v1664, 0.0
    %v1688 = vadd.f32 %v1686, %v1687
    %v1689 = vsel %vm1673, %v1665, 0.0
    %v1690 = vadd.f32 %v1688, %v1689
    %v1691 = vsel %vm1673, %v1666, 0.0
    %v1692 = vadd.f32 %v1690, %v1691
    %v1693 = vsel %vm1673, %v1667, 0.0
    %v1694 = vadd.f32 %v1692, %v1693
    %v1695 = vsel %vm1673, %v1668, 0.0
    %v1696 = vadd.f32 %v1694, %v1695
    %v1697 = vsel %vm1673, %v1669, 0.0
    %v1698 = vadd.f32 %v1696, %v1697
    %v1699 = vsel %vm1673, %v1670, 0.0
    %v1700 = vadd.f32 %v1698, %v1699
    %v1701 = vsel %vm1673, %v1671, 0.0
    %v1702 = vadd.f32 %v1700, %v1701
    %v1703 = vsel %vm1673, %v1672, 0.0
    %v1704 = vadd.f32 %v1702, %v1703
    %v1705 = vrot.slane %v1704, 4
    %v1706 = vadd.f32 %v1704, %v1705
    %v1707 = vrot.slane %v1706, 2
    %v1708 = vadd.f32 %v1706, %v1707
    %v1709 = vrot.slane %v1708, 1
    %v1710 = vadd.f32 %v1708, %v1709
    %v1711 = vrcp.pop 128.0
    %v1712 = vmul.f32 %v1710, %v1711
    %v1713 = vsub.f32 %v1657, %v1712
    %v1714 = vsub.f32 %v1658, %v1712
    %v1715 = vsub.f32 %v1659, %v1712
    %v1716 = vsub.f32 %v1660, %v1712
    %v1717 = vsub.f32 %v1661, %v1712
    %v1718 = vsub.f32 %v1662, %v1712
    %v1719 = vsub.f32 %v1663, %v1712
    %v1720 = vsub.f32 %v1664, %v1712
    %v1721 = vsub.f32 %v1665, %v1712
    %v1722 = vsub.f32 %v1666, %v1712
    %v1723 = vsub.f32 %v1667, %v1712
    %v1724 = vsub.f32 %v1668, %v1712
    %v1725 = vsub.f32 %v1669, %v1712
    %v1726 = vsub.f32 %v1670, %v1712
    %v1727 = vsub.f32 %v1671, %v1712
    %v1728 = vsub.f32 %v1672, %v1712
    %v1729 = vmul.f32 %v1713, %v1713
    %v1730 = vmul.f32 %v1714, %v1714
    %v1731 = vmul.f32 %v1715, %v1715
    %v1732 = vmul.f32 %v1716, %v1716
    %v1733 = vmul.f32 %v1717, %v1717
    %v1734 = vmul.f32 %v1718, %v1718
    %v1735 = vmul.f32 %v1719, %v1719
    %v1736 = vmul.f32 %v1720, %v1720
    %v1737 = vmul.f32 %v1721, %v1721
    %v1738 = vmul.f32 %v1722, %v1722
    %v1739 = vmul.f32 %v1723, %v1723
    %v1740 = vmul.f32 %v1724, %v1724
    %v1741 = vmul.f32 %v1725, %v1725
    %v1742 = vmul.f32 %v1726, %v1726
    %v1743 = vmul.f32 %v1727, %v1727
    %v1744 = vmul.f32 %v1728, %v1728
    %v1745 = vsel %vm1673, %v1729, 0.0
    %v1746 = vsel %vm1673, %v1730, 0.0
    %v1747 = vadd.f32 %v1745, %v1746
    %v1748 = vsel %vm1673, %v1731, 0.0
    %v1749 = vadd.f32 %v1747, %v1748
    %v1750 = vsel %vm1673, %v1732, 0.0
    %v1751 = vadd.f32 %v1749, %v1750
    %v1752 = vsel %vm1673, %v1733, 0.0
    %v1753 = vadd.f32 %v1751, %v1752
    %v1754 = vsel %vm1673, %v1734, 0.0
    %v1755 = vadd.f32 %v1753, %v1754
    %v1756 = vsel %vm1673, %v1735, 0.0
    %v1757 = vadd.f32 %v1755, %v1756
    %v1758 = vsel %vm1673, %v1736, 0.0
    %v1759 = vadd.f32 %v1757, %v1758
    %v1760 = vsel %vm1673, %v1737, 0.0
    %v1761 = vadd.f32 %v1759, %v1760
    %v1762 = vsel %vm1673, %v1738, 0.0
    %v1763 = vadd.f32 %v1761, %v1762
    %v1764 = vsel %vm1673, %v1739, 0.0
    %v1765 = vadd.f32 %v1763, %v1764
    %v1766 = vsel %vm1673, %v1740, 0.0
    %v1767 = vadd.f32 %v1765, %v1766
    %v1768 = vsel %vm1673, %v1741, 0.0
    %v1769 = vadd.f32 %v1767, %v1768
    %v1770 = vsel %vm1673, %v1742, 0.0
    %v1771 = vadd.f32 %v1769, %v1770
    %v1772 = vsel %vm1673, %v1743, 0.0
    %v1773 = vadd.f32 %v1771, %v1772
    %v1774 = vsel %vm1673, %v1744, 0.0
    %v1775 = vadd.f32 %v1773, %v1774
    %v1776 = vrot.slane %v1775, 4
    %v1777 = vadd.f32 %v1775, %v1776
    %v1778 = vrot.slane %v1777, 2
    %v1779 = vadd.f32 %v1777, %v1778
    %v1780 = vrot.slane %v1779, 1
    %v1781 = vadd.f32 %v1779, %v1780
    %v1782 = vmul.f32 %v1781, %v1711
    %v1783 = vld [vmem:[%s3] sm:$0x1]
    %v1784 = vadd.f32 %v1782, 1e-05
    %v1785 = vrsqrt.pop %v1784
    %v1786 = vmul.f32 %v1783, %v1785
    %v1787 = vld [vmem:[%s4] sm:$0x1]
    %v1788 = vmul.f32 %v1712, %v1786
    %v1789 = vsub.f32 %v1787, %v1788
    %v1791 = vlaneseq
    %v1792 = vshrl.u32 %v1791, 7
    %v1793 = vsub.s32 0, %v1792
    %v1794 = vrot.slane %v1786, %v1793
    %v1796 = vmul.f32 %v1657, %v1794
    %v1797 = vmul.f32 %v1658, %v1794
    %v1798 = vmul.f32 %v1659, %v1794
    %v1799 = vmul.f32 %v1660, %v1794
    %v1800 = vmul.f32 %v1661, %v1794
    %v1801 = vmul.f32 %v1662, %v1794
    %v1802 = vmul.f32 %v1663, %v1794
    %v1803 = vmul.f32 %v1664, %v1794
    %v1804 = vmul.f32 %v1665, %v1794
    %v1805 = vmul.f32 %v1666, %v1794
    %v1806 = vmul.f32 %v1667, %v1794
    %v1807 = vmul.f32 %v1668, %v1794
    %v1808 = vmul.f32 %v1669, %v1794
    %v1809 = vmul.f32 %v1670, %v1794
    %v1810 = vmul.f32 %v1671, %v1794
    %v1811 = vmul.f32 %v1672, %v1794
    %v1813 = vlaneseq
    %v1814 = vshrl.u32 %v1813, 7
    %v1815 = vsub.s32 0, %v1814
    %v1816 = vrot.slane %v1789, %v1815
    %v1818 = vadd.f32 %v1796, %v1816
    %v1819 = vadd.f32 %v1797, %v1816
    %v1820 = vadd.f32 %v1798, %v1816
    %v1821 = vadd.f32 %v1799, %v1816
    %v1822 = vadd.f32 %v1800, %v1816
    %v1823 = vadd.f32 %v1801, %v1816
    %v1824 = vadd.f32 %v1802, %v1816
    %v1825 = vadd.f32 %v1803, %v1816
    %v1826 = vadd.f32 %v1804, %v1816
    %v1827 = vadd.f32 %v1805, %v1816
    %v1828 = vadd.f32 %v1806, %v1816
    %v1829 = vadd.f32 %v1807, %v1816
    %v1830 = vadd.f32 %v1808, %v1816
    %v1831 = vadd.f32 %v1809, %v1816
    %v1832 = vadd.f32 %v1810, %v1816
    %v1833 = vadd.f32 %v1811, %v1816
    %v1834 = vmax.f32 %v1818, 0.0
    %v1835 = vmax.f32 %v1819, 0.0
    %v1836 = vmax.f32 %v1820, 0.0
    %v1837 = vmax.f32 %v1821, 0.0
    %v1838 = vmax.f32 %v1822, 0.0
    %v1839 = vmax.f32 %v1823, 0.0
    %v1840 = vmax.f32 %v1824, 0.0
    %v1841 = vmax.f32 %v1825, 0.0
    %v1842 = vmax.f32 %v1826, 0.0
    %v1843 = vmax.f32 %v1827, 0.0
    %v1844 = vmax.f32 %v1828, 0.0
    %v1845 = vmax.f32 %v1829, 0.0
    %v1846 = vmax.f32 %v1830, 0.0
    %v1847 = vmax.f32 %v1831, 0.0
    %v1848 = vmax.f32 %v1832, 0.0
    %v1849 = vmax.f32 %v1833, 0.0
    %1850 = vst.msk [vmem:[#allocation3] sm:$0xff] %vm1673, 0.0
    %vm1851 = vcmask 517120
    %1852 = vst.msk [vmem:[#allocation3 + $0x8] sm:$0x3] %vm1851, 0.0
    %1853 = vst.msk [vmem:[#allocation3 + $0x10] sm:$0xff] %vm1673, 0.0
    %1854 = vst.msk [vmem:[#allocation3 + $0x18] sm:$0x3] %vm1851, 0.0
    %1855 = vst.msk [vmem:[#allocation3 + $0x20] sm:$0xff] %vm1673, 0.0
    %1856 = vst.msk [vmem:[#allocation3 + $0x28] sm:$0x3] %vm1851, 0.0
    %1857 = vst.msk [vmem:[#allocation3 + $0x30] sm:$0xff] %vm1673, 0.0
    %1858 = vst.msk [vmem:[#allocation3 + $0x38] sm:$0x3] %vm1851, 0.0
    %1859 = vst.msk [vmem:[#allocation3 + $0x40] sm:$0xff] %vm1673, 0.0
    %1860 = vst.msk [vmem:[#allocation3 + $0x48] sm:$0x3] %vm1851, 0.0
    %1861 = vst.msk [vmem:[#allocation3 + $0x50] sm:$0xff] %vm1673, 0.0
    %1862 = vst.msk [vmem:[#allocation3 + $0x58] sm:$0x3] %vm1851, 0.0
    %1863 = vst.msk [vmem:[#allocation3 + $0x60] sm:$0xff] %vm1673, 0.0
    %1864 = vst.msk [vmem:[#allocation3 + $0x68] sm:$0x3] %vm1851, 0.0
    %1865 = vst.msk [vmem:[#allocation3 + $0x70] sm:$0xff] %vm1673, 0.0
    %1866 = vst.msk [vmem:[#allocation3 + $0x78] sm:$0x3] %vm1851, 0.0
    %1867 = vst.msk [vmem:[#allocation3 + $0x80] sm:$0xff] %vm1673, 0.0
    %1868 = vst.msk [vmem:[#allocation3 + $0x88] sm:$0x3] %vm1851, 0.0
    %1869 = vst.msk [vmem:[#allocation3 + $0x90] sm:$0xff] %vm1673, 0.0
    %1870 = vst.msk [vmem:[#allocation3 + $0x98] sm:$0x3] %vm1851, 0.0
    %1871 = vst.msk [vmem:[#allocation3 + $0xa0] sm:$0xff] %vm1673, 0.0
    %1872 = vst.msk [vmem:[#allocation3 + $0xa8] sm:$0x3] %vm1851, 0.0
    %1873 = vst.msk [vmem:[#allocation3 + $0xb0] sm:$0xff] %vm1673, 0.0
    %1874 = vst.msk [vmem:[#allocation3 + $0xb8] sm:$0x3] %vm1851, 0.0
    %1875 = vst.msk [vmem:[#allocation3 + $0xc0] sm:$0xff] %vm1673, 0.0
    %1876 = vst.msk [vmem:[#allocation3 + $0xc8] sm:$0x3] %vm1851, 0.0
    %1877 = vst.msk [vmem:[#allocation3 + $0xd0] sm:$0xff] %vm1673, 0.0
    %1878 = vst.msk [vmem:[#allocation3 + $0xd8] sm:$0x3] %vm1851, 0.0
    %1879 = vst.msk [vmem:[#allocation3 + $0xe0] sm:$0xff] %vm1673, 0.0
    %1880 = vst.msk [vmem:[#allocation3 + $0xe8] sm:$0x3] %vm1851, 0.0
    %1881 = vst.msk [vmem:[#allocation3 + $0xf0] sm:$0xff] %vm1673, 0.0
    %1882 = vst.msk [vmem:[#allocation3 + $0xf8] sm:$0x3] %vm1851, 0.0
    %1883 = vst.msk [vmem:[#allocation3 + $0x100] sm:$0xff] %vm1673, 0.0
    %1884 = vst.msk [vmem:[#allocation3 + $0x108] sm:$0x3] %vm1851, 0.0
    %1885 = vst.msk [vmem:[#allocation3 + $0x110] sm:$0xff] %vm1673, 0.0
    %1886 = vst.msk [vmem:[#allocation3 + $0x118] sm:$0x3] %vm1851, 0.0
    %1887 = vst.msk [vmem:[#allocation3 + $0x120] sm:$0xff] %vm1673, 0.0
    %1888 = vst.msk [vmem:[#allocation3 + $0x128] sm:$0x3] %vm1851, 0.0
    %1889 = vst.msk [vmem:[#allocation3 + $0x130] sm:$0xff] %vm1673, 0.0
    %1890 = vst.msk [vmem:[#allocation3 + $0x138] sm:$0x3] %vm1851, 0.0
    %s1891 = scalar_lea.vmem [#allocation3], 16
    %1892 = vst.msk [vmem:[%s1891 + $0x1] sm:$0xff] %vm1673, %v1834
    %1893 = vst.msk [vmem:[%s1891 + $0x11] sm:$0xff] %vm1673, %v1835
    %1894 = vst.msk [vmem:[%s1891 + $0x21] sm:$0xff] %vm1673, %v1836
    %1895 = vst.msk [vmem:[%s1891 + $0x31] sm:$0xff] %vm1673, %v1837
    %1896 = vst.msk [vmem:[%s1891 + $0x41] sm:$0xff] %vm1673, %v1838
    %1897 = vst.msk [vmem:[%s1891 + $0x51] sm:$0xff] %vm1673, %v1839
    %1898 = vst.msk [vmem:[%s1891 + $0x61] sm:$0xff] %vm1673, %v1840
    %1899 = vst.msk [vmem:[%s1891 + $0x71] sm:$0xff] %vm1673, %v1841
    %1900 = vst.msk [vmem:[%s1891 + $0xa1] sm:$0xff] %vm1673, %v1842
    %1901 = vst.msk [vmem:[%s1891 + $0xb1] sm:$0xff] %vm1673, %v1843
    %1902 = vst.msk [vmem:[%s1891 + $0xc1] sm:$0xff] %vm1673, %v1844
    %1903 = vst.msk [vmem:[%s1891 + $0xd1] sm:$0xff] %vm1673, %v1845
    %1904 = vst.msk [vmem:[%s1891 + $0xe1] sm:$0xff] %vm1673, %v1846
    %1905 = vst.msk [vmem:[%s1891 + $0xf1] sm:$0xff] %vm1673, %v1847
    %1906 = vst.msk [vmem:[%s1891 + $0x101] sm:$0xff] %vm1673, %v1848
    %1907 = vst.msk [vmem:[%s1891 + $0x111] sm:$0xff] %vm1673, %v1849
    %v1908 = vld [vmem:[#allocation3] sm:$0xff]
    %v1909 = vld [vmem:[#allocation3 + $0x10] sm:$0xff]
    %v1910 = vld [vmem:[#allocation3 + $0x20] sm:$0xff]
    %v1911 = vld [vmem:[#allocation3 + $0x30] sm:$0xff]
    %v1912 = vld [vmem:[#allocation3 + $0x40] sm:$0xff]
    %v1913 = vld [vmem:[#allocation3 + $0x50] sm:$0xff]
    %v1914 = vld [vmem:[#allocation3 + $0x60] sm:$0xff]
    %v1915 = vld [vmem:[#allocation3 + $0x70] sm:$0xff]
    %v1916 = vld [vmem:[#allocation3 + $0xa0] sm:$0xff]
    %v1917 = vld [vmem:[#allocation3 + $0xb0] sm:$0xff]
    %v1918 = vld [vmem:[#allocation3 + $0xc0] sm:$0xff]
    %v1919 = vld [vmem:[#allocation3 + $0xd0] sm:$0xff]
    %v1920 = vld [vmem:[#allocation3 + $0xe0] sm:$0xff]
    %v1921 = vld [vmem:[#allocation3 + $0xf0] sm:$0xff]
    %v1922 = vld [vmem:[#allocation3 + $0x100] sm:$0xff]
    %v1923 = vld [vmem:[#allocation3 + $0x110] sm:$0xff]
    %v1924 = vpack.c.bf16 %v1909, %v1908
    %v1925 = vpack.c.bf16 %v1911, %v1910
    %v1926 = vpack.c.bf16 %v1913, %v1912
    %v1927 = vpack.c.bf16 %v1915, %v1914
    %v1928 = vpack.c.bf16 %v1917, %v1916
    %v1929 = vpack.c.bf16 %v1919, %v1918
    %v1930 = vpack.c.bf16 %v1921, %v1920
    %v1931 = vpack.c.bf16 %v1923, %v1922
    %v1932 = vld [vmem:[%s2] sm:$0xf]
    %v1933 = vld [vmem:[%s2 + $0x4] sm:$0xf]
    %v1934 = vld [vmem:[%s2 + $0x8] sm:$0xf]
    %v1935 = vld [vmem:[%s2 + $0xc] sm:$0xf]
    %v1936 = vld [vmem:[%s2 + $0x10] sm:$0xf]
    %v1937 = vld [vmem:[%s2 + $0x14] sm:$0xf]
    %v1938 = vld [vmem:[%s2 + $0x18] sm:$0xf]
    %v1939 = vld [vmem:[%s2 + $0x1c] sm:$0xf]
    %v1940 = vld [vmem:[#allocation3 + $0x1] sm:$0xff]
    %v1941 = vld [vmem:[#allocation3 + $0x11] sm:$0xff]
    %v1942 = vld [vmem:[#allocation3 + $0x21] sm:$0xff]
    %v1943 = vld [vmem:[#allocation3 + $0x31] sm:$0xff]
    %v1944 = vld [vmem:[#allocation3 + $0x41] sm:$0xff]
    %v1945 = vld [vmem:[#allocation3 + $0x51] sm:$0xff]
    %v1946 = vld [vmem:[#allocation3 + $0x61] sm:$0xff]
    %v1947 = vld [vmem:[#allocation3 + $0x71] sm:$0xff]
    %v1948 = vld [vmem:[#allocation3 + $0xa1] sm:$0xff]
    %v1949 = vld [vmem:[#allocation3 + $0xb1] sm:$0xff]
    %v1950 = vld [vmem:[#allocation3 + $0xc1] sm:$0xff]
    %v1951 = vld [vmem:[#allocation3 + $0xd1] sm:$0xff]
    %v1952 = vld [vmem:[#allocation3 + $0xe1] sm:$0xff]
    %v1953 = vld [vmem:[#allocation3 + $0xf1] sm:$0xff]
    %v1954 = vld [vmem:[#allocation3 + $0x101] sm:$0xff]
    %v1955 = vld [vmem:[#allocation3 + $0x111] sm:$0xff]
    %v1956 = vpack.c.bf16 %v1941, %v1940
    %v1957 = vpack.c.bf16 %v1943, %v1942
    %v1958 = vpack.c.bf16 %v1945, %v1944
    %v1959 = vpack.c.bf16 %v1947, %v1946
    %v1960 = vpack.c.bf16 %v1949, %v1948
    %v1961 = vpack.c.bf16 %v1951, %v1950
    %v1962 = vpack.c.bf16 %v1953, %v1952
    %v1963 = vpack.c.bf16 %v1955, %v1954
    %s1964 = scalar_lea.vmem %s2, 32
    %v1965 = vld [vmem:[%s1964] sm:$0xf]
    %v1966 = vld [vmem:[%s1964 + $0x4] sm:$0xf]
    %v1967 = vld [vmem:[%s1964 + $0x8] sm:$0xf]
    %v1968 = vld [vmem:[%s1964 + $0xc] sm:$0xf]
    %v1969 = vld [vmem:[%s1964 + $0x10] sm:$0xf]
    %v1970 = vld [vmem:[%s1964 + $0x14] sm:$0xf]
    %v1971 = vld [vmem:[%s1964 + $0x18] sm:$0xf]
    %v1972 = vld [vmem:[%s1964 + $0x1c] sm:$0xf]
    %v1981 = vunpack.c.l.b16 %v1965
    %v1982 = vunpack.c.l.b16 %v1966
    %v1983 = vunpack.c.l.b16 %v1967
    %v1984 = vunpack.c.l.b16 %v1968
    %v1985 = vunpack.c.l.b16 %v1969
    %v1986 = vunpack.c.l.b16 %v1970
    %v1987 = vunpack.c.l.b16 %v1971
    %v1988 = vunpack.c.l.b16 %v1972
    %v1989 = vpack.c.b16 %v1982, %v1981
    %v1990 = vpack.c.b16 %v1984, %v1983
    %v1991 = vpack.c.b16 %v1986, %v1985
    %v1992 = vpack.c.b16 %v1988, %v1987
    %v1998 = vsel %vm1673, %v1956, 0
    %v2001 = vsel %vm1673, %v1957, 0
    %v2004 = vsel %vm1673, %v1958, 0
    %v2007 = vsel %vm1673, %v1959, 0
    %v2010 = vsel %vm1673, %v1960, 0
    %v2013 = vsel %vm1673, %v1961, 0
    %v2016 = vsel %vm1673, %v1962, 0
    %v2019 = vsel %vm1673, %v1963, 0
    %2021 = vmatprep.subr.bf16.mxu0 0
    %2022 = vmatpush1.bf16.msra.mxu0 %v1989
    %2023 = vmatprep.subr.bf16.mxu0 0
    %2024 = vmatpush1.bf16.msra.mxu0 %v1990
    %2025 = vmatprep.subr.bf16.mxu0 0
    %2026 = vmatpush1.bf16.msra.mxu0 %v1991
    %2027 = vmatprep.subr.bf16.mxu0 0
    %2028 = vmatpush1.bf16.msra.mxu0 %v1992
    %2029 = vmatprep.subr.bf16.mxu0 0
    %2030 = vmatpush1.bf16.msra.mxu0 0
    %2031 = vmatprep.subr.bf16.mxu0 0
    %2032 = vmatpush1.bf16.msra.mxu0 0
    %2033 = vmatprep.subr.bf16.mxu0 0
    %2034 = vmatpush1.bf16.msra.mxu0 0
    %2035 = vmatprep.subr.bf16.mxu0 0
    %2036 = vmatpush1.bf16.msra.mxu0 0
    %2037 = vmatprep.subr.bf16.mxu0 0
    %2038 = vmatpush1.bf16.msra.mxu0 0
    %2039 = vmatprep.subr.bf16.mxu0 0
    %2040 = vmatpush1.bf16.msra.mxu0 0
    %2041 = vmatprep.subr.bf16.mxu0 0
    %2042 = vmatpush1.bf16.msra.mxu0 0
    %2043 = vmatprep.subr.bf16.mxu0 0
    %2044 = vmatpush1.bf16.msra.mxu0 0
    %2045 = vmatprep.subr.bf16.mxu0 0
    %2046 = vmatpush1.bf16.msra.mxu0 0
    %2047 = vmatprep.subr.bf16.mxu0 0
    %2048 = vmatpush1.bf16.msra.mxu0 0
    %2049 = vmatprep.subr.bf16.mxu0 0
    %2050 = vmatpush1.bf16.msra.mxu0 0
    %2051 = vmatprep.subr.bf16.mxu0 0
    %2052 = vmatpush1.bf16.msra.mxu0 0
    %2053 = vmatprep.mubr.bf16.mxu0 0
    %2054 = vmatmul.mubr.bf16.gmra.mrb[0].mxu0 %v1998
    %v2055 = vpop.f32.mrb[0].mxu0
    %v2056 = vadd.f32 0.0, %v2055
    %v2057 = vpop.f32.mrb[0].mxu0
    %v2058 = vpop.f32.mrb[0].mxu0
    %v2059 = vadd.f32 0.0, %v2058
    %v2060 = vpop.f32.mrb[0].mxu0
    %2061 = vmatprep.mubr.bf16.mxu0 0
    %2062 = vmatmul.mubr.bf16.gmra.mrb[0].mxu0 %v2001
    %v2063 = vpop.f32.mrb[0].mxu0
    %v2064 = vadd.f32 0.0, %v2063
    %v2065 = vpop.f32.mrb[0].mxu0
    %v2066 = vpop.f32.mrb[0].mxu0
    %v2067 = vadd.f32 0.0, %v2066
    %v2068 = vpop.f32.mrb[0].mxu0
    %2069 = vmatprep.mubr.bf16.mxu0 0
    %2070 = vmatmul.mubr.bf16.gmra.mrb[0].mxu0 %v2004
    %v2071 = vpop.f32.mrb[0].mxu0
    %v2072 = vadd.f32 0.0, %v2071
    %v2073 = vpop.f32.mrb[0].mxu0
    %v2074 = vpop.f32.mrb[0].mxu0
    %v2075 = vadd.f32 0.0, %v2074
    %v2076 = vpop.f32.mrb[0].mxu0
    %2077 = vmatprep.mubr.bf16.mxu0 0
    %2078 = vmatmul.mubr.bf16.gmra.mrb[0].mxu0 %v2007
    %v2079 = vpop.f32.mrb[0].mxu0
    %v2080 = vadd.f32 0.0, %v2079
    %v2081 = vpop.f32.mrb[0].mxu0
    %v2082 = vpop.f32.mrb[0].mxu0
    %v2083 = vadd.f32 0.0, %v2082
    %v2084 = vpop.f32.mrb[0].mxu0
    %2085 = vmatprep.mubr.bf16.mxu0 0
    %2086 = vmatmul.mubr.bf16.gmra.mrb[0].mxu0 %v2010
    %v2087 = vpop.f32.mrb[0].mxu0
    %v2088 = vadd.f32 0.0, %v2087
    %v2089 = vpop.f32.mrb[0].mxu0
    %v2090 = vpop.f32.mrb[0].mxu0
    %v2091 = vadd.f32 0.0, %v2090
    %v2092 = vpop.f32.mrb[0].mxu0
    %2093 = vmatprep.mubr.bf16.mxu0 0
    %2094 = vmatmul.mubr.bf16.gmra.mrb[0].mxu0 %v2013
    %v2095 = vpop.f32.mrb[0].mxu0
    %v2096 = vadd.f32 0.0, %v2095
    %v2097 = vpop.f32.mrb[0].mxu0
    %v2098 = vpop.f32.mrb[0].mxu0
    %v2099 = vadd.f32 0.0, %v2098
    %v2100 = vpop.f32.mrb[0].mxu0
    %2101 = vmatprep.mubr.bf16.mxu0 0
    %2102 = vmatmul.mubr.bf16.gmra.mrb[0].mxu0 %v2016
    %v2103 = vpop.f32.mrb[0].mxu0
    %v2104 = vadd.f32 0.0, %v2103
    %v2105 = vpop.f32.mrb[0].mxu0
    %v2106 = vpop.f32.mrb[0].mxu0
    %v2107 = vadd.f32 0.0, %v2106
    %v2108 = vpop.f32.mrb[0].mxu0
    %2109 = vmatprep.mubr.bf16.mxu0 0
    %2110 = vmatmul.mubr.bf16.gmra.mrb[0].mxu0 %v2019
    %v2111 = vpop.f32.mrb[0].mxu0
    %v2112 = vadd.f32 0.0, %v2111
    %v2113 = vpop.f32.mrb[0].mxu0
    %v2114 = vpop.f32.mrb[0].mxu0
    %v2115 = vadd.f32 0.0, %v2114
    %v2116 = vpop.f32.mrb[0].mxu0
    %2117 = vdwg.mxu0
    %v2126 = vunpack.c.l.b16 %v1932
    %v2127 = vunpack.c.l.b16 %v1933
    %v2128 = vunpack.c.l.b16 %v1934
    %v2129 = vunpack.c.l.b16 %v1935
    %v2130 = vunpack.c.l.b16 %v1936
    %v2131 = vunpack.c.l.b16 %v1937
    %v2132 = vunpack.c.l.b16 %v1938
    %v2133 = vunpack.c.l.b16 %v1939
    %v2134 = vpack.c.b16 %v2127, %v2126
    %v2135 = vpack.c.b16 %v2129, %v2128
    %v2136 = vpack.c.b16 %v2131, %v2130
    %v2137 = vpack.c.b16 %v2133, %v2132
    %v2143 = vsel %vm1673, %v1924, 0
    %v2146 = vsel %vm1673, %v1925, 0
    %v2149 = vsel %vm1673, %v1926, 0
    %v2152 = vsel %vm1673, %v1927, 0
    %v2155 = vsel %vm1673, %v1928, 0
    %v2158 = vsel %vm1673, %v1929, 0
    %v2161 = vsel %vm1673, %v1930, 0
    %v2164 = vsel %vm1673, %v1931, 0
    %2166 = vmatprep.subr.bf16.mxu0 0
    %2167 = vmatpush1.bf16.msra.mxu0 %v2134
    %2168 = vmatprep.subr.bf16.mxu0 0
    %2169 = vmatpush1.bf16.msra.mxu0 %v2135
    %2170 = vmatprep.subr.bf16.mxu0 0
    %2171 = vmatpush1.bf16.msra.mxu0 %v2136
    %2172 = vmatprep.subr.bf16.mxu0 0
    %2173 = vmatpush1.bf16.msra.mxu0 %v2137
    %2174 = vmatprep.subr.bf16.mxu0 0
    %2175 = vmatpush1.bf16.msra.mxu0 0
    %2176 = vmatprep.subr.bf16.mxu0 0
    %2177 = vmatpush1.bf16.msra.mxu0 0
    %2178 = vmatprep.subr.bf16.mxu0 0
    %2179 = vmatpush1.bf16.msra.mxu0 0
    %2180 = vmatprep.subr.bf16.mxu0 0
    %2181 = vmatpush1.bf16.msra.mxu0 0
    %2182 = vmatprep.subr.bf16.mxu0 0
    %2183 = vmatpush1.bf16.msra.mxu0 0
    %2184 = vmatprep.subr.bf16.mxu0 0
    %2185 = vmatpush1.bf16.msra.mxu0 0
    %2186 = vmatprep.subr.bf16.mxu0 0
    %2187 = vmatpush1.bf16.msra.mxu0 0
    %2188 = vmatprep.subr.bf16.mxu0 0
    %2189 = vmatpush1.bf16.msra.mxu0 0
    %2190 = vmatprep.subr.bf16.mxu0 0
    %2191 = vmatpush1.bf16.msra.mxu0 0
    %2192 = vmatprep.subr.bf16.mxu0 0
    %2193 = vmatpush1.bf16.msra.mxu0 0
    %2194 = vmatprep.subr.bf16.mxu0 0
    %2195 = vmatpush1.bf16.msra.mxu0 0
    %2196 = vmatprep.subr.bf16.mxu0 0
    %2197 = vmatpush1.bf16.msra.mxu0 0
    %2198 = vmatprep.mubr.bf16.mxu0 0
    %2199 = vmatmul.mubr.bf16.gmra.mrb[0].mxu0 %v2143
    %v2200 = vpop.f32.mrb[0].mxu0
    %v2201 = vadd.f32 %v2056, %v2200
    %v2202 = vpop.f32.mrb[0].mxu0
    %v2203 = vpop.f32.mrb[0].mxu0
    %v2204 = vadd.f32 %v2059, %v2203
    %v2205 = vpop.f32.mrb[0].mxu0
    %2206 = vmatprep.mubr.bf16.mxu0 0
    %2207 = vmatmul.mubr.bf16.gmra.mrb[0].mxu0 %v2146
    %v2208 = vpop.f32.mrb[0].mxu0
    %v2209 = vadd.f32 %v2064, %v2208
    %v2210 = vpop.f32.mrb[0].mxu0
    %v2211 = vpop.f32.mrb[0].mxu0
    %v2212 = vadd.f32 %v2067, %v2211
    %v2213 = vpop.f32.mrb[0].mxu0
    %2214 = vmatprep.mubr.bf16.mxu0 0
    %2215 = vmatmul.mubr.bf16.gmra.mrb[0].mxu0 %v2149
    %v2216 = vpop.f32.mrb[0].mxu0
    %v2217 = vadd.f32 %v2072, %v2216
    %v2218 = vpop.f32.mrb[0].mxu0
    %v2219 = vpop.f32.mrb[0].mxu0
    %v2220 = vadd.f32 %v2075, %v2219
    %v2221 = vpop.f32.mrb[0].mxu0
    %2222 = vmatprep.mubr.bf16.mxu0 0
    %2223 = vmatmul.mubr.bf16.gmra.mrb[0].mxu0 %v2152
    %v2224 = vpop.f32.mrb[0].mxu0
    %v2225 = vadd.f32 %v2080, %v2224
    %v2226 = vpop.f32.mrb[0].mxu0
    %v2227 = vpop.f32.mrb[0].mxu0
    %v2228 = vadd.f32 %v2083, %v2227
    %v2229 = vpop.f32.mrb[0].mxu0
    %2230 = vmatprep.mubr.bf16.mxu0 0
    %2231 = vmatmul.mubr.bf16.gmra.mrb[0].mxu0 %v2155
    %v2232 = vpop.f32.mrb[0].mxu0
    %v2233 = vadd.f32 %v2088, %v2232
    %v2234 = vpop.f32.mrb[0].mxu0
    %v2235 = vpop.f32.mrb[0].mxu0
    %v2236 = vadd.f32 %v2091, %v2235
    %v2237 = vpop.f32.mrb[0].mxu0
    %2238 = vmatprep.mubr.bf16.mxu0 0
    %2239 = vmatmul.mubr.bf16.gmra.mrb[0].mxu0 %v2158
    %v2240 = vpop.f32.mrb[0].mxu0
    %v2241 = vadd.f32 %v2096, %v2240
    %v2242 = vpop.f32.mrb[0].mxu0
    %v2243 = vpop.f32.mrb[0].mxu0
    %v2244 = vadd.f32 %v2099, %v2243
    %v2245 = vpop.f32.mrb[0].mxu0
    %2246 = vmatprep.mubr.bf16.mxu0 0
    %2247 = vmatmul.mubr.bf16.gmra.mrb[0].mxu0 %v2161
    %v2248 = vpop.f32.mrb[0].mxu0
    %v2249 = vadd.f32 %v2104, %v2248
    %v2250 = vpop.f32.mrb[0].mxu0
    %v2251 = vpop.f32.mrb[0].mxu0
    %v2252 = vadd.f32 %v2107, %v2251
    %v2253 = vpop.f32.mrb[0].mxu0
    %2254 = vmatprep.mubr.bf16.mxu0 0
    %2255 = vmatmul.mubr.bf16.gmra.mrb[0].mxu0 %v2164
    %v2256 = vpop.f32.mrb[0].mxu0
    %v2257 = vadd.f32 %v2112, %v2256
    %v2258 = vpop.f32.mrb[0].mxu0
    %v2259 = vpop.f32.mrb[0].mxu0
    %v2260 = vadd.f32 %v2115, %v2259
    %v2261 = vpop.f32.mrb[0].mxu0
    %2262 = vdwg.mxu0
    %v2263 = vld [vmem:[#allocation3 + $0x2] sm:$0xff]
    %v2264 = vld [vmem:[#allocation3 + $0x12] sm:$0xff]
    %v2265 = vld [vmem:[#allocation3 + $0x22] sm:$0xff]
    %v2266 = vld [vmem:[#allocation3 + $0x32] sm:$0xff]
    %v2267 = vld [vmem:[#allocation3 + $0x42] sm:$0xff]
    %v2268 = vld [vmem:[#allocation3 + $0x52] sm:$0xff]
    %v2269 = vld [vmem:[#allocation3 + $0x62] sm:$0xff]
    %v2270 = vld [vmem:[#allocation3 + $0x72] sm:$0xff]
    %v2271 = vld [vmem:[#allocation3 + $0xa2] sm:$0xff]
    %v2272 = vld [vmem:[#allocation3 + $0xb2] sm:$0xff]
    %v2273 = vld [vmem:[#allocation3 + $0xc2] sm:$0xff]
    %v2274 = vld [vmem:[#allocation3 + $0xd2] sm:$0xff]
    %v2275 = vld [vmem:[#allocation3 + $0xe2] sm:$0xff]
    %v2276 = vld [vmem:[#allocation3 + $0xf2] sm:$0xff]
    %v2277 = vld [vmem:[#allocation3 + $0x102] sm:$0xff]
    %v2278 = vld [vmem:[#allocation3 + $0x112] sm:$0xff]
    %v2279 = vpack.c.bf16 %v2264, %v2263
    %v2280 = vpack.c.bf16 %v2266, %v2265
    %v2281 = vpack.c.bf16 %v2268, %v2267
    %v2282 = vpack.c.bf16 %v2270, %v2269
    %v2283 = vpack.c.bf16 %v2272, %v2271
    %v2284 = vpack.c.bf16 %v2274, %v2273
    %v2285 = vpack.c.bf16 %v2276, %v2275
    %v2286 = vpack.c.bf16 %v2278, %v2277
    %s2287 = scalar_lea.vmem %s2, 64
    %v2288 = vld [vmem:[%s2287] sm:$0xf]
    %v2289 = vld [vmem:[%s2287 + $0x4] sm:$0xf]
    %v2290 = vld [vmem:[%s2287 + $0x8] sm:$0xf]
    %v2291 = vld [vmem:[%s2287 + $0xc] sm:$0xf]
    %v2292 = vld [vmem:[%s2287 + $0x10] sm:$0xf]
    %v2293 = vld [vmem:[%s2287 + $0x14] sm:$0xf]
    %v2294 = vld [vmem:[%s2287 + $0x18] sm:$0xf]
    %v2295 = vld [vmem:[%s2287 + $0x1c] sm:$0xf]
    %v2304 = vunpack.c.l.b16 %v2288
    %v2305 = vunpack.c.l.b16 %v2289
    %v2306 = vunpack.c.l.b16 %v2290
    %v2307 = vunpack.c.l.b16 %v2291
    %v2308 = vunpack.c.l.b16 %v2292
    %v2309 = vunpack.c.l.b16 %v2293
    %v2310 = vunpack.c.l.b16 %v2294
    %v2311 = vunpack.c.l.b16 %v2295
    %v2312 = vpack.c.b16 %v2305, %v2304
    %v2313 = vpack.c.b16 %v2307, %v2306
    %v2314 = vpack.c.b16 %v2309, %v2308
    %v2315 = vpack.c.b16 %v2311, %v2310
    %v2321 = vsel %vm1673, %v2279, 0
    %v2324 = vsel %vm1673, %v2280, 0
    %v2327 = vsel %vm1673, %v2281, 0
    %v2330 = vsel %vm1673, %v2282, 0
    %v2333 = vsel %vm1673, %v2283, 0
    %v2336 = vsel %vm1673, %v2284, 0
    %v2339 = vsel %vm1673, %v2285, 0
    %v2342 = vsel %vm1673, %v2286, 0
    %2344 = vmatprep.subr.bf16.mxu0 0
    %2345 = vmatpush1.bf16.msra.mxu0 %v2312
    %2346 = vmatprep.subr.bf16.mxu0 0
    %2347 = vmatpush1.bf16.msra.mxu0 %v2313
    %2348 = vmatprep.subr.bf16.mxu0 0
    %2349 = vmatpush1.bf16.msra.mxu0 %v2314
    %2350 = vmatprep.subr.bf16.mxu0 0
    %2351 = vmatpush1.bf16.msra.mxu0 %v2315
    %2352 = vmatprep.subr.bf16.mxu0 0
    %2353 = vmatpush1.bf16.msra.mxu0 0
    %2354 = vmatprep.subr.bf16.mxu0 0
    %2355 = vmatpush1.bf16.msra.mxu0 0
    %2356 = vmatprep.subr.bf16.mxu0 0
    %2357 = vmatpush1.bf16.msra.mxu0 0
    %2358 = vmatprep.subr.bf16.mxu0 0
    %2359 = vmatpush1.bf16.msra.mxu0 0
    %2360 = vmatprep.subr.bf16.mxu0 0
    %2361 = vmatpush1.bf16.msra.mxu0 0
    %2362 = vmatprep.subr.bf16.mxu0 0
    %2363 = vmatpush1.bf16.msra.mxu0 0
    %2364 = vmatprep.subr.bf16.mxu0 0
    %2365 = vmatpush1.bf16.msra.mxu0 0
    %2366 = vmatprep.subr.bf16.mxu0 0
    %2367 = vmatpush1.bf16.msra.mxu0 0
    %2368 = vmatprep.subr.bf16.mxu0 0
    %2369 = vmatpush1.bf16.msra.mxu0 0
    %2370 = vmatprep.subr.bf16.mxu0 0
    %2371 = vmatpush1.bf16.msra.mxu0 0
    %2372 = vmatprep.subr.bf16.mxu0 0
    %2373 = vmatpush1.bf16.msra.mxu0 0
    %2374 = vmatprep.subr.bf16.mxu0 0
    %2375 = vmatpush1.bf16.msra.mxu0 0
    %2376 = vmatprep.mubr.bf16.mxu0 0
    %2377 = vmatmul.mubr.bf16.gmra.mrb[0].mxu0 %v2321
    %v2378 = vpop.f32.mrb[0].mxu0
    %v2379 = vadd.f32 0.0, %v2378
    %v2380 = vpop.f32.mrb[0].mxu0
    %v2381 = vpop.f32.mrb[0].mxu0
    %v2382 = vadd.f32 0.0, %v2381
    %v2383 = vpop.f32.mrb[0].mxu0
    %2384 = vmatprep.mubr.bf16.mxu0 0
    %2385 = vmatmul.mubr.bf16.gmra.mrb[0].mxu0 %v2324
    %v2386 = vpop.f32.mrb[0].mxu0
    %v2387 = vadd.f32 0.0, %v2386
    %v2388 = vpop.f32.mrb[0].mxu0
    %v2389 = vpop.f32.mrb[0].mxu0
    %v2390 = vadd.f32 0.0, %v2389
    %v2391 = vpop.f32.mrb[0].mxu0
    %2392 = vmatprep.mubr.bf16.mxu0 0
    %2393 = vmatmul.mubr.bf16.gmra.mrb[0].mxu0 %v2327
    %v2394 = vpop.f32.mrb[0].mxu0
    %v2395 = vadd.f32 0.0, %v2394
    %v2396 = vpop.f32.mrb[0].mxu0
    %v2397 = vpop.f32.mrb[0].mxu0
    %v2398 = vadd.f32 0.0, %v2397
    %v2399 = vpop.f32.mrb[0].mxu0
    %2400 = vmatprep.mubr.bf16.mxu0 0
    %2401 = vmatmul.mubr.bf16.gmra.mrb[0].mxu0 %v2330
    %v2402 = vpop.f32.mrb[0].mxu0
    %v2403 = vadd.f32 0.0, %v2402
    %v2404 = vpop.f32.mrb[0].mxu0
    %v2405 = vpop.f32.mrb[0].mxu0
    %v2406 = vadd.f32 0.0, %v2405
    %v2407 = vpop.f32.mrb[0].mxu0
    %2408 = vmatprep.mubr.bf16.mxu0 0
    %2409 = vmatmul.mubr.bf16.gmra.mrb[0].mxu0 %v2333
    %v2410 = vpop.f32.mrb[0].mxu0
    %v2411 = vadd.f32 0.0, %v2410
    %v2412 = vpop.f32.mrb[0].mxu0
    %v2413 = vpop.f32.mrb[0].mxu0
    %v2414 = vadd.f32 0.0, %v2413
    %v2415 = vpop.f32.mrb[0].mxu0
    %2416 = vmatprep.mubr.bf16.mxu0 0
    %2417 = vmatmul.mubr.bf16.gmra.mrb[0].mxu0 %v2336
    %v2418 = vpop.f32.mrb[0].mxu0
    %v2419 = vadd.f32 0.0, %v2418
    %v2420 = vpop.f32.mrb[0].mxu0
    %v2421 = vpop.f32.mrb[0].mxu0
    %v2422 = vadd.f32 0.0, %v2421
    %v2423 = vpop.f32.mrb[0].mxu0
    %2424 = vmatprep.mubr.bf16.mxu0 0
    %2425 = vmatmul.mubr.bf16.gmra.mrb[0].mxu0 %v2339
    %v2426 = vpop.f32.mrb[0].mxu0
    %v2427 = vadd.f32 0.0, %v2426
    %v2428 = vpop.f32.mrb[0].mxu0
    %v2429 = vpop.f32.mrb[0].mxu0
    %v2430 = vadd.f32 0.0, %v2429
    %v2431 = vpop.f32.mrb[0].mxu0
    %2432 = vmatprep.mubr.bf16.mxu0 0
    %2433 = vmatmul.mubr.bf16.gmra.mrb[0].mxu0 %v2342
    %v2434 = vpop.f32.mrb[0].mxu0
    %v2435 = vadd.f32 0.0, %v2434
    %v2436 = vpop.f32.mrb[0].mxu0
    %v2437 = vpop.f32.mrb[0].mxu0
    %v2438 = vadd.f32 0.0, %v2437
    %v2439 = vpop.f32.mrb[0].mxu0
    %2440 = vdwg.mxu0
    %v2441 = vadd.f32 %v2201, %v2379
    %v2442 = vadd.f32 %v2204, %v2382
    %v2443 = vadd.f32 %v2209, %v2387
    %v2444 = vadd.f32 %v2212, %v2390
    %v2445 = vadd.f32 %v2217, %v2395
    %v2446 = vadd.f32 %v2220, %v2398
    %v2447 = vadd.f32 %v2225, %v2403
    %v2448 = vadd.f32 %v2228, %v2406
    %v2449 = vadd.f32 %v2233, %v2411
    %v2450 = vadd.f32 %v2236, %v2414
    %v2451 = vadd.f32 %v2241, %v2419
    %v2452 = vadd.f32 %v2244, %v2422
    %v2453 = vadd.f32 %v2249, %v2427
    %v2454 = vadd.f32 %v2252, %v2430
    %v2455 = vadd.f32 %v2257, %v2435
    %v2456 = vadd.f32 %v2260, %v2438
    %v2457 = vld [vmem:[%s1891] sm:$0xff]
    %v2458 = vld [vmem:[%s1891 + $0x10] sm:$0xff]
    %v2459 = vld [vmem:[%s1891 + $0x20] sm:$0xff]
    %v2460 = vld [vmem:[%s1891 + $0x30] sm:$0xff]
    %v2461 = vld [vmem:[%s1891 + $0x40] sm:$0xff]
    %v2462 = vld [vmem:[%s1891 + $0x50] sm:$0xff]
    %v2463 = vld [vmem:[%s1891 + $0x60] sm:$0xff]
    %v2464 = vld [vmem:[%s1891 + $0x70] sm:$0xff]
    %v2465 = vld [vmem:[%s1891 + $0xa0] sm:$0xff]
    %v2466 = vld [vmem:[%s1891 + $0xb0] sm:$0xff]
    %v2467 = vld [vmem:[%s1891 + $0xc0] sm:$0xff]
    %v2468 = vld [vmem:[%s1891 + $0xd0] sm:$0xff]
    %v2469 = vld [vmem:[%s1891 + $0xe0] sm:$0xff]
    %v2470 = vld [vmem:[%s1891 + $0xf0] sm:$0xff]
    %v2471 = vld [vmem:[%s1891 + $0x100] sm:$0xff]
    %v2472 = vld [vmem:[%s1891 + $0x110] sm:$0xff]
    %v2473 = vpack.c.bf16 %v2458, %v2457
    %v2474 = vpack.c.bf16 %v2460, %v2459
    %v2475 = vpack.c.bf16 %v2462, %v2461
    %v2476 = vpack.c.bf16 %v2464, %v2463
    %v2477 = vpack.c.bf16 %v2466, %v2465
    %v2478 = vpack.c.bf16 %v2468, %v2467
    %v2479 = vpack.c.bf16 %v2470, %v2469
    %v2480 = vpack.c.bf16 %v2472, %v2471
    %s2481 = scalar_lea.vmem %s2, 96
    %v2482 = vld [vmem:[%s2481] sm:$0xf]
    %v2483 = vld [vmem:[%s2481 + $0x4] sm:$0xf]
    %v2484 = vld [vmem:[%s2481 + $0x8] sm:$0xf]
    %v2485 = vld [vmem:[%s2481 + $0xc] sm:$0xf]
    %v2486 = vld [vmem:[%s2481 + $0x10] sm:$0xf]
    %v2487 = vld [vmem:[%s2481 + $0x14] sm:$0xf]
    %v2488 = vld [vmem:[%s2481 + $0x18] sm:$0xf]
    %v2489 = vld [vmem:[%s2481 + $0x1c] sm:$0xf]
    %v2498 = vunpack.c.l.b16 %v2482
    %v2499 = vunpack.c.l.b16 %v2483
    %v2500 = vunpack.c.l.b16 %v2484
    %v2501 = vunpack.c.l.b16 %v2485
    %v2502 = vunpack.c.l.b16 %v2486
    %v2503 = vunpack.c.l.b16 %v2487
    %v2504 = vunpack.c.l.b16 %v2488
    %v2505 = vunpack.c.l.b16 %v2489
    %v2506 = vpack.c.b16 %v2499, %v2498
    %v2507 = vpack.c.b16 %v2501, %v2500
    %v2508 = vpack.c.b16 %v2503, %v2502
    %v2509 = vpack.c.b16 %v2505, %v2504
    %v2515 = vsel %vm1673, %v2473, 0
    %v2518 = vsel %vm1673, %v2474, 0
    %v2521 = vsel %vm1673, %v2475, 0
    %v2524 = vsel %vm1673, %v2476, 0
    %v2527 = vsel %vm1673, %v2477, 0
    %v2530 = vsel %vm1673, %v2478, 0
    %v2533 = vsel %vm1673, %v2479, 0
    %v2536 = vsel %vm1673, %v2480, 0
    %2538 = vmatprep.subr.bf16.mxu0 0
    %2539 = vmatpush1.bf16.msra.mxu0 %v2506
    %2540 = vmatprep.subr.bf16.mxu0 0
    %2541 = vmatpush1.bf16.msra.mxu0 %v2507
    %2542 = vmatprep.subr.bf16.mxu0 0
    %2543 = vmatpush1.bf16.msra.mxu0 %v2508
    %2544 = vmatprep.subr.bf16.mxu0 0
    %2545 = vmatpush1.bf16.msra.mxu0 %v2509
    %2546 = vmatprep.subr.bf16.mxu0 0
    %2547 = vmatpush1.bf16.msra.mxu0 0
    %2548 = vmatprep.subr.bf16.mxu0 0
    %2549 = vmatpush1.bf16.msra.mxu0 0
    %2550 = vmatprep.subr.bf16.mxu0 0
    %2551 = vmatpush1.bf16.msra.mxu0 0
    %2552 = vmatprep.subr.bf16.mxu0 0
    %2553 = vmatpush1.bf16.msra.mxu0 0
    %2554 = vmatprep.subr.bf16.mxu0 0
    %2555 = vmatpush1.bf16.msra.mxu0 0
    %2556 = vmatprep.subr.bf16.mxu0 0
    %2557 = vmatpush1.bf16.msra.mxu0 0
    %2558 = vmatprep.subr.bf16.mxu0 0
    %2559 = vmatpush1.bf16.msra.mxu0 0
    %2560 = vmatprep.subr.bf16.mxu0 0
    %2561 = vmatpush1.bf16.msra.mxu0 0
    %2562 = vmatprep.subr.bf16.mxu0 0
    %2563 = vmatpush1.bf16.msra.mxu0 0
    %2564 = vmatprep.subr.bf16.mxu0 0
    %2565 = vmatpush1.bf16.msra.mxu0 0
    %2566 = vmatprep.subr.bf16.mxu0 0
    %2567 = vmatpush1.bf16.msra.mxu0 0
    %2568 = vmatprep.subr.bf16.mxu0 0
    %2569 = vmatpush1.bf16.msra.mxu0 0
    %2570 = vmatprep.mubr.bf16.mxu0 0
    %2571 = vmatmul.mubr.bf16.gmra.mrb[0].mxu0 %v2515
    %v2572 = vpop.f32.mrb[0].mxu0
    %v2573 = vadd.f32 0.0, %v2572
    %v2574 = vpop.f32.mrb[0].mxu0
    %v2575 = vpop.f32.mrb[0].mxu0
    %v2576 = vadd.f32 0.0, %v2575
    %v2577 = vpop.f32.mrb[0].mxu0
    %2578 = vmatprep.mubr.bf16.mxu0 0
    %2579 = vmatmul.mubr.bf16.gmra.mrb[0].mxu0 %v2518
    %v2580 = vpop.f32.mrb[0].mxu0
    %v2581 = vadd.f32 0.0, %v2580
    %v2582 = vpop.f32.mrb[0].mxu0
    %v2583 = vpop.f32.mrb[0].mxu0
    %v2584 = vadd.f32 0.0, %v2583
    %v2585 = vpop.f32.mrb[0].mxu0
    %2586 = vmatprep.mubr.bf16.mxu0 0
    %2587 = vmatmul.mubr.bf16.gmra.mrb[0].mxu0 %v2521
    %v2588 = vpop.f32.mrb[0].mxu0
    %v2589 = vadd.f32 0.0, %v2588
    %v2590 = vpop.f32.mrb[0].mxu0
    %v2591 = vpop.f32.mrb[0].mxu0
    %v2592 = vadd.f32 0.0, %v2591
    %v2593 = vpop.f32.mrb[0].mxu0
    %2594 = vmatprep.mubr.bf16.mxu0 0
    %2595 = vmatmul.mubr.bf16.gmra.mrb[0].mxu0 %v2524
    %v2596 = vpop.f32.mrb[0].mxu0
    %v2597 = vadd.f32 0.0, %v2596
    %v2598 = vpop.f32.mrb[0].mxu0
    %v2599 = vpop.f32.mrb[0].mxu0
    %v2600 = vadd.f32 0.0, %v2599
    %v2601 = vpop.f32.mrb[0].mxu0
    %2602 = vmatprep.mubr.bf16.mxu0 0
    %2603 = vmatmul.mubr.bf16.gmra.mrb[0].mxu0 %v2527
    %v2604 = vpop.f32.mrb[0].mxu0
    %v2605 = vadd.f32 0.0, %v2604
    %v2606 = vpop.f32.mrb[0].mxu0
    %v2607 = vpop.f32.mrb[0].mxu0
    %v2608 = vadd.f32 0.0, %v2607
    %v2609 = vpop.f32.mrb[0].mxu0
    %2610 = vmatprep.mubr.bf16.mxu0 0
    %2611 = vmatmul.mubr.bf16.gmra.mrb[0].mxu0 %v2530
    %v2612 = vpop.f32.mrb[0].mxu0
    %v2613 = vadd.f32 0.0, %v2612
    %v2614 = vpop.f32.mrb[0].mxu0
    %v2615 = vpop.f32.mrb[0].mxu0
    %v2616 = vadd.f32 0.0, %v2615
    %v2617 = vpop.f32.mrb[0].mxu0
    %2618 = vmatprep.mubr.bf16.mxu0 0
    %2619 = vmatmul.mubr.bf16.gmra.mrb[0].mxu0 %v2533
    %v2620 = vpop.f32.mrb[0].mxu0
    %v2621 = vadd.f32 0.0, %v2620
    %v2622 = vpop.f32.mrb[0].mxu0
    %v2623 = vpop.f32.mrb[0].mxu0
    %v2624 = vadd.f32 0.0, %v2623
    %v2625 = vpop.f32.mrb[0].mxu0
    %2626 = vmatprep.mubr.bf16.mxu0 0
    %2627 = vmatmul.mubr.bf16.gmra.mrb[0].mxu0 %v2536
    %v2628 = vpop.f32.mrb[0].mxu0
    %v2629 = vadd.f32 0.0, %v2628
    %v2630 = vpop.f32.mrb[0].mxu0
    %v2631 = vpop.f32.mrb[0].mxu0
    %v2632 = vadd.f32 0.0, %v2631
    %v2633 = vpop.f32.mrb[0].mxu0
    %2634 = vdwg.mxu0
    %v2635 = vadd.f32 %v2441, %v2573
    %v2636 = vadd.f32 %v2442, %v2576
    %v2637 = vadd.f32 %v2443, %v2581
    %v2638 = vadd.f32 %v2444, %v2584
    %v2639 = vadd.f32 %v2445, %v2589
    %v2640 = vadd.f32 %v2446, %v2592
    %v2641 = vadd.f32 %v2447, %v2597
    %v2642 = vadd.f32 %v2448, %v2600
    %v2643 = vadd.f32 %v2449, %v2605
    %v2644 = vadd.f32 %v2450, %v2608
    %v2645 = vadd.f32 %v2451, %v2613
    %v2646 = vadd.f32 %v2452, %v2616
    %v2647 = vadd.f32 %v2453, %v2621
    %v2648 = vadd.f32 %v2454, %v2624
    %v2649 = vadd.f32 %v2455, %v2629
    %v2650 = vadd.f32 %v2456, %v2632
    %v2651 = vld [vmem:[%s1891 + $0x1] sm:$0xff]
    %v2652 = vld [vmem:[%s1891 + $0x11] sm:$0xff]
    %v2653 = vld [vmem:[%s1891 + $0x21] sm:$0xff]
    %v2654 = vld [vmem:[%s1891 + $0x31] sm:$0xff]
    %v2655 = vld [vmem:[%s1891 + $0x41] sm:$0xff]
    %v2656 = vld [vmem:[%s1891 + $0x51] sm:$0xff]
    %v2657 = vld [vmem:[%s1891 + $0x61] sm:$0xff]
    %v2658 = vld [vmem:[%s1891 + $0x71] sm:$0xff]
    %v2659 = vld [vmem:[%s1891 + $0xa1] sm:$0xff]
    %v2660 = vld [vmem:[%s1891 + $0xb1] sm:$0xff]
    %v2661 = vld [vmem:[%s1891 + $0xc1] sm:$0xff]
    %v2662 = vld [vmem:[%s1891 + $0xd1] sm:$0xff]
    %v2663 = vld [vmem:[%s1891 + $0xe1] sm:$0xff]
    %v2664 = vld [vmem:[%s1891 + $0xf1] sm:$0xff]
    %v2665 = vld [vmem:[%s1891 + $0x101] sm:$0xff]
    %v2666 = vld [vmem:[%s1891 + $0x111] sm:$0xff]
    %v2667 = vpack.c.bf16 %v2652, %v2651
    %v2668 = vpack.c.bf16 %v2654, %v2653
    %v2669 = vpack.c.bf16 %v2656, %v2655
    %v2670 = vpack.c.bf16 %v2658, %v2657
    %v2671 = vpack.c.bf16 %v2660, %v2659
    %v2672 = vpack.c.bf16 %v2662, %v2661
    %v2673 = vpack.c.bf16 %v2664, %v2663
    %v2674 = vpack.c.bf16 %v2666, %v2665
    %s2675 = scalar_lea.vmem %s2, 128
    %v2676 = vld [vmem:[%s2675] sm:$0xf]
    %v2677 = vld [vmem:[%s2675 + $0x4] sm:$0xf]
    %v2678 = vld [vmem:[%s2675 + $0x8] sm:$0xf]
    %v2679 = vld [vmem:[%s2675 + $0xc] sm:$0xf]
    %v2680 = vld [vmem:[%s2675 + $0x10] sm:$0xf]
    %v2681 = vld [vmem:[%s2675 + $0x14] sm:$0xf]
    %v2682 = vld [vmem:[%s2675 + $0x18] sm:$0xf]
    %v2683 = vld [vmem:[%s2675 + $0x1c] sm:$0xf]
    %v2692 = vunpack.c.l.b16 %v2676
    %v2693 = vunpack.c.l.b16 %v2677
    %v2694 = vunpack.c.l.b16 %v2678
    %v2695 = vunpack.c.l.b16 %v2679
    %v2696 = vunpack.c.l.b16 %v2680
    %v2697 = vunpack.c.l.b16 %v2681
    %v2698 = vunpack.c.l.b16 %v2682
    %v2699 = vunpack.c.l.b16 %v2683
    %v2700 = vpack.c.b16 %v2693, %v2692
    %v2701 = vpack.c.b16 %v2695, %v2694
    %v2702 = vpack.c.b16 %v2697, %v2696
    %v2703 = vpack.c.b16 %v2699, %v2698
    %v2709 = vsel %vm1673, %v2667, 0
    %v2712 = vsel %vm1673, %v2668, 0
    %v2715 = vsel %vm1673, %v2669, 0
    %v2718 = vsel %vm1673, %v2670, 0
    %v2721 = vsel %vm1673, %v2671, 0
    %v2724 = vsel %vm1673, %v2672, 0
    %v2727 = vsel %vm1673, %v2673, 0
    %v2730 = vsel %vm1673, %v2674, 0
    %2732 = vmatprep.subr.bf16.mxu0 0
    %2733 = vmatpush1.bf16.msra.mxu0 %v2700
    %2734 = vmatprep.subr.bf16.mxu0 0
    %2735 = vmatpush1.bf16.msra.mxu0 %v2701
    %2736 = vmatprep.subr.bf16.mxu0 0
    %2737 = vmatpush1.bf16.msra.mxu0 %v2702
    %2738 = vmatprep.subr.bf16.mxu0 0
    %2739 = vmatpush1.bf16.msra.mxu0 %v2703
    %2740 = vmatprep.subr.bf16.mxu0 0
    %2741 = vmatpush1.bf16.msra.mxu0 0
    %2742 = vmatprep.subr.bf16.mxu0 0
    %2743 = vmatpush1.bf16.msra.mxu0 0
    %2744 = vmatprep.subr.bf16.mxu0 0
    %2745 = vmatpush1.bf16.msra.mxu0 0
    %2746 = vmatprep.subr.bf16.mxu0 0
    %2747 = vmatpush1.bf16.msra.mxu0 0
    %2748 = vmatprep.subr.bf16.mxu0 0
    %2749 = vmatpush1.bf16.msra.mxu0 0
    %2750 = vmatprep.subr.bf16.mxu0 0
    %2751 = vmatpush1.bf16.msra.mxu0 0
    %2752 = vmatprep.subr.bf16.mxu0 0
    %2753 = vmatpush1.bf16.msra.mxu0 0
    %2754 = vmatprep.subr.bf16.mxu0 0
    %2755 = vmatpush1.bf16.msra.mxu0 0
    %2756 = vmatprep.subr.bf16.mxu0 0
    %2757 = vmatpush1.bf16.msra.mxu0 0
    %2758 = vmatprep.subr.bf16.mxu0 0
    %2759 = vmatpush1.bf16.msra.mxu0 0
    %2760 = vmatprep.subr.bf16.mxu0 0
    %2761 = vmatpush1.bf16.msra.mxu0 0
    %2762 = vmatprep.subr.bf16.mxu0 0
    %2763 = vmatpush1.bf16.msra.mxu0 0
    %2764 = vmatprep.mubr.bf16.mxu0 0
    %2765 = vmatmul.mubr.bf16.gmra.mrb[0].mxu0 %v2709
    %v2766 = vpop.f32.mrb[0].mxu0
    %v2767 = vadd.f32 0.0, %v2766
    %v2768 = vpop.f32.mrb[0].mxu0
    %v2769 = vpop.f32.mrb[0].mxu0
    %v2770 = vadd.f32 0.0, %v2769
    %v2771 = vpop.f32.mrb[0].mxu0
    %2772 = vmatprep.mubr.bf16.mxu0 0
    %2773 = vmatmul.mubr.bf16.gmra.mrb[0].mxu0 %v2712
    %v2774 = vpop.f32.mrb[0].mxu0
    %v2775 = vadd.f32 0.0, %v2774
    %v2776 = vpop.f32.mrb[0].mxu0
    %v2777 = vpop.f32.mrb[0].mxu0
    %v2778 = vadd.f32 0.0, %v2777
    %v2779 = vpop.f32.mrb[0].mxu0
    %2780 = vmatprep.mubr.bf16.mxu0 0
    %2781 = vmatmul.mubr.bf16.gmra.mrb[0].mxu0 %v2715
    %v2782 = vpop.f32.mrb[0].mxu0
    %v2783 = vadd.f32 0.0, %v2782
    %v2784 = vpop.f32.mrb[0].mxu0
    %v2785 = vpop.f32.mrb[0].mxu0
    %v2786 = vadd.f32 0.0, %v2785
    %v2787 = vpop.f32.mrb[0].mxu0
    %2788 = vmatprep.mubr.bf16.mxu0 0
    %2789 = vmatmul.mubr.bf16.gmra.mrb[0].mxu0 %v2718
    %v2790 = vpop.f32.mrb[0].mxu0
    %v2791 = vadd.f32 0.0, %v2790
    %v2792 = vpop.f32.mrb[0].mxu0
    %v2793 = vpop.f32.mrb[0].mxu0
    %v2794 = vadd.f32 0.0, %v2793
    %v2795 = vpop.f32.mrb[0].mxu0
    %2796 = vmatprep.mubr.bf16.mxu0 0
    %2797 = vmatmul.mubr.bf16.gmra.mrb[0].mxu0 %v2721
    %v2798 = vpop.f32.mrb[0].mxu0
    %v2799 = vadd.f32 0.0, %v2798
    %v2800 = vpop.f32.mrb[0].mxu0
    %v2801 = vpop.f32.mrb[0].mxu0
    %v2802 = vadd.f32 0.0, %v2801
    %v2803 = vpop.f32.mrb[0].mxu0
    %2804 = vmatprep.mubr.bf16.mxu0 0
    %2805 = vmatmul.mubr.bf16.gmra.mrb[0].mxu0 %v2724
    %v2806 = vpop.f32.mrb[0].mxu0
    %v2807 = vadd.f32 0.0, %v2806
    %v2808 = vpop.f32.mrb[0].mxu0
    %v2809 = vpop.f32.mrb[0].mxu0
    %v2810 = vadd.f32 0.0, %v2809
    %v2811 = vpop.f32.mrb[0].mxu0
    %2812 = vmatprep.mubr.bf16.mxu0 0
    %2813 = vmatmul.mubr.bf16.gmra.mrb[0].mxu0 %v2727
    %v2814 = vpop.f32.mrb[0].mxu0
    %v2815 = vadd.f32 0.0, %v2814
    %v2816 = vpop.f32.mrb[0].mxu0
    %v2817 = vpop.f32.mrb[0].mxu0
    %v2818 = vadd.f32 0.0, %v2817
    %v2819 = vpop.f32.mrb[0].mxu0
    %2820 = vmatprep.mubr.bf16.mxu0 0
    %2821 = vmatmul.mubr.bf16.gmra.mrb[0].mxu0 %v2730
    %v2822 = vpop.f32.mrb[0].mxu0
    %v2823 = vadd.f32 0.0, %v2822
    %v2824 = vpop.f32.mrb[0].mxu0
    %v2825 = vpop.f32.mrb[0].mxu0
    %v2826 = vadd.f32 0.0, %v2825
    %v2827 = vpop.f32.mrb[0].mxu0
    %2828 = vdwg.mxu0
    %v2829 = vadd.f32 %v2635, %v2767
    %v2830 = vadd.f32 %v2636, %v2770
    %v2831 = vadd.f32 %v2637, %v2775
    %v2832 = vadd.f32 %v2638, %v2778
    %v2833 = vadd.f32 %v2639, %v2783
    %v2834 = vadd.f32 %v2640, %v2786
    %v2835 = vadd.f32 %v2641, %v2791
    %v2836 = vadd.f32 %v2642, %v2794
    %v2837 = vadd.f32 %v2643, %v2799
    %v2838 = vadd.f32 %v2644, %v2802
    %v2839 = vadd.f32 %v2645, %v2807
    %v2840 = vadd.f32 %v2646, %v2810
    %v2841 = vadd.f32 %v2647, %v2815
    %v2842 = vadd.f32 %v2648, %v2818
    %v2843 = vadd.f32 %v2649, %v2823
    %v2844 = vadd.f32 %v2650, %v2826
    %v2845 = vld [vmem:[%s1891 + $0x2] sm:$0xff]
    %v2846 = vld [vmem:[%s1891 + $0x12] sm:$0xff]
    %v2847 = vld [vmem:[%s1891 + $0x22] sm:$0xff]
    %v2848 = vld [vmem:[%s1891 + $0x32] sm:$0xff]
    %v2849 = vld [vmem:[%s1891 + $0x42] sm:$0xff]
    %v2850 = vld [vmem:[%s1891 + $0x52] sm:$0xff]
    %v2851 = vld [vmem:[%s1891 + $0x62] sm:$0xff]
    %v2852 = vld [vmem:[%s1891 + $0x72] sm:$0xff]
    %v2853 = vld [vmem:[%s1891 + $0xa2] sm:$0xff]
    %v2854 = vld [vmem:[%s1891 + $0xb2] sm:$0xff]
    %v2855 = vld [vmem:[%s1891 + $0xc2] sm:$0xff]
    %v2856 = vld [vmem:[%s1891 + $0xd2] sm:$0xff]
    %v2857 = vld [vmem:[%s1891 + $0xe2] sm:$0xff]
    %v2858 = vld [vmem:[%s1891 + $0xf2] sm:$0xff]
    %v2859 = vld [vmem:[%s1891 + $0x102] sm:$0xff]
    %v2860 = vld [vmem:[%s1891 + $0x112] sm:$0xff]
    %v2861 = vpack.c.bf16 %v2846, %v2845
    %v2862 = vpack.c.bf16 %v2848, %v2847
    %v2863 = vpack.c.bf16 %v2850, %v2849
    %v2864 = vpack.c.bf16 %v2852, %v2851
    %v2865 = vpack.c.bf16 %v2854, %v2853
    %v2866 = vpack.c.bf16 %v2856, %v2855
    %v2867 = vpack.c.bf16 %v2858, %v2857
    %v2868 = vpack.c.bf16 %v2860, %v2859
    %s2869 = scalar_lea.vmem %s2, 160
    %v2870 = vld [vmem:[%s2869] sm:$0xf]
    %v2871 = vld [vmem:[%s2869 + $0x4] sm:$0xf]
    %v2872 = vld [vmem:[%s2869 + $0x8] sm:$0xf]
    %v2873 = vld [vmem:[%s2869 + $0xc] sm:$0xf]
    %v2874 = vld [vmem:[%s2869 + $0x10] sm:$0xf]
    %v2875 = vld [vmem:[%s2869 + $0x14] sm:$0xf]
    %v2876 = vld [vmem:[%s2869 + $0x18] sm:$0xf]
    %v2877 = vld [vmem:[%s2869 + $0x1c] sm:$0xf]
    %v2886 = vunpack.c.l.b16 %v2870
    %v2887 = vunpack.c.l.b16 %v2871
    %v2888 = vunpack.c.l.b16 %v2872
    %v2889 = vunpack.c.l.b16 %v2873
    %v2890 = vunpack.c.l.b16 %v2874
    %v2891 = vunpack.c.l.b16 %v2875
    %v2892 = vunpack.c.l.b16 %v2876
    %v2893 = vunpack.c.l.b16 %v2877
    %v2894 = vpack.c.b16 %v2887, %v2886
    %v2895 = vpack.c.b16 %v2889, %v2888
    %v2896 = vpack.c.b16 %v2891, %v2890
    %v2897 = vpack.c.b16 %v2893, %v2892
    %v2903 = vsel %vm1673, %v2861, 0
    %v2906 = vsel %vm1673, %v2862, 0
    %v2909 = vsel %vm1673, %v2863, 0
    %v2912 = vsel %vm1673, %v2864, 0
    %v2915 = vsel %vm1673, %v2865, 0
    %v2918 = vsel %vm1673, %v2866, 0
    %v2921 = vsel %vm1673, %v2867, 0
    %v2924 = vsel %vm1673, %v2868, 0
    %2926 = vmatprep.subr.bf16.mxu0 0
    %2927 = vmatpush1.bf16.msra.mxu0 %v2894
    %2928 = vmatprep.subr.bf16.mxu0 0
    %2929 = vmatpush1.bf16.msra.mxu0 %v2895
    %2930 = vmatprep.subr.bf16.mxu0 0
    %2931 = vmatpush1.bf16.msra.mxu0 %v2896
    %2932 = vmatprep.subr.bf16.mxu0 0
    %2933 = vmatpush1.bf16.msra.mxu0 %v2897
    %2934 = vmatprep.subr.bf16.mxu0 0
    %2935 = vmatpush1.bf16.msra.mxu0 0
    %2936 = vmatprep.subr.bf16.mxu0 0
    %2937 = vmatpush1.bf16.msra.mxu0 0
    %2938 = vmatprep.subr.bf16.mxu0 0
    %2939 = vmatpush1.bf16.msra.mxu0 0
    %2940 = vmatprep.subr.bf16.mxu0 0
    %2941 = vmatpush1.bf16.msra.mxu0 0
    %2942 = vmatprep.subr.bf16.mxu0 0
    %2943 = vmatpush1.bf16.msra.mxu0 0
    %2944 = vmatprep.subr.bf16.mxu0 0
    %2945 = vmatpush1.bf16.msra.mxu0 0
    %2946 = vmatprep.subr.bf16.mxu0 0
    %2947 = vmatpush1.bf16.msra.mxu0 0
    %2948 = vmatprep.subr.bf16.mxu0 0
    %2949 = vmatpush1.bf16.msra.mxu0 0
    %2950 = vmatprep.subr.bf16.mxu0 0
    %2951 = vmatpush1.bf16.msra.mxu0 0
    %2952 = vmatprep.subr.bf16.mxu0 0
    %2953 = vmatpush1.bf16.msra.mxu0 0
    %2954 = vmatprep.subr.bf16.mxu0 0
    %2955 = vmatpush1.bf16.msra.mxu0 0
    %2956 = vmatprep.subr.bf16.mxu0 0
    %2957 = vmatpush1.bf16.msra.mxu0 0
    %2958 = vmatprep.mubr.bf16.mxu0 0
    %2959 = vmatmul.mubr.bf16.gmra.mrb[0].mxu0 %v2903
    %v2960 = vpop.f32.mrb[0].mxu0
    %v2961 = vadd.f32 0.0, %v2960
    %v2962 = vpop.f32.mrb[0].mxu0
    %v2963 = vpop.f32.mrb[0].mxu0
    %v2964 = vadd.f32 0.0, %v2963
    %v2965 = vpop.f32.mrb[0].mxu0
    %2966 = vmatprep.mubr.bf16.mxu0 0
    %2967 = vmatmul.mubr.bf16.gmra.mrb[0].mxu0 %v2906
    %v2968 = vpop.f32.mrb[0].mxu0
    %v2969 = vadd.f32 0.0, %v2968
    %v2970 = vpop.f32.mrb[0].mxu0
    %v2971 = vpop.f32.mrb[0].mxu0
    %v2972 = vadd.f32 0.0, %v2971
    %v2973 = vpop.f32.mrb[0].mxu0
    %2974 = vmatprep.mubr.bf16.mxu0 0
    %2975 = vmatmul.mubr.bf16.gmra.mrb[0].mxu0 %v2909
    %v2976 = vpop.f32.mrb[0].mxu0
    %v2977 = vadd.f32 0.0, %v2976
    %v2978 = vpop.f32.mrb[0].mxu0
    %v2979 = vpop.f32.mrb[0].mxu0
    %v2980 = vadd.f32 0.0, %v2979
    %v2981 = vpop.f32.mrb[0].mxu0
    %2982 = vmatprep.mubr.bf16.mxu0 0
    %2983 = vmatmul.mubr.bf16.gmra.mrb[0].mxu0 %v2912
    %v2984 = vpop.f32.mrb[0].mxu0
    %v2985 = vadd.f32 0.0, %v2984
    %v2986 = vpop.f32.mrb[0].mxu0
    %v2987 = vpop.f32.mrb[0].mxu0
    %v2988 = vadd.f32 0.0, %v2987
    %v2989 = vpop.f32.mrb[0].mxu0
    %2990 = vmatprep.mubr.bf16.mxu0 0
    %2991 = vmatmul.mubr.bf16.gmra.mrb[0].mxu0 %v2915
    %v2992 = vpop.f32.mrb[0].mxu0
    %v2993 = vadd.f32 0.0, %v2992
    %v2994 = vpop.f32.mrb[0].mxu0
    %v2995 = vpop.f32.mrb[0].mxu0
    %v2996 = vadd.f32 0.0, %v2995
    %v2997 = vpop.f32.mrb[0].mxu0
    %2998 = vmatprep.mubr.bf16.mxu0 0
    %2999 = vmatmul.mubr.bf16.gmra.mrb[0].mxu0 %v2918
    %v3000 = vpop.f32.mrb[0].mxu0
    %v3001 = vadd.f32 0.0, %v3000
    %v3002 = vpop.f32.mrb[0].mxu0
    %v3003 = vpop.f32.mrb[0].mxu0
    %v3004 = vadd.f32 0.0, %v3003
    %v3005 = vpop.f32.mrb[0].mxu0
    %3006 = vmatprep.mubr.bf16.mxu0 0
    %3007 = vmatmul.mubr.bf16.gmra.mrb[0].mxu0 %v2921
    %v3008 = vpop.f32.mrb[0].mxu0
    %v3009 = vadd.f32 0.0, %v3008
    %v3010 = vpop.f32.mrb[0].mxu0
    %v3011 = vpop.f32.mrb[0].mxu0
    %v3012 = vadd.f32 0.0, %v3011
    %v3013 = vpop.f32.mrb[0].mxu0
    %3014 = vmatprep.mubr.bf16.mxu0 0
    %3015 = vmatmul.mubr.bf16.gmra.mrb[0].mxu0 %v2924
    %v3016 = vpop.f32.mrb[0].mxu0
    %v3017 = vadd.f32 0.0, %v3016
    %v3018 = vpop.f32.mrb[0].mxu0
    %v3019 = vpop.f32.mrb[0].mxu0
    %v3020 = vadd.f32 0.0, %v3019
    %v3021 = vpop.f32.mrb[0].mxu0
    %3022 = vdwg.mxu0
    %v3023 = vadd.f32 %v2829, %v2961
    %v3024 = vadd.f32 %v2830, %v2964
    %v3025 = vadd.f32 %v2831, %v2969
    %v3026 = vadd.f32 %v2832, %v2972
    %v3027 = vadd.f32 %v2833, %v2977
    %v3028 = vadd.f32 %v2834, %v2980
    %v3029 = vadd.f32 %v2835, %v2985
    %v3030 = vadd.f32 %v2836, %v2988
    %v3031 = vadd.f32 %v2837, %v2993
    %v3032 = vadd.f32 %v2838, %v2996
    %v3033 = vadd.f32 %v2839, %v3001
    %v3034 = vadd.f32 %v2840, %v3004
    %v3035 = vadd.f32 %v2841, %v3009
    %v3036 = vadd.f32 %v2842, %v3012
    %v3037 = vadd.f32 %v2843, %v3017
    %v3038 = vadd.f32 %v2844, %v3020
    %s3039 = scalar_lea.vmem [#allocation3], 32
    %v3040 = vld [vmem:[%s3039] sm:$0xff]
    %v3041 = vld [vmem:[%s3039 + $0x10] sm:$0xff]
    %v3042 = vld [vmem:[%s3039 + $0x20] sm:$0xff]
    %v3043 = vld [vmem:[%s3039 + $0x30] sm:$0xff]
    %v3044 = vld [vmem:[%s3039 + $0x40] sm:$0xff]
    %v3045 = vld [vmem:[%s3039 + $0x50] sm:$0xff]
    %v3046 = vld [vmem:[%s3039 + $0x60] sm:$0xff]
    %v3047 = vld [vmem:[%s3039 + $0x70] sm:$0xff]
    %v3048 = vld [vmem:[%s3039 + $0xa0] sm:$0xff]
    %v3049 = vld [vmem:[%s3039 + $0xb0] sm:$0xff]
    %v3050 = vld [vmem:[%s3039 + $0xc0] sm:$0xff]
    %v3051 = vld [vmem:[%s3039 + $0xd0] sm:$0xff]
    %v3052 = vld [vmem:[%s3039 + $0xe0] sm:$0xff]
    %v3053 = vld [vmem:[%s3039 + $0xf0] sm:$0xff]
    %v3054 = vld [vmem:[%s3039 + $0x100] sm:$0xff]
    %v3055 = vld [vmem:[%s3039 + $0x110] sm:$0xff]
    %v3056 = vpack.c.bf16 %v3041, %v3040
    %v3057 = vpack.c.bf16 %v3043, %v3042
    %v3058 = vpack.c.bf16 %v3045, %v3044
    %v3059 = vpack.c.bf16 %v3047, %v3046
    %v3060 = vpack.c.bf16 %v3049, %v3048
    %v3061 = vpack.c.bf16 %v3051, %v3050
    %v3062 = vpack.c.bf16 %v3053, %v3052
    %v3063 = vpack.c.bf16 %v3055, %v3054
    %s3064 = scalar_lea.vmem %s2, 192
    %v3065 = vld [vmem:[%s3064] sm:$0xf]
    %v3066 = vld [vmem:[%s3064 + $0x4] sm:$0xf]
    %v3067 = vld [vmem:[%s3064 + $0x8] sm:$0xf]
    %v3068 = vld [vmem:[%s3064 + $0xc] sm:$0xf]
    %v3069 = vld [vmem:[%s3064 + $0x10] sm:$0xf]
    %v3070 = vld [vmem:[%s3064 + $0x14] sm:$0xf]
    %v3071 = vld [vmem:[%s3064 + $0x18] sm:$0xf]
    %v3072 = vld [vmem:[%s3064 + $0x1c] sm:$0xf]
    %v3081 = vunpack.c.l.b16 %v3065
    %v3082 = vunpack.c.l.b16 %v3066
    %v3083 = vunpack.c.l.b16 %v3067
    %v3084 = vunpack.c.l.b16 %v3068
    %v3085 = vunpack.c.l.b16 %v3069
    %v3086 = vunpack.c.l.b16 %v3070
    %v3087 = vunpack.c.l.b16 %v3071
    %v3088 = vunpack.c.l.b16 %v3072
    %v3089 = vpack.c.b16 %v3082, %v3081
    %v3090 = vpack.c.b16 %v3084, %v3083
    %v3091 = vpack.c.b16 %v3086, %v3085
    %v3092 = vpack.c.b16 %v3088, %v3087
    %v3098 = vsel %vm1673, %v3056, 0
    %v3101 = vsel %vm1673, %v3057, 0
    %v3104 = vsel %vm1673, %v3058, 0
    %v3107 = vsel %vm1673, %v3059, 0
    %v3110 = vsel %vm1673, %v3060, 0
    %v3113 = vsel %vm1673, %v3061, 0
    %v3116 = vsel %vm1673, %v3062, 0
    %v3119 = vsel %vm1673, %v3063, 0
    %3121 = vmatprep.subr.bf16.mxu0 0
    %3122 = vmatpush1.bf16.msra.mxu0 %v3089
    %3123 = vmatprep.subr.bf16.mxu0 0
    %3124 = vmatpush1.bf16.msra.mxu0 %v3090
    %3125 = vmatprep.subr.bf16.mxu0 0
    %3126 = vmatpush1.bf16.msra.mxu0 %v3091
    %3127 = vmatprep.subr.bf16.mxu0 0
    %3128 = vmatpush1.bf16.msra.mxu0 %v3092
    %3129 = vmatprep.subr.bf16.mxu0 0
    %3130 = vmatpush1.bf16.msra.mxu0 0
    %3131 = vmatprep.subr.bf16.mxu0 0
    %3132 = vmatpush1.bf16.msra.mxu0 0
    %3133 = vmatprep.subr.bf16.mxu0 0
    %3134 = vmatpush1.bf16.msra.mxu0 0
    %3135 = vmatprep.subr.bf16.mxu0 0
    %3136 = vmatpush1.bf16.msra.mxu0 0
    %3137 = vmatprep.subr.bf16.mxu0 0
    %3138 = vmatpush1.bf16.msra.mxu0 0
    %3139 = vmatprep.subr.bf16.mxu0 0
    %3140 = vmatpush1.bf16.msra.mxu0 0
    %3141 = vmatprep.subr.bf16.mxu0 0
    %3142 = vmatpush1.bf16.msra.mxu0 0
    %3143 = vmatprep.subr.bf16.mxu0 0
    %3144 = vmatpush1.bf16.msra.mxu0 0
    %3145 = vmatprep.subr.bf16.mxu0 0
    %3146 = vmatpush1.bf16.msra.mxu0 0
    %3147 = vmatprep.subr.bf16.mxu0 0
    %3148 = vmatpush1.bf16.msra.mxu0 0
    %3149 = vmatprep.subr.bf16.mxu0 0
    %3150 = vmatpush1.bf16.msra.mxu0 0
    %3151 = vmatprep.subr.bf16.mxu0 0
    %3152 = vmatpush1.bf16.msra.mxu0 0
    %3153 = vmatprep.mubr.bf16.mxu0 0
    %3154 = vmatmul.mubr.bf16.gmra.mrb[0].mxu0 %v3098
    %v3155 = vpop.f32.mrb[0].mxu0
    %v3156 = vadd.f32 0.0, %v3155
    %v3157 = vpop.f32.mrb[0].mxu0
    %v3158 = vpop.f32.mrb[0].mxu0
    %v3159 = vadd.f32 0.0, %v3158
    %v3160 = vpop.f32.mrb[0].mxu0
    %3161 = vmatprep.mubr.bf16.mxu0 0
    %3162 = vmatmul.mubr.bf16.gmra.mrb[0].mxu0 %v3101
    %v3163 = vpop.f32.mrb[0].mxu0
    %v3164 = vadd.f32 0.0, %v3163
    %v3165 = vpop.f32.mrb[0].mxu0
    %v3166 = vpop.f32.mrb[0].mxu0
    %v3167 = vadd.f32 0.0, %v3166
    %v3168 = vpop.f32.mrb[0].mxu0
    %3169 = vmatprep.mubr.bf16.mxu0 0
    %3170 = vmatmul.mubr.bf16.gmra.mrb[0].mxu0 %v3104
    %v3171 = vpop.f32.mrb[0].mxu0
    %v3172 = vadd.f32 0.0, %v3171
    %v3173 = vpop.f32.mrb[0].mxu0
    %v3174 = vpop.f32.mrb[0].mxu0
    %v3175 = vadd.f32 0.0, %v3174
    %v3176 = vpop.f32.mrb[0].mxu0
    %3177 = vmatprep.mubr.bf16.mxu0 0
    %3178 = vmatmul.mubr.bf16.gmra.mrb[0].mxu0 %v3107
    %v3179 = vpop.f32.mrb[0].mxu0
    %v3180 = vadd.f32 0.0, %v3179
    %v3181 = vpop.f32.mrb[0].mxu0
    %v3182 = vpop.f32.mrb[0].mxu0
    %v3183 = vadd.f32 0.0, %v3182
    %v3184 = vpop.f32.mrb[0].mxu0
    %3185 = vmatprep.mubr.bf16.mxu0 0
    %3186 = vmatmul.mubr.bf16.gmra.mrb[0].mxu0 %v3110
    %v3187 = vpop.f32.mrb[0].mxu0
    %v3188 = vadd.f32 0.0, %v3187
    %v3189 = vpop.f32.mrb[0].mxu0
    %v3190 = vpop.f32.mrb[0].mxu0
    %v3191 = vadd.f32 0.0, %v3190
    %v3192 = vpop.f32.mrb[0].mxu0
    %3193 = vmatprep.mubr.bf16.mxu0 0
    %3194 = vmatmul.mubr.bf16.gmra.mrb[0].mxu0 %v3113
    %v3195 = vpop.f32.mrb[0].mxu0
    %v3196 = vadd.f32 0.0, %v3195
    %v3197 = vpop.f32.mrb[0].mxu0
    %v3198 = vpop.f32.mrb[0].mxu0
    %v3199 = vadd.f32 0.0, %v3198
    %v3200 = vpop.f32.mrb[0].mxu0
    %3201 = vmatprep.mubr.bf16.mxu0 0
    %3202 = vmatmul.mubr.bf16.gmra.mrb[0].mxu0 %v3116
    %v3203 = vpop.f32.mrb[0].mxu0
    %v3204 = vadd.f32 0.0, %v3203
    %v3205 = vpop.f32.mrb[0].mxu0
    %v3206 = vpop.f32.mrb[0].mxu0
    %v3207 = vadd.f32 0.0, %v3206
    %v3208 = vpop.f32.mrb[0].mxu0
    %3209 = vmatprep.mubr.bf16.mxu0 0
    %3210 = vmatmul.mubr.bf16.gmra.mrb[0].mxu0 %v3119
    %v3211 = vpop.f32.mrb[0].mxu0
    %v3212 = vadd.f32 0.0, %v3211
    %v3213 = vpop.f32.mrb[0].mxu0
    %v3214 = vpop.f32.mrb[0].mxu0
    %v3215 = vadd.f32 0.0, %v3214
    %v3216 = vpop.f32.mrb[0].mxu0
    %3217 = vdwg.mxu0
    %v3218 = vadd.f32 %v3023, %v3156
    %v3219 = vadd.f32 %v3024, %v3159
    %v3220 = vadd.f32 %v3025, %v3164
    %v3221 = vadd.f32 %v3026, %v3167
    %v3222 = vadd.f32 %v3027, %v3172
    %v3223 = vadd.f32 %v3028, %v3175
    %v3224 = vadd.f32 %v3029, %v3180
    %v3225 = vadd.f32 %v3030, %v3183
    %v3226 = vadd.f32 %v3031, %v3188
    %v3227 = vadd.f32 %v3032, %v3191
    %v3228 = vadd.f32 %v3033, %v3196
    %v3229 = vadd.f32 %v3034, %v3199
    %v3230 = vadd.f32 %v3035, %v3204
    %v3231 = vadd.f32 %v3036, %v3207
    %v3232 = vadd.f32 %v3037, %v3212
    %v3233 = vadd.f32 %v3038, %v3215
    %v3234 = vld [vmem:[%s3039 + $0x1] sm:$0xff]
    %v3235 = vld [vmem:[%s3039 + $0x11] sm:$0xff]
    %v3236 = vld [vmem:[%s3039 + $0x21] sm:$0xff]
    %v3237 = vld [vmem:[%s3039 + $0x31] sm:$0xff]
    %v3238 = vld [vmem:[%s3039 + $0x41] sm:$0xff]
    %v3239 = vld [vmem:[%s3039 + $0x51] sm:$0xff]
    %v3240 = vld [vmem:[%s3039 + $0x61] sm:$0xff]
    %v3241 = vld [vmem:[%s3039 + $0x71] sm:$0xff]
    %v3242 = vld [vmem:[%s3039 + $0xa1] sm:$0xff]
    %v3243 = vld [vmem:[%s3039 + $0xb1] sm:$0xff]
    %v3244 = vld [vmem:[%s3039 + $0xc1] sm:$0xff]
    %v3245 = vld [vmem:[%s3039 + $0xd1] sm:$0xff]
    %v3246 = vld [vmem:[%s3039 + $0xe1] sm:$0xff]
    %v3247 = vld [vmem:[%s3039 + $0xf1] sm:$0xff]
    %v3248 = vld [vmem:[%s3039 + $0x101] sm:$0xff]
    %v3249 = vld [vmem:[%s3039 + $0x111] sm:$0xff]
    %v3250 = vpack.c.bf16 %v3235, %v3234
    %v3251 = vpack.c.bf16 %v3237, %v3236
    %v3252 = vpack.c.bf16 %v3239, %v3238
    %v3253 = vpack.c.bf16 %v3241, %v3240
    %v3254 = vpack.c.bf16 %v3243, %v3242
    %v3255 = vpack.c.bf16 %v3245, %v3244
    %v3256 = vpack.c.bf16 %v3247, %v3246
    %v3257 = vpack.c.bf16 %v3249, %v3248
    %s3258 = scalar_lea.vmem %s2, 224
    %v3259 = vld [vmem:[%s3258] sm:$0xf]
    %v3260 = vld [vmem:[%s3258 + $0x4] sm:$0xf]
    %v3261 = vld [vmem:[%s3258 + $0x8] sm:$0xf]
    %v3262 = vld [vmem:[%s3258 + $0xc] sm:$0xf]
    %v3263 = vld [vmem:[%s3258 + $0x10] sm:$0xf]
    %v3264 = vld [vmem:[%s3258 + $0x14] sm:$0xf]
    %v3265 = vld [vmem:[%s3258 + $0x18] sm:$0xf]
    %v3266 = vld [vmem:[%s3258 + $0x1c] sm:$0xf]
    %v3275 = vunpack.c.l.b16 %v3259
    %v3276 = vunpack.c.l.b16 %v3260
    %v3277 = vunpack.c.l.b16 %v3261
    %v3278 = vunpack.c.l.b16 %v3262
    %v3279 = vunpack.c.l.b16 %v3263
    %v3280 = vunpack.c.l.b16 %v3264
    %v3281 = vunpack.c.l.b16 %v3265
    %v3282 = vunpack.c.l.b16 %v3266
    %v3283 = vpack.c.b16 %v3276, %v3275
    %v3284 = vpack.c.b16 %v3278, %v3277
    %v3285 = vpack.c.b16 %v3280, %v3279
    %v3286 = vpack.c.b16 %v3282, %v3281
    %v3292 = vsel %vm1673, %v3250, 0
    %v3295 = vsel %vm1673, %v3251, 0
    %v3298 = vsel %vm1673, %v3252, 0
    %v3301 = vsel %vm1673, %v3253, 0
    %v3304 = vsel %vm1673, %v3254, 0
    %v3307 = vsel %vm1673, %v3255, 0
    %v3310 = vsel %vm1673, %v3256, 0
    %v3313 = vsel %vm1673, %v3257, 0
    %3315 = vmatprep.subr.bf16.mxu0 0
    %3316 = vmatpush1.bf16.msra.mxu0 %v3283
    %3317 = vmatprep.subr.bf16.mxu0 0
    %3318 = vmatpush1.bf16.msra.mxu0 %v3284
    %3319 = vmatprep.subr.bf16.mxu0 0
    %3320 = vmatpush1.bf16.msra.mxu0 %v3285
    %3321 = vmatprep.subr.bf16.mxu0 0
    %3322 = vmatpush1.bf16.msra.mxu0 %v3286
    %3323 = vmatprep.subr.bf16.mxu0 0
    %3324 = vmatpush1.bf16.msra.mxu0 0
    %3325 = vmatprep.subr.bf16.mxu0 0
    %3326 = vmatpush1.bf16.msra.mxu0 0
    %3327 = vmatprep.subr.bf16.mxu0 0
    %3328 = vmatpush1.bf16.msra.mxu0 0
    %3329 = vmatprep.subr.bf16.mxu0 0
    %3330 = vmatpush1.bf16.msra.mxu0 0
    %3331 = vmatprep.subr.bf16.mxu0 0
    %3332 = vmatpush1.bf16.msra.mxu0 0
    %3333 = vmatprep.subr.bf16.mxu0 0
    %3334 = vmatpush1.bf16.msra.mxu0 0
    %3335 = vmatprep.subr.bf16.mxu0 0
    %3336 = vmatpush1.bf16.msra.mxu0 0
    %3337 = vmatprep.subr.bf16.mxu0 0
    %3338 = vmatpush1.bf16.msra.mxu0 0
    %3339 = vmatprep.subr.bf16.mxu0 0
    %3340 = vmatpush1.bf16.msra.mxu0 0
    %3341 = vmatprep.subr.bf16.mxu0 0
    %3342 = vmatpush1.bf16.msra.mxu0 0
    %3343 = vmatprep.subr.bf16.mxu0 0
    %3344 = vmatpush1.bf16.msra.mxu0 0
    %3345 = vmatprep.subr.bf16.mxu0 0
    %3346 = vmatpush1.bf16.msra.mxu0 0
    %3347 = vmatprep.mubr.bf16.mxu0 0
    %3348 = vmatmul.mubr.bf16.gmra.mrb[0].mxu0 %v3292
    %v3349 = vpop.f32.mrb[0].mxu0
    %v3350 = vadd.f32 0.0, %v3349
    %v3351 = vpop.f32.mrb[0].mxu0
    %v3352 = vpop.f32.mrb[0].mxu0
    %v3353 = vadd.f32 0.0, %v3352
    %v3354 = vpop.f32.mrb[0].mxu0
    %3355 = vmatprep.mubr.bf16.mxu0 0
    %3356 = vmatmul.mubr.bf16.gmra.mrb[0].mxu0 %v3295
    %v3357 = vpop.f32.mrb[0].mxu0
    %v3358 = vadd.f32 0.0, %v3357
    %v3359 = vpop.f32.mrb[0].mxu0
    %v3360 = vpop.f32.mrb[0].mxu0
    %v3361 = vadd.f32 0.0, %v3360
    %v3362 = vpop.f32.mrb[0].mxu0
    %3363 = vmatprep.mubr.bf16.mxu0 0
    %3364 = vmatmul.mubr.bf16.gmra.mrb[0].mxu0 %v3298
    %v3365 = vpop.f32.mrb[0].mxu0
    %v3366 = vadd.f32 0.0, %v3365
    %v3367 = vpop.f32.mrb[0].mxu0
    %v3368 = vpop.f32.mrb[0].mxu0
    %v3369 = vadd.f32 0.0, %v3368
    %v3370 = vpop.f32.mrb[0].mxu0
    %3371 = vmatprep.mubr.bf16.mxu0 0
    %3372 = vmatmul.mubr.bf16.gmra.mrb[0].mxu0 %v3301
    %v3373 = vpop.f32.mrb[0].mxu0
    %v3374 = vadd.f32 0.0, %v3373
    %v3375 = vpop.f32.mrb[0].mxu0
    %v3376 = vpop.f32.mrb[0].mxu0
    %v3377 = vadd.f32 0.0, %v3376
    %v3378 = vpop.f32.mrb[0].mxu0
    %3379 = vmatprep.mubr.bf16.mxu0 0
    %3380 = vmatmul.mubr.bf16.gmra.mrb[0].mxu0 %v3304
    %v3381 = vpop.f32.mrb[0].mxu0
    %v3382 = vadd.f32 0.0, %v3381
    %v3383 = vpop.f32.mrb[0].mxu0
    %v3384 = vpop.f32.mrb[0].mxu0
    %v3385 = vadd.f32 0.0, %v3384
    %v3386 = vpop.f32.mrb[0].mxu0
    %3387 = vmatprep.mubr.bf16.mxu0 0
    %3388 = vmatmul.mubr.bf16.gmra.mrb[0].mxu0 %v3307
    %v3389 = vpop.f32.mrb[0].mxu0
    %v3390 = vadd.f32 0.0, %v3389
    %v3391 = vpop.f32.mrb[0].mxu0
    %v3392 = vpop.f32.mrb[0].mxu0
    %v3393 = vadd.f32 0.0, %v3392
    %v3394 = vpop.f32.mrb[0].mxu0
    %3395 = vmatprep.mubr.bf16.mxu0 0
    %3396 = vmatmul.mubr.bf16.gmra.mrb[0].mxu0 %v3310
    %v3397 = vpop.f32.mrb[0].mxu0
    %v3398 = vadd.f32 0.0, %v3397
    %v3399 = vpop.f32.mrb[0].mxu0
    %v3400 = vpop.f32.mrb[0].mxu0
    %v3401 = vadd.f32 0.0, %v3400
    %v3402 = vpop.f32.mrb[0].mxu0
    %3403 = vmatprep.mubr.bf16.mxu0 0
    %3404 = vmatmul.mubr.bf16.gmra.mrb[0].mxu0 %v3313
    %v3405 = vpop.f32.mrb[0].mxu0
    %v3406 = vadd.f32 0.0, %v3405
    %v3407 = vpop.f32.mrb[0].mxu0
    %v3408 = vpop.f32.mrb[0].mxu0
    %v3409 = vadd.f32 0.0, %v3408
    %v3410 = vpop.f32.mrb[0].mxu0
    %3411 = vdwg.mxu0
    %v3412 = vadd.f32 %v3218, %v3350
    %v3413 = vadd.f32 %v3219, %v3353
    %v3414 = vadd.f32 %v3220, %v3358
    %v3415 = vadd.f32 %v3221, %v3361
    %v3416 = vadd.f32 %v3222, %v3366
    %v3417 = vadd.f32 %v3223, %v3369
    %v3418 = vadd.f32 %v3224, %v3374
    %v3419 = vadd.f32 %v3225, %v3377
    %v3420 = vadd.f32 %v3226, %v3382
    %v3421 = vadd.f32 %v3227, %v3385
    %v3422 = vadd.f32 %v3228, %v3390
    %v3423 = vadd.f32 %v3229, %v3393
    %v3424 = vadd.f32 %v3230, %v3398
    %v3425 = vadd.f32 %v3231, %v3401
    %v3426 = vadd.f32 %v3232, %v3406
    %v3427 = vadd.f32 %v3233, %v3409
    %v3428 = vld [vmem:[%s3039 + $0x2] sm:$0xff]
    %v3429 = vld [vmem:[%s3039 + $0x12] sm:$0xff]
    %v3430 = vld [vmem:[%s3039 + $0x22] sm:$0xff]
    %v3431 = vld [vmem:[%s3039 + $0x32] sm:$0xff]
    %v3432 = vld [vmem:[%s3039 + $0x42] sm:$0xff]
    %v3433 = vld [vmem:[%s3039 + $0x52] sm:$0xff]
    %v3434 = vld [vmem:[%s3039 + $0x62] sm:$0xff]
    %v3435 = vld [vmem:[%s3039 + $0x72] sm:$0xff]
    %v3436 = vld [vmem:[%s3039 + $0xa2] sm:$0xff]
    %v3437 = vld [vmem:[%s3039 + $0xb2] sm:$0xff]
    %v3438 = vld [vmem:[%s3039 + $0xc2] sm:$0xff]
    %v3439 = vld [vmem:[%s3039 + $0xd2] sm:$0xff]
    %v3440 = vld [vmem:[%s3039 + $0xe2] sm:$0xff]
    %v3441 = vld [vmem:[%s3039 + $0xf2] sm:$0xff]
    %v3442 = vld [vmem:[%s3039 + $0x102] sm:$0xff]
    %v3443 = vld [vmem:[%s3039 + $0x112] sm:$0xff]
    %v3444 = vpack.c.bf16 %v3429, %v3428
    %v3445 = vpack.c.bf16 %v3431, %v3430
    %v3446 = vpack.c.bf16 %v3433, %v3432
    %v3447 = vpack.c.bf16 %v3435, %v3434
    %v3448 = vpack.c.bf16 %v3437, %v3436
    %v3449 = vpack.c.bf16 %v3439, %v3438
    %v3450 = vpack.c.bf16 %v3441, %v3440
    %v3451 = vpack.c.bf16 %v3443, %v3442
    %s3452 = scalar_lea.vmem %s2, 256
    %v3453 = vld [vmem:[%s3452] sm:$0xf]
    %v3454 = vld [vmem:[%s3452 + $0x4] sm:$0xf]
    %v3455 = vld [vmem:[%s3452 + $0x8] sm:$0xf]
    %v3456 = vld [vmem:[%s3452 + $0xc] sm:$0xf]
    %v3457 = vld [vmem:[%s3452 + $0x10] sm:$0xf]
    %v3458 = vld [vmem:[%s3452 + $0x14] sm:$0xf]
    %v3459 = vld [vmem:[%s3452 + $0x18] sm:$0xf]
    %v3460 = vld [vmem:[%s3452 + $0x1c] sm:$0xf]
    %v3469 = vunpack.c.l.b16 %v3453
    %v3470 = vunpack.c.l.b16 %v3454
    %v3471 = vunpack.c.l.b16 %v3455
    %v3472 = vunpack.c.l.b16 %v3456
    %v3473 = vunpack.c.l.b16 %v3457
    %v3474 = vunpack.c.l.b16 %v3458
    %v3475 = vunpack.c.l.b16 %v3459
    %v3476 = vunpack.c.l.b16 %v3460
    %v3477 = vpack.c.b16 %v3470, %v3469
    %v3478 = vpack.c.b16 %v3472, %v3471
    %v3479 = vpack.c.b16 %v3474, %v3473
    %v3480 = vpack.c.b16 %v3476, %v3475
    %v3486 = vsel %vm1673, %v3444, 0
    %v3489 = vsel %vm1673, %v3445, 0
    %v3492 = vsel %vm1673, %v3446, 0
    %v3495 = vsel %vm1673, %v3447, 0
    %v3498 = vsel %vm1673, %v3448, 0
    %v3501 = vsel %vm1673, %v3449, 0
    %v3504 = vsel %vm1673, %v3450, 0
    %v3507 = vsel %vm1673, %v3451, 0
    %3509 = vmatprep.subr.bf16.mxu0 0
    %3510 = vmatpush1.bf16.msra.mxu0 %v3477
    %3511 = vmatprep.subr.bf16.mxu0 0
    %3512 = vmatpush1.bf16.msra.mxu0 %v3478
    %3513 = vmatprep.subr.bf16.mxu0 0
    %3514 = vmatpush1.bf16.msra.mxu0 %v3479
    %3515 = vmatprep.subr.bf16.mxu0 0
    %3516 = vmatpush1.bf16.msra.mxu0 %v3480
    %3517 = vmatprep.subr.bf16.mxu0 0
    %3518 = vmatpush1.bf16.msra.mxu0 0
    %3519 = vmatprep.subr.bf16.mxu0 0
    %3520 = vmatpush1.bf16.msra.mxu0 0
    %3521 = vmatprep.subr.bf16.mxu0 0
    %3522 = vmatpush1.bf16.msra.mxu0 0
    %3523 = vmatprep.subr.bf16.mxu0 0
    %3524 = vmatpush1.bf16.msra.mxu0 0
    %3525 = vmatprep.subr.bf16.mxu0 0
    %3526 = vmatpush1.bf16.msra.mxu0 0
    %3527 = vmatprep.subr.bf16.mxu0 0
    %3528 = vmatpush1.bf16.msra.mxu0 0
    %3529 = vmatprep.subr.bf16.mxu0 0
    %3530 = vmatpush1.bf16.msra.mxu0 0
    %3531 = vmatprep.subr.bf16.mxu0 0
    %3532 = vmatpush1.bf16.msra.mxu0 0
    %3533 = vmatprep.subr.bf16.mxu0 0
    %3534 = vmatpush1.bf16.msra.mxu0 0
    %3535 = vmatprep.subr.bf16.mxu0 0
    %3536 = vmatpush1.bf16.msra.mxu0 0
    %3537 = vmatprep.subr.bf16.mxu0 0
    %3538 = vmatpush1.bf16.msra.mxu0 0
    %3539 = vmatprep.subr.bf16.mxu0 0
    %3540 = vmatpush1.bf16.msra.mxu0 0
    %3541 = vmatprep.mubr.bf16.mxu0 0
    %3542 = vmatmul.mubr.bf16.gmra.mrb[0].mxu0 %v3486
    %v3543 = vpop.f32.mrb[0].mxu0
    %v3544 = vadd.f32 0.0, %v3543
    %v3545 = vpop.f32.mrb[0].mxu0
    %v3546 = vpop.f32.mrb[0].mxu0
    %v3547 = vadd.f32 0.0, %v3546
    %v3548 = vpop.f32.mrb[0].mxu0
    %3549 = vmatprep.mubr.bf16.mxu0 0
    %3550 = vmatmul.mubr.bf16.gmra.mrb[0].mxu0 %v3489
    %v3551 = vpop.f32.mrb[0].mxu0
    %v3552 = vadd.f32 0.0, %v3551
    %v3553 = vpop.f32.mrb[0].mxu0
    %v3554 = vpop.f32.mrb[0].mxu0
    %v3555 = vadd.f32 0.0, %v3554
    %v3556 = vpop.f32.mrb[0].mxu0
    %3557 = vmatprep.mubr.bf16.mxu0 0
    %3558 = vmatmul.mubr.bf16.gmra.mrb[0].mxu0 %v3492
    %v3559 = vpop.f32.mrb[0].mxu0
    %v3560 = vadd.f32 0.0, %v3559
    %v3561 = vpop.f32.mrb[0].mxu0
    %v3562 = vpop.f32.mrb[0].mxu0
    %v3563 = vadd.f32 0.0, %v3562
    %v3564 = vpop.f32.mrb[0].mxu0
    %3565 = vmatprep.mubr.bf16.mxu0 0
    %3566 = vmatmul.mubr.bf16.gmra.mrb[0].mxu0 %v3495
    %v3567 = vpop.f32.mrb[0].mxu0
    %v3568 = vadd.f32 0.0, %v3567
    %v3569 = vpop.f32.mrb[0].mxu0
    %v3570 = vpop.f32.mrb[0].mxu0
    %v3571 = vadd.f32 0.0, %v3570
    %v3572 = vpop.f32.mrb[0].mxu0
    %3573 = vmatprep.mubr.bf16.mxu0 0
    %3574 = vmatmul.mubr.bf16.gmra.mrb[0].mxu0 %v3498
    %v3575 = vpop.f32.mrb[0].mxu0
    %v3576 = vadd.f32 0.0, %v3575
    %v3577 = vpop.f32.mrb[0].mxu0
    %v3578 = vpop.f32.mrb[0].mxu0
    %v3579 = vadd.f32 0.0, %v3578
    %v3580 = vpop.f32.mrb[0].mxu0
    %3581 = vmatprep.mubr.bf16.mxu0 0
    %3582 = vmatmul.mubr.bf16.gmra.mrb[0].mxu0 %v3501
    %v3583 = vpop.f32.mrb[0].mxu0
    %v3584 = vadd.f32 0.0, %v3583
    %v3585 = vpop.f32.mrb[0].mxu0
    %v3586 = vpop.f32.mrb[0].mxu0
    %v3587 = vadd.f32 0.0, %v3586
    %v3588 = vpop.f32.mrb[0].mxu0
    %3589 = vmatprep.mubr.bf16.mxu0 0
    %3590 = vmatmul.mubr.bf16.gmra.mrb[0].mxu0 %v3504
    %v3591 = vpop.f32.mrb[0].mxu0
    %v3592 = vadd.f32 0.0, %v3591
    %v3593 = vpop.f32.mrb[0].mxu0
    %v3594 = vpop.f32.mrb[0].mxu0
    %v3595 = vadd.f32 0.0, %v3594
    %v3596 = vpop.f32.mrb[0].mxu0
    %3597 = vmatprep.mubr.bf16.mxu0 0
    %3598 = vmatmul.mubr.bf16.gmra.mrb[0].mxu0 %v3507
    %v3599 = vpop.f32.mrb[0].mxu0
    %v3600 = vadd.f32 0.0, %v3599
    %v3601 = vpop.f32.mrb[0].mxu0
    %v3602 = vpop.f32.mrb[0].mxu0
    %v3603 = vadd.f32 0.0, %v3602
    %v3604 = vpop.f32.mrb[0].mxu0
    %3605 = vdwg.mxu0
    %v3606 = vadd.f32 %v3412, %v3544
    %v3607 = vadd.f32 %v3413, %v3547
    %v3608 = vadd.f32 %v3414, %v3552
    %v3609 = vadd.f32 %v3415, %v3555
    %v3610 = vadd.f32 %v3416, %v3560
    %v3611 = vadd.f32 %v3417, %v3563
    %v3612 = vadd.f32 %v3418, %v3568
    %v3613 = vadd.f32 %v3419, %v3571
    %v3614 = vadd.f32 %v3420, %v3576
    %v3615 = vadd.f32 %v3421, %v3579
    %v3616 = vadd.f32 %v3422, %v3584
    %v3617 = vadd.f32 %v3423, %v3587
    %v3618 = vadd.f32 %v3424, %v3592
    %v3619 = vadd.f32 %v3425, %v3595
    %v3620 = vadd.f32 %v3426, %v3600
    %v3621 = vadd.f32 %v3427, %v3603
    %v3622 = vsel %vm1673, %v3606, 0.0
    %v3623 = vsel %vm1673, %v3607, 0.0
    %v3624 = vadd.f32 %v3622, %v3623
    %v3625 = vsel %vm1673, %v3608, 0.0
    %v3626 = vadd.f32 %v3624, %v3625
    %v3627 = vsel %vm1673, %v3609, 0.0
    %v3628 = vadd.f32 %v3626, %v3627
    %v3629 = vsel %vm1673, %v3610, 0.0
    %v3630 = vadd.f32 %v3628, %v3629
    %v3631 = vsel %vm1673, %v3611, 0.0
    %v3632 = vadd.f32 %v3630, %v3631
    %v3633 = vsel %vm1673, %v3612, 0.0
    %v3634 = vadd.f32 %v3632, %v3633
    %v3635 = vsel %vm1673, %v3613, 0.0
    %v3636 = vadd.f32 %v3634, %v3635
    %v3637 = vsel %vm1673, %v3614, 0.0
    %v3638 = vadd.f32 %v3636, %v3637
    %v3639 = vsel %vm1673, %v3615, 0.0
    %v3640 = vadd.f32 %v3638, %v3639
    %v3641 = vsel %vm1673, %v3616, 0.0
    %v3642 = vadd.f32 %v3640, %v3641
    %v3643 = vsel %vm1673, %v3617, 0.0
    %v3644 = vadd.f32 %v3642, %v3643
    %v3645 = vsel %vm1673, %v3618, 0.0
    %v3646 = vadd.f32 %v3644, %v3645
    %v3647 = vsel %vm1673, %v3619, 0.0
    %v3648 = vadd.f32 %v3646, %v3647
    %v3649 = vsel %vm1673, %v3620, 0.0
    %v3650 = vadd.f32 %v3648, %v3649
    %v3651 = vsel %vm1673, %v3621, 0.0
    %v3652 = vadd.f32 %v3650, %v3651
    %v3653 = vrot.slane %v3652, 4
    %v3654 = vadd.f32 %v3652, %v3653
    %v3655 = vrot.slane %v3654, 2
    %v3656 = vadd.f32 %v3654, %v3655
    %v3657 = vrot.slane %v3656, 1
    %v3658 = vadd.f32 %v3656, %v3657
    %v3659 = vmul.f32 %v3658, %v1711
    %v3660 = vsub.f32 %v3606, %v3659
    %v3661 = vsub.f32 %v3607, %v3659
    %v3662 = vsub.f32 %v3608, %v3659
    %v3663 = vsub.f32 %v3609, %v3659
    %v3664 = vsub.f32 %v3610, %v3659
    %v3665 = vsub.f32 %v3611, %v3659
    %v3666 = vsub.f32 %v3612, %v3659
    %v3667 = vsub.f32 %v3613, %v3659
    %v3668 = vsub.f32 %v3614, %v3659
    %v3669 = vsub.f32 %v3615, %v3659
    %v3670 = vsub.f32 %v3616, %v3659
    %v3671 = vsub.f32 %v3617, %v3659
    %v3672 = vsub.f32 %v3618, %v3659
    %v3673 = vsub.f32 %v3619, %v3659
    %v3674 = vsub.f32 %v3620, %v3659
    %v3675 = vsub.f32 %v3621, %v3659
    %v3676 = vmul.f32 %v3660, %v3660
    %v3677 = vmul.f32 %v3661, %v3661
    %v3678 = vmul.f32 %v3662, %v3662
    %v3679 = vmul.f32 %v3663, %v3663
    %v3680 = vmul.f32 %v3664, %v3664
    %v3681 = vmul.f32 %v3665, %v3665
    %v3682 = vmul.f32 %v3666, %v3666
    %v3683 = vmul.f32 %v3667, %v3667
    %v3684 = vmul.f32 %v3668, %v3668
    %v3685 = vmul.f32 %v3669, %v3669
    %v3686 = vmul.f32 %v3670, %v3670
    %v3687 = vmul.f32 %v3671, %v3671
    %v3688 = vmul.f32 %v3672, %v3672
    %v3689 = vmul.f32 %v3673, %v3673
    %v3690 = vmul.f32 %v3674, %v3674
    %v3691 = vmul.f32 %v3675, %v3675
    %v3692 = vsel %vm1673, %v3676, 0.0
    %v3693 = vsel %vm1673, %v3677, 0.0
    %v3694 = vadd.f32 %v3692, %v3693
    %v3695 = vsel %vm1673, %v3678, 0.0
    %v3696 = vadd.f32 %v3694, %v3695
    %v3697 = vsel %vm1673, %v3679, 0.0
    %v3698 = vadd.f32 %v3696, %v3697
    %v3699 = vsel %vm1673, %v3680, 0.0
    %v3700 = vadd.f32 %v3698, %v3699
    %v3701 = vsel %vm1673, %v3681, 0.0
    %v3702 = vadd.f32 %v3700, %v3701
    %v3703 = vsel %vm1673, %v3682, 0.0
    %v3704 = vadd.f32 %v3702, %v3703
    %v3705 = vsel %vm1673, %v3683, 0.0
    %v3706 = vadd.f32 %v3704, %v3705
    %v3707 = vsel %vm1673, %v3684, 0.0
    %v3708 = vadd.f32 %v3706, %v3707
    %v3709 = vsel %vm1673, %v3685, 0.0
    %v3710 = vadd.f32 %v3708, %v3709
    %v3711 = vsel %vm1673, %v3686, 0.0
    %v3712 = vadd.f32 %v3710, %v3711
    %v3713 = vsel %vm1673, %v3687, 0.0
    %v3714 = vadd.f32 %v3712, %v3713
    %v3715 = vsel %vm1673, %v3688, 0.0
    %v3716 = vadd.f32 %v3714, %v3715
    %v3717 = vsel %vm1673, %v3689, 0.0
    %v3718 = vadd.f32 %v3716, %v3717
    %v3719 = vsel %vm1673, %v3690, 0.0
    %v3720 = vadd.f32 %v3718, %v3719
    %v3721 = vsel %vm1673, %v3691, 0.0
    %v3722 = vadd.f32 %v3720, %v3721
    %v3723 = vrot.slane %v3722, 4
    %v3724 = vadd.f32 %v3722, %v3723
    %v3725 = vrot.slane %v3724, 2
    %v3726 = vadd.f32 %v3724, %v3725
    %v3727 = vrot.slane %v3726, 1
    %v3728 = vadd.f32 %v3726, %v3727
    %v3729 = vmul.f32 %v3728, %v1711
    %v3730 = vld [vmem:[%s5] sm:$0x1]
    %v3731 = vadd.f32 %v3729, 1e-05
    %v3732 = vrsqrt.pop %v3731
    %v3733 = vmul.f32 %v3730, %v3732
    %v3734 = vld [vmem:[%s6] sm:$0x1]
    %v3735 = vmul.f32 %v3659, %v3733
    %v3736 = vsub.f32 %v3734, %v3735
    %v3738 = vlaneseq
    %v3739 = vshrl.u32 %v3738, 7
    %v3740 = vsub.s32 0, %v3739
    %v3741 = vrot.slane %v3733, %v3740
    %v3743 = vmul.f32 %v3606, %v3741
    %v3744 = vmul.f32 %v3607, %v3741
    %v3745 = vmul.f32 %v3608, %v3741
    %v3746 = vmul.f32 %v3609, %v3741
    %v3747 = vmul.f32 %v3610, %v3741
    %v3748 = vmul.f32 %v3611, %v3741
    %v3749 = vmul.f32 %v3612, %v3741
    %v3750 = vmul.f32 %v3613, %v3741
    %v3751 = vmul.f32 %v3614, %v3741
    %v3752 = vmul.f32 %v3615, %v3741
    %v3753 = vmul.f32 %v3616, %v3741
    %v3754 = vmul.f32 %v3617, %v3741
    %v3755 = vmul.f32 %v3618, %v3741
    %v3756 = vmul.f32 %v3619, %v3741
    %v3757 = vmul.f32 %v3620, %v3741
    %v3758 = vmul.f32 %v3621, %v3741
    %v3760 = vlaneseq
    %v3761 = vshrl.u32 %v3760, 7
    %v3762 = vsub.s32 0, %v3761
    %v3763 = vrot.slane %v3736, %v3762
    %v3765 = vadd.f32 %v3743, %v3763
    %v3766 = vadd.f32 %v3744, %v3763
    %v3767 = vadd.f32 %v3745, %v3763
    %v3768 = vadd.f32 %v3746, %v3763
    %v3769 = vadd.f32 %v3747, %v3763
    %v3770 = vadd.f32 %v3748, %v3763
    %v3771 = vadd.f32 %v3749, %v3763
    %v3772 = vadd.f32 %v3750, %v3763
    %v3773 = vadd.f32 %v3751, %v3763
    %v3774 = vadd.f32 %v3752, %v3763
    %v3775 = vadd.f32 %v3753, %v3763
    %v3776 = vadd.f32 %v3754, %v3763
    %v3777 = vadd.f32 %v3755, %v3763
    %v3778 = vadd.f32 %v3756, %v3763
    %v3779 = vadd.f32 %v3757, %v3763
    %v3780 = vadd.f32 %v3758, %v3763
    %v3781 = vmax.f32 %v3765, 0.0
    %v3782 = vmax.f32 %v3766, 0.0
    %v3783 = vmax.f32 %v3767, 0.0
    %v3784 = vmax.f32 %v3768, 0.0
    %v3785 = vmax.f32 %v3769, 0.0
    %v3786 = vmax.f32 %v3770, 0.0
    %v3787 = vmax.f32 %v3771, 0.0
    %v3788 = vmax.f32 %v3772, 0.0
    %v3789 = vmax.f32 %v3773, 0.0
    %v3790 = vmax.f32 %v3774, 0.0
    %v3791 = vmax.f32 %v3775, 0.0
    %v3792 = vmax.f32 %v3776, 0.0
    %v3793 = vmax.f32 %v3777, 0.0
    %v3794 = vmax.f32 %v3778, 0.0
    %v3795 = vmax.f32 %v3779, 0.0
    %v3796 = vmax.f32 %v3780, 0.0
    %3797 = vst.msk [vmem:[#allocation4] sm:$0xff] %vm1673, %v3781
    %3798 = vst.msk [vmem:[#allocation4 + $0x8] sm:$0xff] %vm1673, %v3782
    %3799 = vst.msk [vmem:[#allocation4 + $0x10] sm:$0xff] %vm1673, %v3783
    %3800 = vst.msk [vmem:[#allocation4 + $0x18] sm:$0xff] %vm1673, %v3784
    %3801 = vst.msk [vmem:[#allocation4 + $0x20] sm:$0xff] %vm1673, %v3785
    %3802 = vst.msk [vmem:[#allocation4 + $0x28] sm:$0xff] %vm1673, %v3786
    %3803 = vst.msk [vmem:[#allocation4 + $0x30] sm:$0xff] %vm1673, %v3787
    %3804 = vst.msk [vmem:[#allocation4 + $0x38] sm:$0xff] %vm1673, %v3788
    %3805 = vst.msk [vmem:[#allocation4 + $0x40] sm:$0xff] %vm1673, %v3789
    %3806 = vst.msk [vmem:[#allocation4 + $0x48] sm:$0xff] %vm1673, %v3790
    %3807 = vst.msk [vmem:[#allocation4 + $0x50] sm:$0xff] %vm1673, %v3791
    %3808 = vst.msk [vmem:[#allocation4 + $0x58] sm:$0xff] %vm1673, %v3792
    %3809 = vst.msk [vmem:[#allocation4 + $0x60] sm:$0xff] %vm1673, %v3793
    %3810 = vst.msk [vmem:[#allocation4 + $0x68] sm:$0xff] %vm1673, %v3794
    %3811 = vst.msk [vmem:[#allocation4 + $0x70] sm:$0xff] %vm1673, %v3795
    %3812 = vst.msk [vmem:[#allocation4 + $0x78] sm:$0xff] %vm1673, %v3796
    // Predicated region
    $region30: #{down_forward.1} parent=1 // pred_check
      _
    $region31: #{down_forward.1} parent=1 // pred_check_branch
      %3814 = sbr.rel (0) target = $region33
    $region32: #{down_forward.1} parent=1 // pred_region
      %s3816 = ssub.s32 2048, 2048
      %3817 = vsyncadd [#allocation5], %s3816
      %s3818 = sshll.u32 [#allocation4], 4
      %s3819 = int_to_ptr.vmem [resolvable:$true] %s3818
      %3824 = dma.vmem_to_hbm [thread:$0]  %s3819, 2048, %s7, [#allocation5], 128, 128, 8
    $region33: #{down_forward.1} parent=1 // pred_fallthru
      _
    // Predicated region
    $region34: #{down_forward.1} parent=1 // pred_check
      _
    $region35: #{down_forward.1} parent=1 // pred_check_branch
      %3826 = sbr.rel (0) target = $region37
    $region36: #{down_forward.1} parent=1 // pred_region
      %3827 = dma.done [#allocation5], 2048
    $region37: #{down_forward.1} parent=1 // pred_fallthru
      _
    %3828 = vsyncpa [#allocation5], 1

</llo_original>
